<compile_context>
chip_gen: v5e
topology: v5e:2x2
jax: 0.10.0
libtpu: 0.0.40
codegen_flags: <defaults>
</compile_context>

<pallas_src>
import jax
import jax.numpy as jnp
from jax.experimental import pallas as pl
from jax.experimental.pallas import tpu as pltpu

IN_FEATURES = 2 * 34 * 34   # 2312
HIDDEN = 500
OUT = 10
TAU = 2.0
V_THRESHOLD = 1.0

H_PAD = 512      # 4 * 128  (hidden, zero-padded -> inert)
OUT_PAD = 128    # lane-dense output tile, zero-padded -> sliced off
TB_MAX = 512     # batch-tile rows for large batches


def snn_kernel(x_ref, w1_ref, w2_ref, out_ref):
    # Layer 1 on the MXU in bf16 with f32 accumulation: [TB, K] @ [K, H_PAD].
    x = x_ref[...].astype(jnp.bfloat16)
    h = jnp.dot(x, w1_ref[...], preferred_element_type=jnp.float32)
    # LIF charge from zero state: v = h / tau; spike = heaviside(v - v_th),
    # folded into a single compare (padded hidden cols have h == 0 -> 0).
    spike = (h >= (TAU * V_THRESHOLD)).astype(jnp.bfloat16)   # exact {0, 1}
    # Layer 2: [TB, H_PAD] @ [H_PAD, OUT_PAD] -> f32, lane-dense store.
    out_ref[...] = jnp.dot(spike, w2_ref[...], preferred_element_type=jnp.float32)


def prepare_weights(w1, w2):
    """One-time preprocessing (hoisted out of the hot path).

    w1: [500, 2312], w2: [10, 500] (PyTorch layouts) -> bf16, transposed,
    zero-padded operands w1t: [2312, H_PAD], w2t: [H_PAD, OUT_PAD].
    K (=2312) is deliberately NOT padded.
    """
    w1t = jnp.pad(w1.T, ((0, 0), (0, H_PAD - HIDDEN))).astype(jnp.bfloat16)
    w2t = jnp.pad(w2.T, ((0, H_PAD - HIDDEN), (0, OUT_PAD - OUT))).astype(jnp.bfloat16)
    return w1t, w2t


def _round_up(a, m):
    return (a + m - 1) // m * m


def _choose_tb(B):
    if B <= 8:
        return B                                   # one full-extent tile
    if B <= 2 * TB_MAX:
        # >= 2 grid steps so a v7x megacore can put a tile on each TensorCore.
        return min(TB_MAX, _round_up(pl.cdiv(B, 2), 8))
    return TB_MAX


def snn_forward(x_nchw, w1t, w2t):
    """x_nchw: [B, 2, 34, 34]; w1t/w2t: padded bf16 weights from prepare_weights."""
    B = x_nchw.shape[0]
    x_flat = x_nchw.reshape(B, -1)      # pure reshape; no HBM pad/cast copies

    TB = _choose_tb(B)
    grid = (pl.cdiv(B, TB),)

    out = pl.pallas_call(
        snn_kernel,
        out_shape=jax.ShapeDtypeStruct((B, OUT_PAD), jnp.float32),
        grid=grid,
        in_specs=[
            # Activation stream: one batch tile per grid step (auto double-
            # buffered).  Full feature extent (2312) -> no K padding needed.
            pl.BlockSpec((TB, IN_FEATURES), lambda i: (i, 0)),
            # Weights: constant index_map -> fetched once, VMEM-resident.
            pl.BlockSpec((IN_FEATURES, H_PAD), lambda i: (0, 0)),
            pl.BlockSpec((H_PAD, OUT_PAD), lambda i: (0, 0)),
        ],
        out_specs=pl.BlockSpec((TB, OUT_PAD), lambda i: (i, 0)),
        compiler_params=pltpu.CompilerParams(
            # On v7x, pltpu.CORE_PARALLEL here would shard the batch grid
            # across both TensorCores; "parallel" is the portable default.
            dimension_semantics=("parallel",),
            vmem_limit_bytes=32 * 1024 * 1024,
        ),
    )(x_flat, w1t, w2t)
    return out[:, :OUT]


def reference_forward(x_nchw, w1, w2):
    """Flatten -> Linear -> LIF(v=0, decay_input=True) -> Linear, evaluated
    under the same bf16 operand policy as the kernel."""
    x = x_nchw.reshape(x_nchw.shape[0], -1).astype(jnp.bfloat16)
    h = jnp.dot(x, w1.T.astype(jnp.bfloat16), preferred_element_type=jnp.float32)
    v = h / TAU
    spike = (v >= V_THRESHOLD).astype(jnp.bfloat16)
    return jnp.dot(spike, w2.T.astype(jnp.bfloat16), preferred_element_type=jnp.float32)


if __name__ == "__main__":
    key = jax.random.PRNGKey(0)
    kx, k1, k2 = jax.random.split(key, 3)

    B = 2
    # Input consistent with Flatten(2*34*34): NCHW [B, 2, 34, 34],
    # scaled so the LIF threshold actually produces some spikes.
    x = 4.0 * jax.random.normal(kx, (B, 2, 34, 34), dtype=jnp.float32)

    # Deterministic Linear weights (PyTorch default: U(-1/sqrt(fan_in), ...)).
    bound1 = 1.0 / (IN_FEATURES ** 0.5)
    bound2 = 1.0 / (HIDDEN ** 0.5)
    w1 = jax.random.uniform(k1, (HIDDEN, IN_FEATURES), jnp.float32, -bound1, bound1)
    w2 = jax.random.uniform(k2, (OUT, HIDDEN), jnp.float32, -bound2, bound2)

    # One-time weight preprocessing (hoisted out of the per-call path).
    w1t, w2t = prepare_weights(w1, w2)

    out = snn_forward(x, w1t, w2t)
    out = jax.block_until_ready(out)

    ref = reference_forward(x, w1, w2)
    assert out.shape == (B, OUT)
    assert jnp.allclose(out, ref, atol=2e-3, rtol=1e-3), "mismatch vs reference"

    print("KERNEL_OK")
</pallas_src>

<mosaic_0001>
module attributes {stable_mosaic.version = 11 : i64} {
  func.func @snn_kernel(%arg0: i32, %arg1: memref<2x2312xf32, #tpu.memory_space<vmem>>, %arg2: memref<2312x512xbf16, #tpu.memory_space<vmem>>, %arg3: memref<512x128xbf16, #tpu.memory_space<vmem>>, %arg4: memref<2x128xf32, #tpu.memory_space<vmem>>) attributes {dimension_semantics = [#tpu.dimension_semantics<parallel>], iteration_bounds = array<i64: 1>, scalar_prefetch = 0 : i64, scratch_operands = 0 : i64, tpu.core_type = #tpu.core_type<tc>, window_params = [{transform_indices = @transform_0, window_bounds = array<i64: 2, 2312>}, {pipeline_mode = #tpu.pipeline_mode<synchronous>, transform_indices = @transform_1, window_bounds = array<i64: 2312, 512>}, {pipeline_mode = #tpu.pipeline_mode<synchronous>, transform_indices = @transform_2, window_bounds = array<i64: 512, 128>}, {transform_indices = @transform_3, window_bounds = array<i64: 2, 128>}]} {
    %c0 = arith.constant 0 : index
    %c0_0 = arith.constant 0 : index
    %0 = vector.load %arg1[%c0, %c0_0] : memref<2x2312xf32, #tpu.memory_space<vmem>>, vector<2x2312xf32>
    %1 = arith.truncf %0 : vector<2x2312xf32> to vector<2x2312xbf16>
    %c0_1 = arith.constant 0 : index
    %c0_2 = arith.constant 0 : index
    %2 = vector.load %arg2[%c0_1, %c0_2] : memref<2312x512xbf16, #tpu.memory_space<vmem>>, vector<2312x512xbf16>
    %cst = arith.constant dense<0.000000e+00> : vector<2x512xf32>
    %3 = tpu.matmul %1, %2, %cst {dimension_numbers = #tpu.dot_dimension_numbers<[1], [0], [0], [1], [0, 0, 1, 1], [], []>} : vector<2x2312xbf16>, vector<2312x512xbf16>, vector<2x512xf32> -> vector<2x512xf32>
    %cst_3 = arith.constant 2.000000e+00 : f32
    %4 = vector.broadcast %cst_3 : f32 to vector<2x512xf32>
    %5 = arith.cmpf oge, %3, %4 : vector<2x512xf32>
    %6 = arith.extui %5 : vector<2x512xi1> to vector<2x512xi32>
    %7 = arith.sitofp %6 : vector<2x512xi32> to vector<2x512xf32>
    %8 = arith.truncf %7 : vector<2x512xf32> to vector<2x512xbf16>
    %c0_4 = arith.constant 0 : index
    %c0_5 = arith.constant 0 : index
    %9 = vector.load %arg3[%c0_4, %c0_5] : memref<512x128xbf16, #tpu.memory_space<vmem>>, vector<512x128xbf16>
    %cst_6 = arith.constant dense<0.000000e+00> : vector<2x128xf32>
    %10 = tpu.matmul %8, %9, %cst_6 {dimension_numbers = #tpu.dot_dimension_numbers<[1], [0], [0], [1], [0, 0, 1, 1], [], []>} : vector<2x512xbf16>, vector<512x128xbf16>, vector<2x128xf32> -> vector<2x128xf32>
    %c0_7 = arith.constant 0 : index
    %c0_8 = arith.constant 0 : index
    %11 = vector.load %arg4[%c0_7, %c0_8] : memref<2x128xf32, #tpu.memory_space<vmem>>, vector<2x128xf32>
    tpu.vector_store %arg4[%c0_7, %c0_8], %10 {strides = array<i32>} : memref<2x128xf32, #tpu.memory_space<vmem>>, vector<2x128xf32>,
    return
  }
  func.func @transform_0(%arg0: i32) -> (i32, i32) {
    %c0_i32 = arith.constant 0 : i32
    %c0_i32_0 = arith.constant 0 : i32
    return %arg0, %c0_i32 : i32, i32
  }
  func.func @transform_1(%arg0: i32) -> (i32, i32) {
    %c0_i32 = arith.constant 0 : i32
    %c0_i32_0 = arith.constant 0 : i32
    %c0_i32_1 = arith.constant 0 : i32
    return %c0_i32, %c0_i32_0 : i32, i32
  }
  func.func @transform_2(%arg0: i32) -> (i32, i32) {
    %c0_i32 = arith.constant 0 : i32
    %c0_i32_0 = arith.constant 0 : i32
    %c0_i32_1 = arith.constant 0 : i32
    return %c0_i32, %c0_i32_0 : i32, i32
  }
  func.func @transform_3(%arg0: i32) -> (i32, i32) {
    %c0_i32 = arith.constant 0 : i32
    %c0_i32_0 = arith.constant 0 : i32
    return %arg0, %c0_i32 : i32, i32
  }
}

</mosaic_0001>

<llo_original>
// kernel: tpu_custom_call.1
$region0: #{tpu_custom_call.1}
  #allocation0 [shape = 'u32[]', space=smem, size = 0x4, offset = 0x4, fixed_abs, tag = 'smem constant byte address 0x4 - core index']
  #allocation1 [shape = 'u32[72,128]{1,0:T(1,128)}', space=vmem, size = 0x9000, scoped, tag = 'internal scratch']
  %s0 = inlined_call_operand.hbm [shape: f32[2,2312], index: 0, kind: input, shape index: {}]
  %s1 = inlined_call_operand.hbm [shape: bf16[2312,512], index: 1, kind: input, shape index: {}]
  %s2 = inlined_call_operand.hbm [shape: bf16[512,128], index: 2, kind: input, shape index: {}]
  %s3 = inlined_call_operand.hbm [shape: f32[2,128], index: 3, kind: output, shape index: {}]
  %s4 = sld [smem:[#allocation0]]
  $region34: #{tpu_custom_call.1} parent=0
    _
  %s6 = ssub.s32 1, %s4
  %s7 = scalar_select 0, %s6, %s4
  $region1: #{tpu_custom_call.1} parent=0
    #allocation2 [shape = 'u8[19456]{0}', space=vmem, size = 0x4c00, scoped, tag = 'input window, operand 0, single buffered']
    #allocation3 [shape = 's32[1]{0}', space=sflag, size = 0x4, scoped, tag = 'scoped memory for tpu_custom_call.1']
    #allocation4 [shape = 's32[1]{0}', space=sflag, size = 0x4, scoped, tag = 'scoped memory for tpu_custom_call.1']
    #allocation5 [shape = 'u8[2367488]{0}', space=vmem, size = 0x242000, scoped, tag = 'input window, operand 1, single buffered']
    #allocation6 [shape = 's32[1]{0}', space=sflag, size = 0x4, scoped, tag = 'scoped memory for tpu_custom_call.1']
    #allocation7 [shape = 'u8[131072]{0}', space=vmem, size = 0x20000, scoped, tag = 'input window, operand 2, single buffered']
    #allocation8 [shape = 'u8[1024]{0}', space=vmem, size = 0x400, scoped, tag = 'output window, operand 0, single buffered']
    %8 = vsyncpa [#allocation3], 0
    %9 = vsyncpa [#allocation6], 0
    %10 = vsyncpa [#allocation4], 0
    // Predicated region
    $region2: #{tpu_custom_call.1} parent=1 // pred_check
      _
    $region3: #{tpu_custom_call.1} parent=1 // pred_check_branch
      %12 = sbr.rel (0) target = $region5
    $region4: #{tpu_custom_call.1} parent=1 // pred_region
      %14 = vsyncadd [#allocation3], 0
      %s16 = sshll.u32 %s0, 4
      %s17 = int_to_ptr.hbm [resolvable:$true] %s16
      %s18 = sshll.u32 [#allocation2], 4
      %s19 = int_to_ptr.vmem [resolvable:$true] %s18
      %21 = dma.hbm_to_vmem [thread:$0]  %s17, 608, %s19, [#allocation3]
    $region5: #{tpu_custom_call.1} parent=1 // pred_fallthru
      _
    // Predicated region
    $region6: #{tpu_custom_call.1} parent=1 // pred_check
      _
    $region7: #{tpu_custom_call.1} parent=1 // pred_check_branch
      %23 = sbr.rel (0) target = $region9
    $region8: #{tpu_custom_call.1} parent=1 // pred_region
      %25 = vsyncadd [#allocation6], 0
      %s26 = sshll.u32 %s1, 4
      %s27 = int_to_ptr.hbm [resolvable:$true] %s26
      %s28 = sshll.u32 [#allocation5], 4
      %s29 = int_to_ptr.vmem [resolvable:$true] %s28
      %34 = dma.hbm_to_vmem [thread:$0]  %s27, 73984, %s29, [#allocation6], 256, 256, 16
    $region9: #{tpu_custom_call.1} parent=1 // pred_fallthru
      _
    // Predicated region
    $region10: #{tpu_custom_call.1} parent=1 // pred_check
      _
    $region11: #{tpu_custom_call.1} parent=1 // pred_check_branch
      %36 = sbr.rel (0) target = $region13
    $region12: #{tpu_custom_call.1} parent=1 // pred_region
      %38 = vsyncadd [#allocation6], 0
      %s39 = sshll.u32 %s2, 4
      %s40 = int_to_ptr.hbm [resolvable:$true] %s39
      %s41 = sshll.u32 [#allocation7], 4
      %s42 = int_to_ptr.vmem [resolvable:$true] %s41
      %47 = dma.hbm_to_vmem [thread:$0]  %s40, 4096, %s42, [#allocation6], 64, 64, 4
    $region13: #{tpu_custom_call.1} parent=1 // pred_fallthru
      _
    // Predicated region
    $region14: #{tpu_custom_call.1} parent=1 // pred_check
      _
    $region15: #{tpu_custom_call.1} parent=1 // pred_check_branch
      %49 = sbr.rel (0) target = $region17
    $region16: #{tpu_custom_call.1} parent=1 // pred_region
      %51 = dma.done [#allocation3], 608
    $region17: #{tpu_custom_call.1} parent=1 // pred_fallthru
      _
    // Predicated region
    $region18: #{tpu_custom_call.1} parent=1 // pred_check
      _
    $region19: #{tpu_custom_call.1} parent=1 // pred_check_branch
      %53 = sbr.rel (0) target = $region21
    $region20: #{tpu_custom_call.1} parent=1 // pred_region
      %55 = dma.done [#allocation6], 73984
    $region21: #{tpu_custom_call.1} parent=1 // pred_fallthru
      _
    // Predicated region
    $region22: #{tpu_custom_call.1} parent=1 // pred_check
      _
    $region23: #{tpu_custom_call.1} parent=1 // pred_check_branch
      %57 = sbr.rel (0) target = $region25
    $region24: #{tpu_custom_call.1} parent=1 // pred_region
      %59 = dma.done [#allocation6], 4096
    $region25: #{tpu_custom_call.1} parent=1 // pred_fallthru
      _
    %v61 = vld [vmem:[#allocation2] sm:$0xff]
    %v62 = vld [vmem:[#allocation2 + $0x8] sm:$0xff]
    %v63 = vld [vmem:[#allocation2 + $0x10] sm:$0xff]
    %v64 = vld [vmem:[#allocation2 + $0x18] sm:$0xff]
    %v65 = vld [vmem:[#allocation2 + $0x20] sm:$0x3f]
    %71 = vst [vmem:[#allocation1] ss:$4 sm:$0xff] %v61
    %s72 = scalar_lea.vmem [#allocation1], 32
    %73 = vst [vmem:[%s72] ss:$4 sm:$0xff] %v62
    %v74 = vld.sshfl [vmem:[#allocation1] sm:$0xff pattern:$0x73625140]
    %v75 = vld.sshfl [vmem:[#allocation1 + $0x8] sm:$0xff pattern:$0x73625140]
    %v76 = vld.sshfl [vmem:[#allocation1 + $0x10] sm:$0xff pattern:$0x73625140]
    %v77 = vld.sshfl [vmem:[#allocation1 + $0x18] sm:$0xff pattern:$0x73625140]
    %v78 = vld.sshfl [vmem:[#allocation1 + $0x20] sm:$0xff pattern:$0x73625140]
    %v79 = vld.sshfl [vmem:[#allocation1 + $0x28] sm:$0xff pattern:$0x73625140]
    %v80 = vld.sshfl [vmem:[#allocation1 + $0x30] sm:$0xff pattern:$0x73625140]
    %v81 = vld.sshfl [vmem:[#allocation1 + $0x38] sm:$0xff pattern:$0x73625140]
    %82 = vst [vmem:[#allocation1] ss:$4 sm:$0xff] %v63
    %83 = vst [vmem:[%s72] ss:$4 sm:$0xff] %v64
    %v84 = vld.sshfl [vmem:[#allocation1] sm:$0xff pattern:$0x73625140]
    %v85 = vld.sshfl [vmem:[#allocation1 + $0x8] sm:$0xff pattern:$0x73625140]
    %v86 = vld.sshfl [vmem:[#allocation1 + $0x10] sm:$0xff pattern:$0x73625140]
    %v87 = vld.sshfl [vmem:[#allocation1 + $0x18] sm:$0xff pattern:$0x73625140]
    %v88 = vld.sshfl [vmem:[#allocation1 + $0x20] sm:$0xff pattern:$0x73625140]
    %v89 = vld.sshfl [vmem:[#allocation1 + $0x28] sm:$0xff pattern:$0x73625140]
    %v90 = vld.sshfl [vmem:[#allocation1 + $0x30] sm:$0xff pattern:$0x73625140]
    %v91 = vld.sshfl [vmem:[#allocation1 + $0x38] sm:$0xff pattern:$0x73625140]
    %92 = vst [vmem:[#allocation1] ss:$4 sm:$0xff] %v65
    %v93 = vld.sshfl [vmem:[#allocation1] sm:$0xff pattern:$0x73625140]
    %v94 = vld.sshfl [vmem:[#allocation1 + $0x8] sm:$0xff pattern:$0x73625140]
    %v95 = vld.sshfl [vmem:[#allocation1 + $0x10] sm:$0xff pattern:$0x73625140]
    %v115 = vpack.c.bf16 %v74, %v74
    %v116 = vpack.c.bf16 %v75, %v75
    %v117 = vpack.c.bf16 %v76, %v76
    %v118 = vpack.c.bf16 %v77, %v77
    %v119 = vpack.c.bf16 %v78, %v78
    %v120 = vpack.c.bf16 %v79, %v79
    %v121 = vpack.c.bf16 %v80, %v80
    %v122 = vpack.c.bf16 %v81, %v81
    %v123 = vpack.c.bf16 %v84, %v84
    %v124 = vpack.c.bf16 %v85, %v85
    %v125 = vpack.c.bf16 %v86, %v86
    %v126 = vpack.c.bf16 %v87, %v87
    %v127 = vpack.c.bf16 %v88, %v88
    %v128 = vpack.c.bf16 %v89, %v89
    %v129 = vpack.c.bf16 %v90, %v90
    %v130 = vpack.c.bf16 %v91, %v91
    %v131 = vpack.c.bf16 %v93, %v93
    %v132 = vpack.c.bf16 %v94, %v94
    %v133 = vpack.c.bf16 %v95, %v95
    %v134 = vld [vmem:[#allocation5] sm:$0xff]
    %v135 = vld [vmem:[#allocation5 + $0x8] sm:$0xff]
    %v136 = vld [vmem:[#allocation5 + $0x10] sm:$0xff]
    %v137 = vld [vmem:[#allocation5 + $0x18] sm:$0xff]
    %v138 = vld [vmem:[#allocation5 + $0x20] sm:$0xff]
    %v139 = vld [vmem:[#allocation5 + $0x28] sm:$0xff]
    %v140 = vld [vmem:[#allocation5 + $0x30] sm:$0xff]
    %v141 = vld [vmem:[#allocation5 + $0x38] sm:$0xff]
    %v142 = vld [vmem:[#allocation5 + $0x40] sm:$0xff]
    %v143 = vld [vmem:[#allocation5 + $0x48] sm:$0xff]
    %v144 = vld [vmem:[#allocation5 + $0x50] sm:$0xff]
    %v145 = vld [vmem:[#allocation5 + $0x58] sm:$0xff]
    %v146 = vld [vmem:[#allocation5 + $0x60] sm:$0xff]
    %v147 = vld [vmem:[#allocation5 + $0x68] sm:$0xff]
    %v148 = vld [vmem:[#allocation5 + $0x70] sm:$0xff]
    %v149 = vld [vmem:[#allocation5 + $0x78] sm:$0xff]
    %v150 = vld [vmem:[#allocation5 + $0x80] sm:$0xff]
    %v151 = vld [vmem:[#allocation5 + $0x88] sm:$0xff]
    %v152 = vld [vmem:[#allocation5 + $0x90] sm:$0xff]
    %v153 = vld [vmem:[#allocation5 + $0x98] sm:$0xff]
    %v154 = vld [vmem:[#allocation5 + $0xa0] sm:$0xff]
    %v155 = vld [vmem:[#allocation5 + $0xa8] sm:$0xff]
    %v156 = vld [vmem:[#allocation5 + $0xb0] sm:$0xff]
    %v157 = vld [vmem:[#allocation5 + $0xb8] sm:$0xff]
    %v158 = vld [vmem:[#allocation5 + $0xc0] sm:$0xff]
    %v159 = vld [vmem:[#allocation5 + $0xc8] sm:$0xff]
    %v160 = vld [vmem:[#allocation5 + $0xd0] sm:$0xff]
    %v161 = vld [vmem:[#allocation5 + $0xd8] sm:$0xff]
    %v162 = vld [vmem:[#allocation5 + $0xe0] sm:$0xff]
    %v163 = vld [vmem:[#allocation5 + $0xe8] sm:$0xff]
    %v164 = vld [vmem:[#allocation5 + $0xf0] sm:$0xff]
    %v165 = vld [vmem:[#allocation5 + $0xf8] sm:$0xff]
    %v166 = vld [vmem:[#allocation5 + $0x100] sm:$0xff]
    %v167 = vld [vmem:[#allocation5 + $0x108] sm:$0xff]
    %v168 = vld [vmem:[#allocation5 + $0x110] sm:$0xff]
    %v169 = vld [vmem:[#allocation5 + $0x118] sm:$0xff]
    %v170 = vld [vmem:[#allocation5 + $0x120] sm:$0xff]
    %v171 = vld [vmem:[#allocation5 + $0x128] sm:$0xff]
    %v172 = vld [vmem:[#allocation5 + $0x130] sm:$0xff]
    %v173 = vld [vmem:[#allocation5 + $0x138] sm:$0xff]
    %v174 = vld [vmem:[#allocation5 + $0x140] sm:$0xff]
    %v175 = vld [vmem:[#allocation5 + $0x148] sm:$0xff]
    %v176 = vld [vmem:[#allocation5 + $0x150] sm:$0xff]
    %v177 = vld [vmem:[#allocation5 + $0x158] sm:$0xff]
    %v178 = vld [vmem:[#allocation5 + $0x160] sm:$0xff]
    %v179 = vld [vmem:[#allocation5 + $0x168] sm:$0xff]
    %v180 = vld [vmem:[#allocation5 + $0x170] sm:$0xff]
    %v181 = vld [vmem:[#allocation5 + $0x178] sm:$0xff]
    %v182 = vld [vmem:[#allocation5 + $0x180] sm:$0xff]
    %v183 = vld [vmem:[#allocation5 + $0x188] sm:$0xff]
    %v184 = vld [vmem:[#allocation5 + $0x190] sm:$0xff]
    %v185 = vld [vmem:[#allocation5 + $0x198] sm:$0xff]
    %v186 = vld [vmem:[#allocation5 + $0x1a0] sm:$0xff]
    %v187 = vld [vmem:[#allocation5 + $0x1a8] sm:$0xff]
    %v188 = vld [vmem:[#allocation5 + $0x1b0] sm:$0xff]
    %v189 = vld [vmem:[#allocation5 + $0x1b8] sm:$0xff]
    %v190 = vld [vmem:[#allocation5 + $0x1c0] sm:$0xff]
    %v191 = vld [vmem:[#allocation5 + $0x1c8] sm:$0xff]
    %v192 = vld [vmem:[#allocation5 + $0x1d0] sm:$0xff]
    %v193 = vld [vmem:[#allocation5 + $0x1d8] sm:$0xff]
    %v194 = vld [vmem:[#allocation5 + $0x1e0] sm:$0xff]
    %v195 = vld [vmem:[#allocation5 + $0x1e8] sm:$0xff]
    %v196 = vld [vmem:[#allocation5 + $0x1f0] sm:$0xff]
    %v197 = vld [vmem:[#allocation5 + $0x1f8] sm:$0xff]
    %v198 = vld [vmem:[#allocation5 + $0x200] sm:$0xff]
    %v199 = vld [vmem:[#allocation5 + $0x208] sm:$0xff]
    %v200 = vld [vmem:[#allocation5 + $0x210] sm:$0xff]
    %v201 = vld [vmem:[#allocation5 + $0x218] sm:$0xff]
    %v202 = vld [vmem:[#allocation5 + $0x220] sm:$0xff]
    %v203 = vld [vmem:[#allocation5 + $0x228] sm:$0xff]
    %v204 = vld [vmem:[#allocation5 + $0x230] sm:$0xff]
    %v205 = vld [vmem:[#allocation5 + $0x238] sm:$0xff]
    %v206 = vld [vmem:[#allocation5 + $0x240] sm:$0xff]
    %v207 = vld [vmem:[#allocation5 + $0x248] sm:$0xff]
    %v208 = vld [vmem:[#allocation5 + $0x250] sm:$0xff]
    %v209 = vld [vmem:[#allocation5 + $0x258] sm:$0xff]
    %v210 = vld [vmem:[#allocation5 + $0x260] sm:$0xff]
    %v211 = vld [vmem:[#allocation5 + $0x268] sm:$0xff]
    %v212 = vld [vmem:[#allocation5 + $0x270] sm:$0xff]
    %v213 = vld [vmem:[#allocation5 + $0x278] sm:$0xff]
    %v214 = vld [vmem:[#allocation5 + $0x280] sm:$0xff]
    %v215 = vld [vmem:[#allocation5 + $0x288] sm:$0xff]
    %v216 = vld [vmem:[#allocation5 + $0x290] sm:$0xff]
    %v217 = vld [vmem:[#allocation5 + $0x298] sm:$0xff]
    %v218 = vld [vmem:[#allocation5 + $0x2a0] sm:$0xff]
    %v219 = vld [vmem:[#allocation5 + $0x2a8] sm:$0xff]
    %v220 = vld [vmem:[#allocation5 + $0x2b0] sm:$0xff]
    %v221 = vld [vmem:[#allocation5 + $0x2b8] sm:$0xff]
    %v222 = vld [vmem:[#allocation5 + $0x2c0] sm:$0xff]
    %v223 = vld [vmem:[#allocation5 + $0x2c8] sm:$0xff]
    %v224 = vld [vmem:[#allocation5 + $0x2d0] sm:$0xff]
    %v225 = vld [vmem:[#allocation5 + $0x2d8] sm:$0xff]
    %v226 = vld [vmem:[#allocation5 + $0x2e0] sm:$0xff]
    %v227 = vld [vmem:[#allocation5 + $0x2e8] sm:$0xff]
    %v228 = vld [vmem:[#allocation5 + $0x2f0] sm:$0xff]
    %v229 = vld [vmem:[#allocation5 + $0x2f8] sm:$0xff]
    %v230 = vld [vmem:[#allocation5 + $0x300] sm:$0xff]
    %v231 = vld [vmem:[#allocation5 + $0x308] sm:$0xff]
    %v232 = vld [vmem:[#allocation5 + $0x310] sm:$0xff]
    %v233 = vld [vmem:[#allocation5 + $0x318] sm:$0xff]
    %v234 = vld [vmem:[#allocation5 + $0x320] sm:$0xff]
    %v235 = vld [vmem:[#allocation5 + $0x328] sm:$0xff]
    %v236 = vld [vmem:[#allocation5 + $0x330] sm:$0xff]
    %v237 = vld [vmem:[#allocation5 + $0x338] sm:$0xff]
    %v238 = vld [vmem:[#allocation5 + $0x340] sm:$0xff]
    %v239 = vld [vmem:[#allocation5 + $0x348] sm:$0xff]
    %v240 = vld [vmem:[#allocation5 + $0x350] sm:$0xff]
    %v241 = vld [vmem:[#allocation5 + $0x358] sm:$0xff]
    %v242 = vld [vmem:[#allocation5 + $0x360] sm:$0xff]
    %v243 = vld [vmem:[#allocation5 + $0x368] sm:$0xff]
    %v244 = vld [vmem:[#allocation5 + $0x370] sm:$0xff]
    %v245 = vld [vmem:[#allocation5 + $0x378] sm:$0xff]
    %v246 = vld [vmem:[#allocation5 + $0x380] sm:$0xff]
    %v247 = vld [vmem:[#allocation5 + $0x388] sm:$0xff]
    %v248 = vld [vmem:[#allocation5 + $0x390] sm:$0xff]
    %v249 = vld [vmem:[#allocation5 + $0x398] sm:$0xff]
    %v250 = vld [vmem:[#allocation5 + $0x3a0] sm:$0xff]
    %v251 = vld [vmem:[#allocation5 + $0x3a8] sm:$0xff]
    %v252 = vld [vmem:[#allocation5 + $0x3b0] sm:$0xff]
    %v253 = vld [vmem:[#allocation5 + $0x3b8] sm:$0xff]
    %v254 = vld [vmem:[#allocation5 + $0x3c0] sm:$0xff]
    %v255 = vld [vmem:[#allocation5 + $0x3c8] sm:$0xff]
    %v256 = vld [vmem:[#allocation5 + $0x3d0] sm:$0xff]
    %v257 = vld [vmem:[#allocation5 + $0x3d8] sm:$0xff]
    %v258 = vld [vmem:[#allocation5 + $0x3e0] sm:$0xff]
    %v259 = vld [vmem:[#allocation5 + $0x3e8] sm:$0xff]
    %v260 = vld [vmem:[#allocation5 + $0x3f0] sm:$0xff]
    %v261 = vld [vmem:[#allocation5 + $0x3f8] sm:$0xff]
    %v262 = vld [vmem:[#allocation5 + $0x400] sm:$0xff]
    %v263 = vld [vmem:[#allocation5 + $0x408] sm:$0xff]
    %v264 = vld [vmem:[#allocation5 + $0x410] sm:$0xff]
    %v265 = vld [vmem:[#allocation5 + $0x418] sm:$0xff]
    %v266 = vld [vmem:[#allocation5 + $0x420] sm:$0xff]
    %v267 = vld [vmem:[#allocation5 + $0x428] sm:$0xff]
    %v268 = vld [vmem:[#allocation5 + $0x430] sm:$0xff]
    %v269 = vld [vmem:[#allocation5 + $0x438] sm:$0xff]
    %v270 = vld [vmem:[#allocation5 + $0x440] sm:$0xff]
    %v271 = vld [vmem:[#allocation5 + $0x448] sm:$0xff]
    %v272 = vld [vmem:[#allocation5 + $0x450] sm:$0xff]
    %v273 = vld [vmem:[#allocation5 + $0x458] sm:$0xff]
    %v274 = vld [vmem:[#allocation5 + $0x460] sm:$0xff]
    %v275 = vld [vmem:[#allocation5 + $0x468] sm:$0xff]
    %v276 = vld [vmem:[#allocation5 + $0x470] sm:$0xff]
    %v277 = vld [vmem:[#allocation5 + $0x478] sm:$0xff]
    %v278 = vld [vmem:[#allocation5 + $0x480] sm:$0xff]
    %v279 = vld [vmem:[#allocation5 + $0x488] sm:$0xff]
    %v280 = vld [vmem:[#allocation5 + $0x490] sm:$0xff]
    %v281 = vld [vmem:[#allocation5 + $0x498] sm:$0xff]
    %v282 = vld [vmem:[#allocation5 + $0x4a0] sm:$0xff]
    %v283 = vld [vmem:[#allocation5 + $0x4a8] sm:$0xff]
    %v284 = vld [vmem:[#allocation5 + $0x4b0] sm:$0xff]
    %v285 = vld [vmem:[#allocation5 + $0x4b8] sm:$0xff]
    %v286 = vld [vmem:[#allocation5 + $0x4c0] sm:$0xff]
    %v287 = vld [vmem:[#allocation5 + $0x4c8] sm:$0xff]
    %v288 = vld [vmem:[#allocation5 + $0x4d0] sm:$0xff]
    %v289 = vld [vmem:[#allocation5 + $0x4d8] sm:$0xff]
    %v290 = vld [vmem:[#allocation5 + $0x4e0] sm:$0xff]
    %v291 = vld [vmem:[#allocation5 + $0x4e8] sm:$0xff]
    %v292 = vld [vmem:[#allocation5 + $0x4f0] sm:$0xff]
    %v293 = vld [vmem:[#allocation5 + $0x4f8] sm:$0xff]
    %v294 = vld [vmem:[#allocation5 + $0x500] sm:$0xff]
    %v295 = vld [vmem:[#allocation5 + $0x508] sm:$0xff]
    %v296 = vld [vmem:[#allocation5 + $0x510] sm:$0xff]
    %v297 = vld [vmem:[#allocation5 + $0x518] sm:$0xff]
    %v298 = vld [vmem:[#allocation5 + $0x520] sm:$0xff]
    %v299 = vld [vmem:[#allocation5 + $0x528] sm:$0xff]
    %v300 = vld [vmem:[#allocation5 + $0x530] sm:$0xff]
    %v301 = vld [vmem:[#allocation5 + $0x538] sm:$0xff]
    %v302 = vld [vmem:[#allocation5 + $0x540] sm:$0xff]
    %v303 = vld [vmem:[#allocation5 + $0x548] sm:$0xff]
    %v304 = vld [vmem:[#allocation5 + $0x550] sm:$0xff]
    %v305 = vld [vmem:[#allocation5 + $0x558] sm:$0xff]
    %v306 = vld [vmem:[#allocation5 + $0x560] sm:$0xff]
    %v307 = vld [vmem:[#allocation5 + $0x568] sm:$0xff]
    %v308 = vld [vmem:[#allocation5 + $0x570] sm:$0xff]
    %v309 = vld [vmem:[#allocation5 + $0x578] sm:$0xff]
    %v310 = vld [vmem:[#allocation5 + $0x580] sm:$0xff]
    %v311 = vld [vmem:[#allocation5 + $0x588] sm:$0xff]
    %v312 = vld [vmem:[#allocation5 + $0x590] sm:$0xff]
    %v313 = vld [vmem:[#allocation5 + $0x598] sm:$0xff]
    %v314 = vld [vmem:[#allocation5 + $0x5a0] sm:$0xff]
    %v315 = vld [vmem:[#allocation5 + $0x5a8] sm:$0xff]
    %v316 = vld [vmem:[#allocation5 + $0x5b0] sm:$0xff]
    %v317 = vld [vmem:[#allocation5 + $0x5b8] sm:$0xff]
    %v318 = vld [vmem:[#allocation5 + $0x5c0] sm:$0xff]
    %v319 = vld [vmem:[#allocation5 + $0x5c8] sm:$0xff]
    %v320 = vld [vmem:[#allocation5 + $0x5d0] sm:$0xff]
    %v321 = vld [vmem:[#allocation5 + $0x5d8] sm:$0xff]
    %v322 = vld [vmem:[#allocation5 + $0x5e0] sm:$0xff]
    %v323 = vld [vmem:[#allocation5 + $0x5e8] sm:$0xff]
    %v324 = vld [vmem:[#allocation5 + $0x5f0] sm:$0xff]
    %v325 = vld [vmem:[#allocation5 + $0x5f8] sm:$0xff]
    %v326 = vld [vmem:[#allocation5 + $0x600] sm:$0xff]
    %v327 = vld [vmem:[#allocation5 + $0x608] sm:$0xff]
    %v328 = vld [vmem:[#allocation5 + $0x610] sm:$0xff]
    %v329 = vld [vmem:[#allocation5 + $0x618] sm:$0xff]
    %v330 = vld [vmem:[#allocation5 + $0x620] sm:$0xff]
    %v331 = vld [vmem:[#allocation5 + $0x628] sm:$0xff]
    %v332 = vld [vmem:[#allocation5 + $0x630] sm:$0xff]
    %v333 = vld [vmem:[#allocation5 + $0x638] sm:$0xff]
    %v334 = vld [vmem:[#allocation5 + $0x640] sm:$0xff]
    %v335 = vld [vmem:[#allocation5 + $0x648] sm:$0xff]
    %v336 = vld [vmem:[#allocation5 + $0x650] sm:$0xff]
    %v337 = vld [vmem:[#allocation5 + $0x658] sm:$0xff]
    %v338 = vld [vmem:[#allocation5 + $0x660] sm:$0xff]
    %v339 = vld [vmem:[#allocation5 + $0x668] sm:$0xff]
    %v340 = vld [vmem:[#allocation5 + $0x670] sm:$0xff]
    %v341 = vld [vmem:[#allocation5 + $0x678] sm:$0xff]
    %v342 = vld [vmem:[#allocation5 + $0x680] sm:$0xff]
    %v343 = vld [vmem:[#allocation5 + $0x688] sm:$0xff]
    %v344 = vld [vmem:[#allocation5 + $0x690] sm:$0xff]
    %v345 = vld [vmem:[#allocation5 + $0x698] sm:$0xff]
    %v346 = vld [vmem:[#allocation5 + $0x6a0] sm:$0xff]
    %v347 = vld [vmem:[#allocation5 + $0x6a8] sm:$0xff]
    %v348 = vld [vmem:[#allocation5 + $0x6b0] sm:$0xff]
    %v349 = vld [vmem:[#allocation5 + $0x6b8] sm:$0xff]
    %v350 = vld [vmem:[#allocation5 + $0x6c0] sm:$0xff]
    %v351 = vld [vmem:[#allocation5 + $0x6c8] sm:$0xff]
    %v352 = vld [vmem:[#allocation5 + $0x6d0] sm:$0xff]
    %v353 = vld [vmem:[#allocation5 + $0x6d8] sm:$0xff]
    %v354 = vld [vmem:[#allocation5 + $0x6e0] sm:$0xff]
    %v355 = vld [vmem:[#allocation5 + $0x6e8] sm:$0xff]
    %v356 = vld [vmem:[#allocation5 + $0x6f0] sm:$0xff]
    %v357 = vld [vmem:[#allocation5 + $0x6f8] sm:$0xff]
    %v358 = vld [vmem:[#allocation5 + $0x700] sm:$0xff]
    %v359 = vld [vmem:[#allocation5 + $0x708] sm:$0xff]
    %v360 = vld [vmem:[#allocation5 + $0x710] sm:$0xff]
    %v361 = vld [vmem:[#allocation5 + $0x718] sm:$0xff]
    %v362 = vld [vmem:[#allocation5 + $0x720] sm:$0xff]
    %v363 = vld [vmem:[#allocation5 + $0x728] sm:$0xff]
    %v364 = vld [vmem:[#allocation5 + $0x730] sm:$0xff]
    %v365 = vld [vmem:[#allocation5 + $0x738] sm:$0xff]
    %v366 = vld [vmem:[#allocation5 + $0x740] sm:$0xff]
    %v367 = vld [vmem:[#allocation5 + $0x748] sm:$0xff]
    %v368 = vld [vmem:[#allocation5 + $0x750] sm:$0xff]
    %v369 = vld [vmem:[#allocation5 + $0x758] sm:$0xff]
    %v370 = vld [vmem:[#allocation5 + $0x760] sm:$0xff]
    %v371 = vld [vmem:[#allocation5 + $0x768] sm:$0xff]
    %v372 = vld [vmem:[#allocation5 + $0x770] sm:$0xff]
    %v373 = vld [vmem:[#allocation5 + $0x778] sm:$0xff]
    %v374 = vld [vmem:[#allocation5 + $0x780] sm:$0xff]
    %v375 = vld [vmem:[#allocation5 + $0x788] sm:$0xff]
    %v376 = vld [vmem:[#allocation5 + $0x790] sm:$0xff]
    %v377 = vld [vmem:[#allocation5 + $0x798] sm:$0xff]
    %v378 = vld [vmem:[#allocation5 + $0x7a0] sm:$0xff]
    %v379 = vld [vmem:[#allocation5 + $0x7a8] sm:$0xff]
    %v380 = vld [vmem:[#allocation5 + $0x7b0] sm:$0xff]
    %v381 = vld [vmem:[#allocation5 + $0x7b8] sm:$0xff]
    %v382 = vld [vmem:[#allocation5 + $0x7c0] sm:$0xff]
    %v383 = vld [vmem:[#allocation5 + $0x7c8] sm:$0xff]
    %v384 = vld [vmem:[#allocation5 + $0x7d0] sm:$0xff]
    %v385 = vld [vmem:[#allocation5 + $0x7d8] sm:$0xff]
    %v386 = vld [vmem:[#allocation5 + $0x7e0] sm:$0xff]
    %v387 = vld [vmem:[#allocation5 + $0x7e8] sm:$0xff]
    %v388 = vld [vmem:[#allocation5 + $0x7f0] sm:$0xff]
    %v389 = vld [vmem:[#allocation5 + $0x7f8] sm:$0xff]
    %v390 = vld [vmem:[#allocation5 + $0x800] sm:$0xff]
    %v391 = vld [vmem:[#allocation5 + $0x808] sm:$0xff]
    %v392 = vld [vmem:[#allocation5 + $0x810] sm:$0xff]
    %v393 = vld [vmem:[#allocation5 + $0x818] sm:$0xff]
    %v394 = vld [vmem:[#allocation5 + $0x820] sm:$0xff]
    %v395 = vld [vmem:[#allocation5 + $0x828] sm:$0xff]
    %v396 = vld [vmem:[#allocation5 + $0x830] sm:$0xff]
    %v397 = vld [vmem:[#allocation5 + $0x838] sm:$0xff]
    %v398 = vld [vmem:[#allocation5 + $0x840] sm:$0xff]
    %v399 = vld [vmem:[#allocation5 + $0x848] sm:$0xff]
    %v400 = vld [vmem:[#allocation5 + $0x850] sm:$0xff]
    %v401 = vld [vmem:[#allocation5 + $0x858] sm:$0xff]
    %v402 = vld [vmem:[#allocation5 + $0x860] sm:$0xff]
    %v403 = vld [vmem:[#allocation5 + $0x868] sm:$0xff]
    %v404 = vld [vmem:[#allocation5 + $0x870] sm:$0xff]
    %v405 = vld [vmem:[#allocation5 + $0x878] sm:$0xff]
    %v406 = vld [vmem:[#allocation5 + $0x880] sm:$0xff]
    %v407 = vld [vmem:[#allocation5 + $0x888] sm:$0xff]
    %v408 = vld [vmem:[#allocation5 + $0x890] sm:$0xff]
    %v409 = vld [vmem:[#allocation5 + $0x898] sm:$0xff]
    %v410 = vld [vmem:[#allocation5 + $0x8a0] sm:$0xff]
    %v411 = vld [vmem:[#allocation5 + $0x8a8] sm:$0xff]
    %v412 = vld [vmem:[#allocation5 + $0x8b0] sm:$0xff]
    %v413 = vld [vmem:[#allocation5 + $0x8b8] sm:$0xff]
    %v414 = vld [vmem:[#allocation5 + $0x8c0] sm:$0xff]
    %v415 = vld [vmem:[#allocation5 + $0x8c8] sm:$0xff]
    %v416 = vld [vmem:[#allocation5 + $0x8d0] sm:$0xff]
    %v417 = vld [vmem:[#allocation5 + $0x8d8] sm:$0xff]
    %v418 = vld [vmem:[#allocation5 + $0x8e0] sm:$0xff]
    %v419 = vld [vmem:[#allocation5 + $0x8e8] sm:$0xff]
    %v420 = vld [vmem:[#allocation5 + $0x8f0] sm:$0xff]
    %v421 = vld [vmem:[#allocation5 + $0x8f8] sm:$0xff]
    %v422 = vld [vmem:[#allocation5 + $0x900] sm:$0xff]
    %v423 = vld [vmem:[#allocation5 + $0x908] sm:$0xff]
    %v424 = vld [vmem:[#allocation5 + $0x910] sm:$0xff]
    %v425 = vld [vmem:[#allocation5 + $0x918] sm:$0xff]
    %v426 = vld [vmem:[#allocation5 + $0x920] sm:$0xff]
    %v427 = vld [vmem:[#allocation5 + $0x928] sm:$0xff]
    %v428 = vld [vmem:[#allocation5 + $0x930] sm:$0xff]
    %v429 = vld [vmem:[#allocation5 + $0x938] sm:$0xff]
    %v430 = vld [vmem:[#allocation5 + $0x940] sm:$0xff]
    %v431 = vld [vmem:[#allocation5 + $0x948] sm:$0xff]
    %v432 = vld [vmem:[#allocation5 + $0x950] sm:$0xff]
    %v433 = vld [vmem:[#allocation5 + $0x958] sm:$0xff]
    %v434 = vld [vmem:[#allocation5 + $0x960] sm:$0xff]
    %v435 = vld [vmem:[#allocation5 + $0x968] sm:$0xff]
    %v436 = vld [vmem:[#allocation5 + $0x970] sm:$0xff]
    %v437 = vld [vmem:[#allocation5 + $0x978] sm:$0xff]
    %v438 = vld [vmem:[#allocation5 + $0x980] sm:$0xff]
    %v439 = vld [vmem:[#allocation5 + $0x988] sm:$0xff]
    %v440 = vld [vmem:[#allocation5 + $0x990] sm:$0xff]
    %v441 = vld [vmem:[#allocation5 + $0x998] sm:$0xff]
    %v442 = vld [vmem:[#allocation5 + $0x9a0] sm:$0xff]
    %v443 = vld [vmem:[#allocation5 + $0x9a8] sm:$0xff]
    %v444 = vld [vmem:[#allocation5 + $0x9b0] sm:$0xff]
    %v445 = vld [vmem:[#allocation5 + $0x9b8] sm:$0xff]
    %v446 = vld [vmem:[#allocation5 + $0x9c0] sm:$0xff]
    %v447 = vld [vmem:[#allocation5 + $0x9c8] sm:$0xff]
    %v448 = vld [vmem:[#allocation5 + $0x9d0] sm:$0xff]
    %v449 = vld [vmem:[#allocation5 + $0x9d8] sm:$0xff]
    %v450 = vld [vmem:[#allocation5 + $0x9e0] sm:$0xff]
    %v451 = vld [vmem:[#allocation5 + $0x9e8] sm:$0xff]
    %v452 = vld [vmem:[#allocation5 + $0x9f0] sm:$0xff]
    %v453 = vld [vmem:[#allocation5 + $0x9f8] sm:$0xff]
    %v454 = vld [vmem:[#allocation5 + $0xa00] sm:$0xff]
    %v455 = vld [vmem:[#allocation5 + $0xa08] sm:$0xff]
    %v456 = vld [vmem:[#allocation5 + $0xa10] sm:$0xff]
    %v457 = vld [vmem:[#allocation5 + $0xa18] sm:$0xff]
    %v458 = vld [vmem:[#allocation5 + $0xa20] sm:$0xff]
    %v459 = vld [vmem:[#allocation5 + $0xa28] sm:$0xff]
    %v460 = vld [vmem:[#allocation5 + $0xa30] sm:$0xff]
    %v461 = vld [vmem:[#allocation5 + $0xa38] sm:$0xff]
    %v462 = vld [vmem:[#allocation5 + $0xa40] sm:$0xff]
    %v463 = vld [vmem:[#allocation5 + $0xa48] sm:$0xff]
    %v464 = vld [vmem:[#allocation5 + $0xa50] sm:$0xff]
    %v465 = vld [vmem:[#allocation5 + $0xa58] sm:$0xff]
    %v466 = vld [vmem:[#allocation5 + $0xa60] sm:$0xff]
    %v467 = vld [vmem:[#allocation5 + $0xa68] sm:$0xff]
    %v468 = vld [vmem:[#allocation5 + $0xa70] sm:$0xff]
    %v469 = vld [vmem:[#allocation5 + $0xa78] sm:$0xff]
    %v470 = vld [vmem:[#allocation5 + $0xa80] sm:$0xff]
    %v471 = vld [vmem:[#allocation5 + $0xa88] sm:$0xff]
    %v472 = vld [vmem:[#allocation5 + $0xa90] sm:$0xff]
    %v473 = vld [vmem:[#allocation5 + $0xa98] sm:$0xff]
    %v474 = vld [vmem:[#allocation5 + $0xaa0] sm:$0xff]
    %v475 = vld [vmem:[#allocation5 + $0xaa8] sm:$0xff]
    %v476 = vld [vmem:[#allocation5 + $0xab0] sm:$0xff]
    %v477 = vld [vmem:[#allocation5 + $0xab8] sm:$0xff]
    %v478 = vld [vmem:[#allocation5 + $0xac0] sm:$0xff]
    %v479 = vld [vmem:[#allocation5 + $0xac8] sm:$0xff]
    %v480 = vld [vmem:[#allocation5 + $0xad0] sm:$0xff]
    %v481 = vld [vmem:[#allocation5 + $0xad8] sm:$0xff]
    %v482 = vld [vmem:[#allocation5 + $0xae0] sm:$0xff]
    %v483 = vld [vmem:[#allocation5 + $0xae8] sm:$0xff]
    %v484 = vld [vmem:[#allocation5 + $0xaf0] sm:$0xff]
    %v485 = vld [vmem:[#allocation5 + $0xaf8] sm:$0xff]
    %v486 = vld [vmem:[#allocation5 + $0xb00] sm:$0xff]
    %v487 = vld [vmem:[#allocation5 + $0xb08] sm:$0xff]
    %v488 = vld [vmem:[#allocation5 + $0xb10] sm:$0xff]
    %v489 = vld [vmem:[#allocation5 + $0xb18] sm:$0xff]
    %v490 = vld [vmem:[#allocation5 + $0xb20] sm:$0xff]
    %v491 = vld [vmem:[#allocation5 + $0xb28] sm:$0xff]
    %v492 = vld [vmem:[#allocation5 + $0xb30] sm:$0xff]
    %v493 = vld [vmem:[#allocation5 + $0xb38] sm:$0xff]
    %v494 = vld [vmem:[#allocation5 + $0xb40] sm:$0xff]
    %v495 = vld [vmem:[#allocation5 + $0xb48] sm:$0xff]
    %v496 = vld [vmem:[#allocation5 + $0xb50] sm:$0xff]
    %v497 = vld [vmem:[#allocation5 + $0xb58] sm:$0xff]
    %v498 = vld [vmem:[#allocation5 + $0xb60] sm:$0xff]
    %v499 = vld [vmem:[#allocation5 + $0xb68] sm:$0xff]
    %v500 = vld [vmem:[#allocation5 + $0xb70] sm:$0xff]
    %v501 = vld [vmem:[#allocation5 + $0xb78] sm:$0xff]
    %v502 = vld [vmem:[#allocation5 + $0xb80] sm:$0xff]
    %v503 = vld [vmem:[#allocation5 + $0xb88] sm:$0xff]
    %v504 = vld [vmem:[#allocation5 + $0xb90] sm:$0xff]
    %v505 = vld [vmem:[#allocation5 + $0xb98] sm:$0xff]
    %v506 = vld [vmem:[#allocation5 + $0xba0] sm:$0xff]
    %v507 = vld [vmem:[#allocation5 + $0xba8] sm:$0xff]
    %v508 = vld [vmem:[#allocation5 + $0xbb0] sm:$0xff]
    %v509 = vld [vmem:[#allocation5 + $0xbb8] sm:$0xff]
    %v510 = vld [vmem:[#allocation5 + $0xbc0] sm:$0xff]
    %v511 = vld [vmem:[#allocation5 + $0xbc8] sm:$0xff]
    %v512 = vld [vmem:[#allocation5 + $0xbd0] sm:$0xff]
    %v513 = vld [vmem:[#allocation5 + $0xbd8] sm:$0xff]
    %v514 = vld [vmem:[#allocation5 + $0xbe0] sm:$0xff]
    %v515 = vld [vmem:[#allocation5 + $0xbe8] sm:$0xff]
    %v516 = vld [vmem:[#allocation5 + $0xbf0] sm:$0xff]
    %v517 = vld [vmem:[#allocation5 + $0xbf8] sm:$0xff]
    %v518 = vld [vmem:[#allocation5 + $0xc00] sm:$0xff]
    %v519 = vld [vmem:[#allocation5 + $0xc08] sm:$0xff]
    %v520 = vld [vmem:[#allocation5 + $0xc10] sm:$0xff]
    %v521 = vld [vmem:[#allocation5 + $0xc18] sm:$0xff]
    %v522 = vld [vmem:[#allocation5 + $0xc20] sm:$0xff]
    %v523 = vld [vmem:[#allocation5 + $0xc28] sm:$0xff]
    %v524 = vld [vmem:[#allocation5 + $0xc30] sm:$0xff]
    %v525 = vld [vmem:[#allocation5 + $0xc38] sm:$0xff]
    %v526 = vld [vmem:[#allocation5 + $0xc40] sm:$0xff]
    %v527 = vld [vmem:[#allocation5 + $0xc48] sm:$0xff]
    %v528 = vld [vmem:[#allocation5 + $0xc50] sm:$0xff]
    %v529 = vld [vmem:[#allocation5 + $0xc58] sm:$0xff]
    %v530 = vld [vmem:[#allocation5 + $0xc60] sm:$0xff]
    %v531 = vld [vmem:[#allocation5 + $0xc68] sm:$0xff]
    %v532 = vld [vmem:[#allocation5 + $0xc70] sm:$0xff]
    %v533 = vld [vmem:[#allocation5 + $0xc78] sm:$0xff]
    %v534 = vld [vmem:[#allocation5 + $0xc80] sm:$0xff]
    %v535 = vld [vmem:[#allocation5 + $0xc88] sm:$0xff]
    %v536 = vld [vmem:[#allocation5 + $0xc90] sm:$0xff]
    %v537 = vld [vmem:[#allocation5 + $0xc98] sm:$0xff]
    %v538 = vld [vmem:[#allocation5 + $0xca0] sm:$0xff]
    %v539 = vld [vmem:[#allocation5 + $0xca8] sm:$0xff]
    %v540 = vld [vmem:[#allocation5 + $0xcb0] sm:$0xff]
    %v541 = vld [vmem:[#allocation5 + $0xcb8] sm:$0xff]
    %v542 = vld [vmem:[#allocation5 + $0xcc0] sm:$0xff]
    %v543 = vld [vmem:[#allocation5 + $0xcc8] sm:$0xff]
    %v544 = vld [vmem:[#allocation5 + $0xcd0] sm:$0xff]
    %v545 = vld [vmem:[#allocation5 + $0xcd8] sm:$0xff]
    %v546 = vld [vmem:[#allocation5 + $0xce0] sm:$0xff]
    %v547 = vld [vmem:[#allocation5 + $0xce8] sm:$0xff]
    %v548 = vld [vmem:[#allocation5 + $0xcf0] sm:$0xff]
    %v549 = vld [vmem:[#allocation5 + $0xcf8] sm:$0xff]
    %v550 = vld [vmem:[#allocation5 + $0xd00] sm:$0xff]
    %v551 = vld [vmem:[#allocation5 + $0xd08] sm:$0xff]
    %v552 = vld [vmem:[#allocation5 + $0xd10] sm:$0xff]
    %v553 = vld [vmem:[#allocation5 + $0xd18] sm:$0xff]
    %v554 = vld [vmem:[#allocation5 + $0xd20] sm:$0xff]
    %v555 = vld [vmem:[#allocation5 + $0xd28] sm:$0xff]
    %v556 = vld [vmem:[#allocation5 + $0xd30] sm:$0xff]
    %v557 = vld [vmem:[#allocation5 + $0xd38] sm:$0xff]
    %v558 = vld [vmem:[#allocation5 + $0xd40] sm:$0xff]
    %v559 = vld [vmem:[#allocation5 + $0xd48] sm:$0xff]
    %v560 = vld [vmem:[#allocation5 + $0xd50] sm:$0xff]
    %v561 = vld [vmem:[#allocation5 + $0xd58] sm:$0xff]
    %v562 = vld [vmem:[#allocation5 + $0xd60] sm:$0xff]
    %v563 = vld [vmem:[#allocation5 + $0xd68] sm:$0xff]
    %v564 = vld [vmem:[#allocation5 + $0xd70] sm:$0xff]
    %v565 = vld [vmem:[#allocation5 + $0xd78] sm:$0xff]
    %v566 = vld [vmem:[#allocation5 + $0xd80] sm:$0xff]
    %v567 = vld [vmem:[#allocation5 + $0xd88] sm:$0xff]
    %v568 = vld [vmem:[#allocation5 + $0xd90] sm:$0xff]
    %v569 = vld [vmem:[#allocation5 + $0xd98] sm:$0xff]
    %v570 = vld [vmem:[#allocation5 + $0xda0] sm:$0xff]
    %v571 = vld [vmem:[#allocation5 + $0xda8] sm:$0xff]
    %v572 = vld [vmem:[#allocation5 + $0xdb0] sm:$0xff]
    %v573 = vld [vmem:[#allocation5 + $0xdb8] sm:$0xff]
    %v574 = vld [vmem:[#allocation5 + $0xdc0] sm:$0xff]
    %v575 = vld [vmem:[#allocation5 + $0xdc8] sm:$0xff]
    %v576 = vld [vmem:[#allocation5 + $0xdd0] sm:$0xff]
    %v577 = vld [vmem:[#allocation5 + $0xdd8] sm:$0xff]
    %v578 = vld [vmem:[#allocation5 + $0xde0] sm:$0xff]
    %v579 = vld [vmem:[#allocation5 + $0xde8] sm:$0xff]
    %v580 = vld [vmem:[#allocation5 + $0xdf0] sm:$0xff]
    %v581 = vld [vmem:[#allocation5 + $0xdf8] sm:$0xff]
    %v582 = vld [vmem:[#allocation5 + $0xe00] sm:$0xff]
    %v583 = vld [vmem:[#allocation5 + $0xe08] sm:$0xff]
    %v584 = vld [vmem:[#allocation5 + $0xe10] sm:$0xff]
    %v585 = vld [vmem:[#allocation5 + $0xe18] sm:$0xff]
    %v586 = vld [vmem:[#allocation5 + $0xe20] sm:$0xff]
    %v587 = vld [vmem:[#allocation5 + $0xe28] sm:$0xff]
    %v588 = vld [vmem:[#allocation5 + $0xe30] sm:$0xff]
    %v589 = vld [vmem:[#allocation5 + $0xe38] sm:$0xff]
    %v590 = vld [vmem:[#allocation5 + $0xe40] sm:$0xff]
    %v591 = vld [vmem:[#allocation5 + $0xe48] sm:$0xff]
    %v592 = vld [vmem:[#allocation5 + $0xe50] sm:$0xff]
    %v593 = vld [vmem:[#allocation5 + $0xe58] sm:$0xff]
    %v594 = vld [vmem:[#allocation5 + $0xe60] sm:$0xff]
    %v595 = vld [vmem:[#allocation5 + $0xe68] sm:$0xff]
    %v596 = vld [vmem:[#allocation5 + $0xe70] sm:$0xff]
    %v597 = vld [vmem:[#allocation5 + $0xe78] sm:$0xff]
    %v598 = vld [vmem:[#allocation5 + $0xe80] sm:$0xff]
    %v599 = vld [vmem:[#allocation5 + $0xe88] sm:$0xff]
    %v600 = vld [vmem:[#allocation5 + $0xe90] sm:$0xff]
    %v601 = vld [vmem:[#allocation5 + $0xe98] sm:$0xff]
    %v602 = vld [vmem:[#allocation5 + $0xea0] sm:$0xff]
    %v603 = vld [vmem:[#allocation5 + $0xea8] sm:$0xff]
    %v604 = vld [vmem:[#allocation5 + $0xeb0] sm:$0xff]
    %v605 = vld [vmem:[#allocation5 + $0xeb8] sm:$0xff]
    %v606 = vld [vmem:[#allocation5 + $0xec0] sm:$0xff]
    %v607 = vld [vmem:[#allocation5 + $0xec8] sm:$0xff]
    %v608 = vld [vmem:[#allocation5 + $0xed0] sm:$0xff]
    %v609 = vld [vmem:[#allocation5 + $0xed8] sm:$0xff]
    %v610 = vld [vmem:[#allocation5 + $0xee0] sm:$0xff]
    %v611 = vld [vmem:[#allocation5 + $0xee8] sm:$0xff]
    %v612 = vld [vmem:[#allocation5 + $0xef0] sm:$0xff]
    %v613 = vld [vmem:[#allocation5 + $0xef8] sm:$0xff]
    %v614 = vld [vmem:[#allocation5 + $0xf00] sm:$0xff]
    %v615 = vld [vmem:[#allocation5 + $0xf08] sm:$0xff]
    %v616 = vld [vmem:[#allocation5 + $0xf10] sm:$0xff]
    %v617 = vld [vmem:[#allocation5 + $0xf18] sm:$0xff]
    %v618 = vld [vmem:[#allocation5 + $0xf20] sm:$0xff]
    %v619 = vld [vmem:[#allocation5 + $0xf28] sm:$0xff]
    %v620 = vld [vmem:[#allocation5 + $0xf30] sm:$0xff]
    %v621 = vld [vmem:[#allocation5 + $0xf38] sm:$0xff]
    %v622 = vld [vmem:[#allocation5 + $0xf40] sm:$0xff]
    %v623 = vld [vmem:[#allocation5 + $0xf48] sm:$0xff]
    %v624 = vld [vmem:[#allocation5 + $0xf50] sm:$0xff]
    %v625 = vld [vmem:[#allocation5 + $0xf58] sm:$0xff]
    %v626 = vld [vmem:[#allocation5 + $0xf60] sm:$0xff]
    %v627 = vld [vmem:[#allocation5 + $0xf68] sm:$0xff]
    %v628 = vld [vmem:[#allocation5 + $0xf70] sm:$0xff]
    %v629 = vld [vmem:[#allocation5 + $0xf78] sm:$0xff]
    %v630 = vld [vmem:[#allocation5 + $0xf80] sm:$0xff]
    %v631 = vld [vmem:[#allocation5 + $0xf88] sm:$0xff]
    %v632 = vld [vmem:[#allocation5 + $0xf90] sm:$0xff]
    %v633 = vld [vmem:[#allocation5 + $0xf98] sm:$0xff]
    %v634 = vld [vmem:[#allocation5 + $0xfa0] sm:$0xff]
    %v635 = vld [vmem:[#allocation5 + $0xfa8] sm:$0xff]
    %v636 = vld [vmem:[#allocation5 + $0xfb0] sm:$0xff]
    %v637 = vld [vmem:[#allocation5 + $0xfb8] sm:$0xff]
    %v638 = vld [vmem:[#allocation5 + $0xfc0] sm:$0xff]
    %v639 = vld [vmem:[#allocation5 + $0xfc8] sm:$0xff]
    %v640 = vld [vmem:[#allocation5 + $0xfd0] sm:$0xff]
    %v641 = vld [vmem:[#allocation5 + $0xfd8] sm:$0xff]
    %v642 = vld [vmem:[#allocation5 + $0xfe0] sm:$0xff]
    %v643 = vld [vmem:[#allocation5 + $0xfe8] sm:$0xff]
    %v644 = vld [vmem:[#allocation5 + $0xff0] sm:$0xff]
    %v645 = vld [vmem:[#allocation5 + $0xff8] sm:$0xff]
    %v646 = vld [vmem:[#allocation5 + $0x1000] sm:$0xff]
    %v647 = vld [vmem:[#allocation5 + $0x1008] sm:$0xff]
    %v648 = vld [vmem:[#allocation5 + $0x1010] sm:$0xff]
    %v649 = vld [vmem:[#allocation5 + $0x1018] sm:$0xff]
    %v650 = vld [vmem:[#allocation5 + $0x1020] sm:$0xff]
    %v651 = vld [vmem:[#allocation5 + $0x1028] sm:$0xff]
    %v652 = vld [vmem:[#allocation5 + $0x1030] sm:$0xff]
    %v653 = vld [vmem:[#allocation5 + $0x1038] sm:$0xff]
    %v654 = vld [vmem:[#allocation5 + $0x1040] sm:$0xff]
    %v655 = vld [vmem:[#allocation5 + $0x1048] sm:$0xff]
    %v656 = vld [vmem:[#allocation5 + $0x1050] sm:$0xff]
    %v657 = vld [vmem:[#allocation5 + $0x1058] sm:$0xff]
    %v658 = vld [vmem:[#allocation5 + $0x1060] sm:$0xff]
    %v659 = vld [vmem:[#allocation5 + $0x1068] sm:$0xff]
    %v660 = vld [vmem:[#allocation5 + $0x1070] sm:$0xff]
    %v661 = vld [vmem:[#allocation5 + $0x1078] sm:$0xff]
    %v662 = vld [vmem:[#allocation5 + $0x1080] sm:$0xff]
    %v663 = vld [vmem:[#allocation5 + $0x1088] sm:$0xff]
    %v664 = vld [vmem:[#allocation5 + $0x1090] sm:$0xff]
    %v665 = vld [vmem:[#allocation5 + $0x1098] sm:$0xff]
    %v666 = vld [vmem:[#allocation5 + $0x10a0] sm:$0xff]
    %v667 = vld [vmem:[#allocation5 + $0x10a8] sm:$0xff]
    %v668 = vld [vmem:[#allocation5 + $0x10b0] sm:$0xff]
    %v669 = vld [vmem:[#allocation5 + $0x10b8] sm:$0xff]
    %v670 = vld [vmem:[#allocation5 + $0x10c0] sm:$0xff]
    %v671 = vld [vmem:[#allocation5 + $0x10c8] sm:$0xff]
    %v672 = vld [vmem:[#allocation5 + $0x10d0] sm:$0xff]
    %v673 = vld [vmem:[#allocation5 + $0x10d8] sm:$0xff]
    %v674 = vld [vmem:[#allocation5 + $0x10e0] sm:$0xff]
    %v675 = vld [vmem:[#allocation5 + $0x10e8] sm:$0xff]
    %v676 = vld [vmem:[#allocation5 + $0x10f0] sm:$0xff]
    %v677 = vld [vmem:[#allocation5 + $0x10f8] sm:$0xff]
    %v678 = vld [vmem:[#allocation5 + $0x1100] sm:$0xff]
    %v679 = vld [vmem:[#allocation5 + $0x1108] sm:$0xff]
    %v680 = vld [vmem:[#allocation5 + $0x1110] sm:$0xff]
    %v681 = vld [vmem:[#allocation5 + $0x1118] sm:$0xff]
    %v682 = vld [vmem:[#allocation5 + $0x1120] sm:$0xff]
    %v683 = vld [vmem:[#allocation5 + $0x1128] sm:$0xff]
    %v684 = vld [vmem:[#allocation5 + $0x1130] sm:$0xff]
    %v685 = vld [vmem:[#allocation5 + $0x1138] sm:$0xff]
    %v686 = vld [vmem:[#allocation5 + $0x1140] sm:$0xff]
    %v687 = vld [vmem:[#allocation5 + $0x1148] sm:$0xff]
    %v688 = vld [vmem:[#allocation5 + $0x1150] sm:$0xff]
    %v689 = vld [vmem:[#allocation5 + $0x1158] sm:$0xff]
    %v690 = vld [vmem:[#allocation5 + $0x1160] sm:$0xff]
    %v691 = vld [vmem:[#allocation5 + $0x1168] sm:$0xff]
    %v692 = vld [vmem:[#allocation5 + $0x1170] sm:$0xff]
    %v693 = vld [vmem:[#allocation5 + $0x1178] sm:$0xff]
    %v694 = vld [vmem:[#allocation5 + $0x1180] sm:$0xff]
    %v695 = vld [vmem:[#allocation5 + $0x1188] sm:$0xff]
    %v696 = vld [vmem:[#allocation5 + $0x1190] sm:$0xff]
    %v697 = vld [vmem:[#allocation5 + $0x1198] sm:$0xff]
    %v698 = vld [vmem:[#allocation5 + $0x11a0] sm:$0xff]
    %v699 = vld [vmem:[#allocation5 + $0x11a8] sm:$0xff]
    %v700 = vld [vmem:[#allocation5 + $0x11b0] sm:$0xff]
    %v701 = vld [vmem:[#allocation5 + $0x11b8] sm:$0xff]
    %v702 = vld [vmem:[#allocation5 + $0x11c0] sm:$0xff]
    %v703 = vld [vmem:[#allocation5 + $0x11c8] sm:$0xff]
    %v704 = vld [vmem:[#allocation5 + $0x11d0] sm:$0xff]
    %v705 = vld [vmem:[#allocation5 + $0x11d8] sm:$0xff]
    %v706 = vld [vmem:[#allocation5 + $0x11e0] sm:$0xff]
    %v707 = vld [vmem:[#allocation5 + $0x11e8] sm:$0xff]
    %v708 = vld [vmem:[#allocation5 + $0x11f0] sm:$0xff]
    %v709 = vld [vmem:[#allocation5 + $0x11f8] sm:$0xff]
    %v710 = vld [vmem:[#allocation5 + $0x1200] sm:$0xff]
    %v711 = vld [vmem:[#allocation5 + $0x1208] sm:$0xff]
    %v1290 = vunpack.c.l.b16 %v134
    %v1291 = vunpack.c.h.b16 %v134
    %v1292 = vunpack.c.l.b16 %v135
    %v1293 = vunpack.c.h.b16 %v135
    %v1294 = vunpack.c.l.b16 %v136
    %v1295 = vunpack.c.h.b16 %v136
    %v1296 = vunpack.c.l.b16 %v137
    %v1297 = vunpack.c.h.b16 %v137
    %v1298 = vunpack.c.l.b16 %v138
    %v1299 = vunpack.c.h.b16 %v138
    %v1300 = vunpack.c.l.b16 %v139
    %v1301 = vunpack.c.h.b16 %v139
    %v1302 = vunpack.c.l.b16 %v140
    %v1303 = vunpack.c.h.b16 %v140
    %v1304 = vunpack.c.l.b16 %v141
    %v1305 = vunpack.c.h.b16 %v141
    %v1306 = vunpack.c.l.b16 %v142
    %v1307 = vunpack.c.h.b16 %v142
    %v1308 = vunpack.c.l.b16 %v143
    %v1309 = vunpack.c.h.b16 %v143
    %v1310 = vunpack.c.l.b16 %v144
    %v1311 = vunpack.c.h.b16 %v144
    %v1312 = vunpack.c.l.b16 %v145
    %v1313 = vunpack.c.h.b16 %v145
    %v1314 = vunpack.c.l.b16 %v146
    %v1315 = vunpack.c.h.b16 %v146
    %v1316 = vunpack.c.l.b16 %v147
    %v1317 = vunpack.c.h.b16 %v147
    %v1318 = vunpack.c.l.b16 %v148
    %v1319 = vunpack.c.h.b16 %v148
    %v1320 = vunpack.c.l.b16 %v149
    %v1321 = vunpack.c.h.b16 %v149
    %v1322 = vunpack.c.l.b16 %v150
    %v1323 = vunpack.c.h.b16 %v150
    %v1324 = vunpack.c.l.b16 %v151
    %v1325 = vunpack.c.h.b16 %v151
    %v1326 = vunpack.c.l.b16 %v152
    %v1327 = vunpack.c.h.b16 %v152
    %v1328 = vunpack.c.l.b16 %v153
    %v1329 = vunpack.c.h.b16 %v153
    %v1330 = vunpack.c.l.b16 %v154
    %v1331 = vunpack.c.h.b16 %v154
    %v1332 = vunpack.c.l.b16 %v155
    %v1333 = vunpack.c.h.b16 %v155
    %v1334 = vunpack.c.l.b16 %v156
    %v1335 = vunpack.c.h.b16 %v156
    %v1336 = vunpack.c.l.b16 %v157
    %v1337 = vunpack.c.h.b16 %v157
    %v1338 = vunpack.c.l.b16 %v158
    %v1339 = vunpack.c.h.b16 %v158
    %v1340 = vunpack.c.l.b16 %v159
    %v1341 = vunpack.c.h.b16 %v159
    %v1342 = vunpack.c.l.b16 %v160
    %v1343 = vunpack.c.h.b16 %v160
    %v1344 = vunpack.c.l.b16 %v161
    %v1345 = vunpack.c.h.b16 %v161
    %v1346 = vunpack.c.l.b16 %v162
    %v1347 = vunpack.c.h.b16 %v162
    %v1348 = vunpack.c.l.b16 %v163
    %v1349 = vunpack.c.h.b16 %v163
    %v1350 = vunpack.c.l.b16 %v164
    %v1351 = vunpack.c.h.b16 %v164
    %v1352 = vunpack.c.l.b16 %v165
    %v1353 = vunpack.c.h.b16 %v165
    %v1354 = vunpack.c.l.b16 %v166
    %v1355 = vunpack.c.h.b16 %v166
    %v1356 = vunpack.c.l.b16 %v167
    %v1357 = vunpack.c.h.b16 %v167
    %v1358 = vunpack.c.l.b16 %v168
    %v1359 = vunpack.c.h.b16 %v168
    %v1360 = vunpack.c.l.b16 %v169
    %v1361 = vunpack.c.h.b16 %v169
    %v1362 = vunpack.c.l.b16 %v170
    %v1363 = vunpack.c.h.b16 %v170
    %v1364 = vunpack.c.l.b16 %v171
    %v1365 = vunpack.c.h.b16 %v171
    %v1366 = vunpack.c.l.b16 %v172
    %v1367 = vunpack.c.h.b16 %v172
    %v1368 = vunpack.c.l.b16 %v173
    %v1369 = vunpack.c.h.b16 %v173
    %v1370 = vunpack.c.l.b16 %v174
    %v1371 = vunpack.c.h.b16 %v174
    %v1372 = vunpack.c.l.b16 %v175
    %v1373 = vunpack.c.h.b16 %v175
    %v1374 = vunpack.c.l.b16 %v176
    %v1375 = vunpack.c.h.b16 %v176
    %v1376 = vunpack.c.l.b16 %v177
    %v1377 = vunpack.c.h.b16 %v177
    %v1378 = vunpack.c.l.b16 %v178
    %v1379 = vunpack.c.h.b16 %v178
    %v1380 = vunpack.c.l.b16 %v179
    %v1381 = vunpack.c.h.b16 %v179
    %v1382 = vunpack.c.l.b16 %v180
    %v1383 = vunpack.c.h.b16 %v180
    %v1384 = vunpack.c.l.b16 %v181
    %v1385 = vunpack.c.h.b16 %v181
    %v1386 = vunpack.c.l.b16 %v182
    %v1387 = vunpack.c.h.b16 %v182
    %v1388 = vunpack.c.l.b16 %v183
    %v1389 = vunpack.c.h.b16 %v183
    %v1390 = vunpack.c.l.b16 %v184
    %v1391 = vunpack.c.h.b16 %v184
    %v1392 = vunpack.c.l.b16 %v185
    %v1393 = vunpack.c.h.b16 %v185
    %v1394 = vunpack.c.l.b16 %v186
    %v1395 = vunpack.c.h.b16 %v186
    %v1396 = vunpack.c.l.b16 %v187
    %v1397 = vunpack.c.h.b16 %v187
    %v1398 = vunpack.c.l.b16 %v188
    %v1399 = vunpack.c.h.b16 %v188
    %v1400 = vunpack.c.l.b16 %v189
    %v1401 = vunpack.c.h.b16 %v189
    %v1402 = vunpack.c.l.b16 %v190
    %v1403 = vunpack.c.h.b16 %v190
    %v1404 = vunpack.c.l.b16 %v191
    %v1405 = vunpack.c.h.b16 %v191
    %v1406 = vunpack.c.l.b16 %v192
    %v1407 = vunpack.c.h.b16 %v192
    %v1408 = vunpack.c.l.b16 %v193
    %v1409 = vunpack.c.h.b16 %v193
    %v1410 = vunpack.c.l.b16 %v194
    %v1411 = vunpack.c.h.b16 %v194
    %v1412 = vunpack.c.l.b16 %v195
    %v1413 = vunpack.c.h.b16 %v195
    %v1414 = vunpack.c.l.b16 %v196
    %v1415 = vunpack.c.h.b16 %v196
    %v1416 = vunpack.c.l.b16 %v197
    %v1417 = vunpack.c.h.b16 %v197
    %v1418 = vunpack.c.l.b16 %v198
    %v1419 = vunpack.c.h.b16 %v198
    %v1420 = vunpack.c.l.b16 %v199
    %v1421 = vunpack.c.h.b16 %v199
    %v1422 = vunpack.c.l.b16 %v200
    %v1423 = vunpack.c.h.b16 %v200
    %v1424 = vunpack.c.l.b16 %v201
    %v1425 = vunpack.c.h.b16 %v201
    %v1426 = vunpack.c.l.b16 %v202
    %v1427 = vunpack.c.h.b16 %v202
    %v1428 = vunpack.c.l.b16 %v203
    %v1429 = vunpack.c.h.b16 %v203
    %v1430 = vunpack.c.l.b16 %v204
    %v1431 = vunpack.c.h.b16 %v204
    %v1432 = vunpack.c.l.b16 %v205
    %v1433 = vunpack.c.h.b16 %v205
    %v1434 = vunpack.c.l.b16 %v206
    %v1435 = vunpack.c.h.b16 %v206
    %v1436 = vunpack.c.l.b16 %v207
    %v1437 = vunpack.c.h.b16 %v207
    %v1438 = vunpack.c.l.b16 %v208
    %v1439 = vunpack.c.h.b16 %v208
    %v1440 = vunpack.c.l.b16 %v209
    %v1441 = vunpack.c.h.b16 %v209
    %v1442 = vunpack.c.l.b16 %v210
    %v1443 = vunpack.c.h.b16 %v210
    %v1444 = vunpack.c.l.b16 %v211
    %v1445 = vunpack.c.h.b16 %v211
    %v1446 = vunpack.c.l.b16 %v212
    %v1447 = vunpack.c.h.b16 %v212
    %v1448 = vunpack.c.l.b16 %v213
    %v1449 = vunpack.c.h.b16 %v213
    %v1450 = vunpack.c.l.b16 %v214
    %v1451 = vunpack.c.h.b16 %v214
    %v1452 = vunpack.c.l.b16 %v215
    %v1453 = vunpack.c.h.b16 %v215
    %v1454 = vunpack.c.l.b16 %v216
    %v1455 = vunpack.c.h.b16 %v216
    %v1456 = vunpack.c.l.b16 %v217
    %v1457 = vunpack.c.h.b16 %v217
    %v1458 = vunpack.c.l.b16 %v218
    %v1459 = vunpack.c.h.b16 %v218
    %v1460 = vunpack.c.l.b16 %v219
    %v1461 = vunpack.c.h.b16 %v219
    %v1462 = vunpack.c.l.b16 %v220
    %v1463 = vunpack.c.h.b16 %v220
    %v1464 = vunpack.c.l.b16 %v221
    %v1465 = vunpack.c.h.b16 %v221
    %v1466 = vunpack.c.l.b16 %v222
    %v1467 = vunpack.c.h.b16 %v222
    %v1468 = vunpack.c.l.b16 %v223
    %v1469 = vunpack.c.h.b16 %v223
    %v1470 = vunpack.c.l.b16 %v224
    %v1471 = vunpack.c.h.b16 %v224
    %v1472 = vunpack.c.l.b16 %v225
    %v1473 = vunpack.c.h.b16 %v225
    %v1474 = vunpack.c.l.b16 %v226
    %v1475 = vunpack.c.h.b16 %v226
    %v1476 = vunpack.c.l.b16 %v227
    %v1477 = vunpack.c.h.b16 %v227
    %v1478 = vunpack.c.l.b16 %v228
    %v1479 = vunpack.c.h.b16 %v228
    %v1480 = vunpack.c.l.b16 %v229
    %v1481 = vunpack.c.h.b16 %v229
    %v1482 = vunpack.c.l.b16 %v230
    %v1483 = vunpack.c.h.b16 %v230
    %v1484 = vunpack.c.l.b16 %v231
    %v1485 = vunpack.c.h.b16 %v231
    %v1486 = vunpack.c.l.b16 %v232
    %v1487 = vunpack.c.h.b16 %v232
    %v1488 = vunpack.c.l.b16 %v233
    %v1489 = vunpack.c.h.b16 %v233
    %v1490 = vunpack.c.l.b16 %v234
    %v1491 = vunpack.c.h.b16 %v234
    %v1492 = vunpack.c.l.b16 %v235
    %v1493 = vunpack.c.h.b16 %v235
    %v1494 = vunpack.c.l.b16 %v236
    %v1495 = vunpack.c.h.b16 %v236
    %v1496 = vunpack.c.l.b16 %v237
    %v1497 = vunpack.c.h.b16 %v237
    %v1498 = vunpack.c.l.b16 %v238
    %v1499 = vunpack.c.h.b16 %v238
    %v1500 = vunpack.c.l.b16 %v239
    %v1501 = vunpack.c.h.b16 %v239
    %v1502 = vunpack.c.l.b16 %v240
    %v1503 = vunpack.c.h.b16 %v240
    %v1504 = vunpack.c.l.b16 %v241
    %v1505 = vunpack.c.h.b16 %v241
    %v1506 = vunpack.c.l.b16 %v242
    %v1507 = vunpack.c.h.b16 %v242
    %v1508 = vunpack.c.l.b16 %v243
    %v1509 = vunpack.c.h.b16 %v243
    %v1510 = vunpack.c.l.b16 %v244
    %v1511 = vunpack.c.h.b16 %v244
    %v1512 = vunpack.c.l.b16 %v245
    %v1513 = vunpack.c.h.b16 %v245
    %v1514 = vunpack.c.l.b16 %v246
    %v1515 = vunpack.c.h.b16 %v246
    %v1516 = vunpack.c.l.b16 %v247
    %v1517 = vunpack.c.h.b16 %v247
    %v1518 = vunpack.c.l.b16 %v248
    %v1519 = vunpack.c.h.b16 %v248
    %v1520 = vunpack.c.l.b16 %v249
    %v1521 = vunpack.c.h.b16 %v249
    %v1522 = vunpack.c.l.b16 %v250
    %v1523 = vunpack.c.h.b16 %v250
    %v1524 = vunpack.c.l.b16 %v251
    %v1525 = vunpack.c.h.b16 %v251
    %v1526 = vunpack.c.l.b16 %v252
    %v1527 = vunpack.c.h.b16 %v252
    %v1528 = vunpack.c.l.b16 %v253
    %v1529 = vunpack.c.h.b16 %v253
    %v1530 = vunpack.c.l.b16 %v254
    %v1531 = vunpack.c.h.b16 %v254
    %v1532 = vunpack.c.l.b16 %v255
    %v1533 = vunpack.c.h.b16 %v255
    %v1534 = vunpack.c.l.b16 %v256
    %v1535 = vunpack.c.h.b16 %v256
    %v1536 = vunpack.c.l.b16 %v257
    %v1537 = vunpack.c.h.b16 %v257
    %v1538 = vunpack.c.l.b16 %v258
    %v1539 = vunpack.c.h.b16 %v258
    %v1540 = vunpack.c.l.b16 %v259
    %v1541 = vunpack.c.h.b16 %v259
    %v1542 = vunpack.c.l.b16 %v260
    %v1543 = vunpack.c.h.b16 %v260
    %v1544 = vunpack.c.l.b16 %v261
    %v1545 = vunpack.c.h.b16 %v261
    %v1546 = vunpack.c.l.b16 %v262
    %v1547 = vunpack.c.h.b16 %v262
    %v1548 = vunpack.c.l.b16 %v263
    %v1549 = vunpack.c.h.b16 %v263
    %v1550 = vunpack.c.l.b16 %v264
    %v1551 = vunpack.c.h.b16 %v264
    %v1552 = vunpack.c.l.b16 %v265
    %v1553 = vunpack.c.h.b16 %v265
    %v1554 = vunpack.c.l.b16 %v266
    %v1555 = vunpack.c.h.b16 %v266
    %v1556 = vunpack.c.l.b16 %v267
    %v1557 = vunpack.c.h.b16 %v267
    %v1558 = vunpack.c.l.b16 %v268
    %v1559 = vunpack.c.h.b16 %v268
    %v1560 = vunpack.c.l.b16 %v269
    %v1561 = vunpack.c.h.b16 %v269
    %v1562 = vunpack.c.l.b16 %v270
    %v1563 = vunpack.c.h.b16 %v270
    %v1564 = vunpack.c.l.b16 %v271
    %v1565 = vunpack.c.h.b16 %v271
    %v1566 = vunpack.c.l.b16 %v272
    %v1567 = vunpack.c.h.b16 %v272
    %v1568 = vunpack.c.l.b16 %v273
    %v1569 = vunpack.c.h.b16 %v273
    %v1570 = vunpack.c.l.b16 %v274
    %v1571 = vunpack.c.h.b16 %v274
    %v1572 = vunpack.c.l.b16 %v275
    %v1573 = vunpack.c.h.b16 %v275
    %v1574 = vunpack.c.l.b16 %v276
    %v1575 = vunpack.c.h.b16 %v276
    %v1576 = vunpack.c.l.b16 %v277
    %v1577 = vunpack.c.h.b16 %v277
    %v1578 = vunpack.c.l.b16 %v278
    %v1579 = vunpack.c.h.b16 %v278
    %v1580 = vunpack.c.l.b16 %v279
    %v1581 = vunpack.c.h.b16 %v279
    %v1582 = vunpack.c.l.b16 %v280
    %v1583 = vunpack.c.h.b16 %v280
    %v1584 = vunpack.c.l.b16 %v281
    %v1585 = vunpack.c.h.b16 %v281
    %v1586 = vunpack.c.l.b16 %v282
    %v1587 = vunpack.c.h.b16 %v282
    %v1588 = vunpack.c.l.b16 %v283
    %v1589 = vunpack.c.h.b16 %v283
    %v1590 = vunpack.c.l.b16 %v284
    %v1591 = vunpack.c.h.b16 %v284
    %v1592 = vunpack.c.l.b16 %v285
    %v1593 = vunpack.c.h.b16 %v285
    %v1594 = vunpack.c.l.b16 %v286
    %v1595 = vunpack.c.h.b16 %v286
    %v1596 = vunpack.c.l.b16 %v287
    %v1597 = vunpack.c.h.b16 %v287
    %v1598 = vunpack.c.l.b16 %v288
    %v1599 = vunpack.c.h.b16 %v288
    %v1600 = vunpack.c.l.b16 %v289
    %v1601 = vunpack.c.h.b16 %v289
    %v1602 = vunpack.c.l.b16 %v290
    %v1603 = vunpack.c.h.b16 %v290
    %v1604 = vunpack.c.l.b16 %v291
    %v1605 = vunpack.c.h.b16 %v291
    %v1606 = vunpack.c.l.b16 %v292
    %v1607 = vunpack.c.h.b16 %v292
    %v1608 = vunpack.c.l.b16 %v293
    %v1609 = vunpack.c.h.b16 %v293
    %v1610 = vunpack.c.l.b16 %v294
    %v1611 = vunpack.c.h.b16 %v294
    %v1612 = vunpack.c.l.b16 %v295
    %v1613 = vunpack.c.h.b16 %v295
    %v1614 = vunpack.c.l.b16 %v296
    %v1615 = vunpack.c.h.b16 %v296
    %v1616 = vunpack.c.l.b16 %v297
    %v1617 = vunpack.c.h.b16 %v297
    %v1618 = vunpack.c.l.b16 %v298
    %v1619 = vunpack.c.h.b16 %v298
    %v1620 = vunpack.c.l.b16 %v299
    %v1621 = vunpack.c.h.b16 %v299
    %v1622 = vunpack.c.l.b16 %v300
    %v1623 = vunpack.c.h.b16 %v300
    %v1624 = vunpack.c.l.b16 %v301
    %v1625 = vunpack.c.h.b16 %v301
    %v1626 = vunpack.c.l.b16 %v302
    %v1627 = vunpack.c.h.b16 %v302
    %v1628 = vunpack.c.l.b16 %v303
    %v1629 = vunpack.c.h.b16 %v303
    %v1630 = vunpack.c.l.b16 %v304
    %v1631 = vunpack.c.h.b16 %v304
    %v1632 = vunpack.c.l.b16 %v305
    %v1633 = vunpack.c.h.b16 %v305
    %v1634 = vunpack.c.l.b16 %v306
    %v1635 = vunpack.c.h.b16 %v306
    %v1636 = vunpack.c.l.b16 %v307
    %v1637 = vunpack.c.h.b16 %v307
    %v1638 = vunpack.c.l.b16 %v308
    %v1639 = vunpack.c.h.b16 %v308
    %v1640 = vunpack.c.l.b16 %v309
    %v1641 = vunpack.c.h.b16 %v309
    %v1642 = vunpack.c.l.b16 %v310
    %v1643 = vunpack.c.h.b16 %v310
    %v1644 = vunpack.c.l.b16 %v311
    %v1645 = vunpack.c.h.b16 %v311
    %v1646 = vunpack.c.l.b16 %v312
    %v1647 = vunpack.c.h.b16 %v312
    %v1648 = vunpack.c.l.b16 %v313
    %v1649 = vunpack.c.h.b16 %v313
    %v1650 = vunpack.c.l.b16 %v314
    %v1651 = vunpack.c.h.b16 %v314
    %v1652 = vunpack.c.l.b16 %v315
    %v1653 = vunpack.c.h.b16 %v315
    %v1654 = vunpack.c.l.b16 %v316
    %v1655 = vunpack.c.h.b16 %v316
    %v1656 = vunpack.c.l.b16 %v317
    %v1657 = vunpack.c.h.b16 %v317
    %v1658 = vunpack.c.l.b16 %v318
    %v1659 = vunpack.c.h.b16 %v318
    %v1660 = vunpack.c.l.b16 %v319
    %v1661 = vunpack.c.h.b16 %v319
    %v1662 = vunpack.c.l.b16 %v320
    %v1663 = vunpack.c.h.b16 %v320
    %v1664 = vunpack.c.l.b16 %v321
    %v1665 = vunpack.c.h.b16 %v321
    %v1666 = vunpack.c.l.b16 %v322
    %v1667 = vunpack.c.h.b16 %v322
    %v1668 = vunpack.c.l.b16 %v323
    %v1669 = vunpack.c.h.b16 %v323
    %v1670 = vunpack.c.l.b16 %v324
    %v1671 = vunpack.c.h.b16 %v324
    %v1672 = vunpack.c.l.b16 %v325
    %v1673 = vunpack.c.h.b16 %v325
    %v1674 = vunpack.c.l.b16 %v326
    %v1675 = vunpack.c.h.b16 %v326
    %v1676 = vunpack.c.l.b16 %v327
    %v1677 = vunpack.c.h.b16 %v327
    %v1678 = vunpack.c.l.b16 %v328
    %v1679 = vunpack.c.h.b16 %v328
    %v1680 = vunpack.c.l.b16 %v329
    %v1681 = vunpack.c.h.b16 %v329
    %v1682 = vunpack.c.l.b16 %v330
    %v1683 = vunpack.c.h.b16 %v330
    %v1684 = vunpack.c.l.b16 %v331
    %v1685 = vunpack.c.h.b16 %v331
    %v1686 = vunpack.c.l.b16 %v332
    %v1687 = vunpack.c.h.b16 %v332
    %v1688 = vunpack.c.l.b16 %v333
    %v1689 = vunpack.c.h.b16 %v333
    %v1690 = vunpack.c.l.b16 %v334
    %v1691 = vunpack.c.h.b16 %v334
    %v1692 = vunpack.c.l.b16 %v335
    %v1693 = vunpack.c.h.b16 %v335
    %v1694 = vunpack.c.l.b16 %v336
    %v1695 = vunpack.c.h.b16 %v336
    %v1696 = vunpack.c.l.b16 %v337
    %v1697 = vunpack.c.h.b16 %v337
    %v1698 = vunpack.c.l.b16 %v338
    %v1699 = vunpack.c.h.b16 %v338
    %v1700 = vunpack.c.l.b16 %v339
    %v1701 = vunpack.c.h.b16 %v339
    %v1702 = vunpack.c.l.b16 %v340
    %v1703 = vunpack.c.h.b16 %v340
    %v1704 = vunpack.c.l.b16 %v341
    %v1705 = vunpack.c.h.b16 %v341
    %v1706 = vunpack.c.l.b16 %v342
    %v1707 = vunpack.c.h.b16 %v342
    %v1708 = vunpack.c.l.b16 %v343
    %v1709 = vunpack.c.h.b16 %v343
    %v1710 = vunpack.c.l.b16 %v344
    %v1711 = vunpack.c.h.b16 %v344
    %v1712 = vunpack.c.l.b16 %v345
    %v1713 = vunpack.c.h.b16 %v345
    %v1714 = vunpack.c.l.b16 %v346
    %v1715 = vunpack.c.h.b16 %v346
    %v1716 = vunpack.c.l.b16 %v347
    %v1717 = vunpack.c.h.b16 %v347
    %v1718 = vunpack.c.l.b16 %v348
    %v1719 = vunpack.c.h.b16 %v348
    %v1720 = vunpack.c.l.b16 %v349
    %v1721 = vunpack.c.h.b16 %v349
    %v1722 = vunpack.c.l.b16 %v350
    %v1723 = vunpack.c.h.b16 %v350
    %v1724 = vunpack.c.l.b16 %v351
    %v1725 = vunpack.c.h.b16 %v351
    %v1726 = vunpack.c.l.b16 %v352
    %v1727 = vunpack.c.h.b16 %v352
    %v1728 = vunpack.c.l.b16 %v353
    %v1729 = vunpack.c.h.b16 %v353
    %v1730 = vunpack.c.l.b16 %v354
    %v1731 = vunpack.c.h.b16 %v354
    %v1732 = vunpack.c.l.b16 %v355
    %v1733 = vunpack.c.h.b16 %v355
    %v1734 = vunpack.c.l.b16 %v356
    %v1735 = vunpack.c.h.b16 %v356
    %v1736 = vunpack.c.l.b16 %v357
    %v1737 = vunpack.c.h.b16 %v357
    %v1738 = vunpack.c.l.b16 %v358
    %v1739 = vunpack.c.h.b16 %v358
    %v1740 = vunpack.c.l.b16 %v359
    %v1741 = vunpack.c.h.b16 %v359
    %v1742 = vunpack.c.l.b16 %v360
    %v1743 = vunpack.c.h.b16 %v360
    %v1744 = vunpack.c.l.b16 %v361
    %v1745 = vunpack.c.h.b16 %v361
    %v1746 = vunpack.c.l.b16 %v362
    %v1747 = vunpack.c.h.b16 %v362
    %v1748 = vunpack.c.l.b16 %v363
    %v1749 = vunpack.c.h.b16 %v363
    %v1750 = vunpack.c.l.b16 %v364
    %v1751 = vunpack.c.h.b16 %v364
    %v1752 = vunpack.c.l.b16 %v365
    %v1753 = vunpack.c.h.b16 %v365
    %v1754 = vunpack.c.l.b16 %v366
    %v1755 = vunpack.c.h.b16 %v366
    %v1756 = vunpack.c.l.b16 %v367
    %v1757 = vunpack.c.h.b16 %v367
    %v1758 = vunpack.c.l.b16 %v368
    %v1759 = vunpack.c.h.b16 %v368
    %v1760 = vunpack.c.l.b16 %v369
    %v1761 = vunpack.c.h.b16 %v369
    %v1762 = vunpack.c.l.b16 %v370
    %v1763 = vunpack.c.h.b16 %v370
    %v1764 = vunpack.c.l.b16 %v371
    %v1765 = vunpack.c.h.b16 %v371
    %v1766 = vunpack.c.l.b16 %v372
    %v1767 = vunpack.c.h.b16 %v372
    %v1768 = vunpack.c.l.b16 %v373
    %v1769 = vunpack.c.h.b16 %v373
    %v1770 = vunpack.c.l.b16 %v374
    %v1771 = vunpack.c.h.b16 %v374
    %v1772 = vunpack.c.l.b16 %v375
    %v1773 = vunpack.c.h.b16 %v375
    %v1774 = vunpack.c.l.b16 %v376
    %v1775 = vunpack.c.h.b16 %v376
    %v1776 = vunpack.c.l.b16 %v377
    %v1777 = vunpack.c.h.b16 %v377
    %v1778 = vunpack.c.l.b16 %v378
    %v1779 = vunpack.c.h.b16 %v378
    %v1780 = vunpack.c.l.b16 %v379
    %v1781 = vunpack.c.h.b16 %v379
    %v1782 = vunpack.c.l.b16 %v380
    %v1783 = vunpack.c.h.b16 %v380
    %v1784 = vunpack.c.l.b16 %v381
    %v1785 = vunpack.c.h.b16 %v381
    %v1786 = vunpack.c.l.b16 %v382
    %v1787 = vunpack.c.h.b16 %v382
    %v1788 = vunpack.c.l.b16 %v383
    %v1789 = vunpack.c.h.b16 %v383
    %v1790 = vunpack.c.l.b16 %v384
    %v1791 = vunpack.c.h.b16 %v384
    %v1792 = vunpack.c.l.b16 %v385
    %v1793 = vunpack.c.h.b16 %v385
    %v1794 = vunpack.c.l.b16 %v386
    %v1795 = vunpack.c.h.b16 %v386
    %v1796 = vunpack.c.l.b16 %v387
    %v1797 = vunpack.c.h.b16 %v387
    %v1798 = vunpack.c.l.b16 %v388
    %v1799 = vunpack.c.h.b16 %v388
    %v1800 = vunpack.c.l.b16 %v389
    %v1801 = vunpack.c.h.b16 %v389
    %v1802 = vunpack.c.l.b16 %v390
    %v1803 = vunpack.c.h.b16 %v390
    %v1804 = vunpack.c.l.b16 %v391
    %v1805 = vunpack.c.h.b16 %v391
    %v1806 = vunpack.c.l.b16 %v392
    %v1807 = vunpack.c.h.b16 %v392
    %v1808 = vunpack.c.l.b16 %v393
    %v1809 = vunpack.c.h.b16 %v393
    %v1810 = vunpack.c.l.b16 %v394
    %v1811 = vunpack.c.h.b16 %v394
    %v1812 = vunpack.c.l.b16 %v395
    %v1813 = vunpack.c.h.b16 %v395
    %v1814 = vunpack.c.l.b16 %v396
    %v1815 = vunpack.c.h.b16 %v396
    %v1816 = vunpack.c.l.b16 %v397
    %v1817 = vunpack.c.h.b16 %v397
    %v1818 = vunpack.c.l.b16 %v398
    %v1819 = vunpack.c.h.b16 %v398
    %v1820 = vunpack.c.l.b16 %v399
    %v1821 = vunpack.c.h.b16 %v399
    %v1822 = vunpack.c.l.b16 %v400
    %v1823 = vunpack.c.h.b16 %v400
    %v1824 = vunpack.c.l.b16 %v401
    %v1825 = vunpack.c.h.b16 %v401
    %v1826 = vunpack.c.l.b16 %v402
    %v1827 = vunpack.c.h.b16 %v402
    %v1828 = vunpack.c.l.b16 %v403
    %v1829 = vunpack.c.h.b16 %v403
    %v1830 = vunpack.c.l.b16 %v404
    %v1831 = vunpack.c.h.b16 %v404
    %v1832 = vunpack.c.l.b16 %v405
    %v1833 = vunpack.c.h.b16 %v405
    %v1834 = vunpack.c.l.b16 %v406
    %v1835 = vunpack.c.h.b16 %v406
    %v1836 = vunpack.c.l.b16 %v407
    %v1837 = vunpack.c.h.b16 %v407
    %v1838 = vunpack.c.l.b16 %v408
    %v1839 = vunpack.c.h.b16 %v408
    %v1840 = vunpack.c.l.b16 %v409
    %v1841 = vunpack.c.h.b16 %v409
    %v1842 = vunpack.c.l.b16 %v410
    %v1843 = vunpack.c.h.b16 %v410
    %v1844 = vunpack.c.l.b16 %v411
    %v1845 = vunpack.c.h.b16 %v411
    %v1846 = vunpack.c.l.b16 %v412
    %v1847 = vunpack.c.h.b16 %v412
    %v1848 = vunpack.c.l.b16 %v413
    %v1849 = vunpack.c.h.b16 %v413
    %v1850 = vunpack.c.l.b16 %v414
    %v1851 = vunpack.c.h.b16 %v414
    %v1852 = vunpack.c.l.b16 %v415
    %v1853 = vunpack.c.h.b16 %v415
    %v1854 = vunpack.c.l.b16 %v416
    %v1855 = vunpack.c.h.b16 %v416
    %v1856 = vunpack.c.l.b16 %v417
    %v1857 = vunpack.c.h.b16 %v417
    %v1858 = vunpack.c.l.b16 %v418
    %v1859 = vunpack.c.h.b16 %v418
    %v1860 = vunpack.c.l.b16 %v419
    %v1861 = vunpack.c.h.b16 %v419
    %v1862 = vunpack.c.l.b16 %v420
    %v1863 = vunpack.c.h.b16 %v420
    %v1864 = vunpack.c.l.b16 %v421
    %v1865 = vunpack.c.h.b16 %v421
    %v1866 = vunpack.c.l.b16 %v422
    %v1867 = vunpack.c.h.b16 %v422
    %v1868 = vunpack.c.l.b16 %v423
    %v1869 = vunpack.c.h.b16 %v423
    %v1870 = vunpack.c.l.b16 %v424
    %v1871 = vunpack.c.h.b16 %v424
    %v1872 = vunpack.c.l.b16 %v425
    %v1873 = vunpack.c.h.b16 %v425
    %v1874 = vunpack.c.l.b16 %v426
    %v1875 = vunpack.c.h.b16 %v426
    %v1876 = vunpack.c.l.b16 %v427
    %v1877 = vunpack.c.h.b16 %v427
    %v1878 = vunpack.c.l.b16 %v428
    %v1879 = vunpack.c.h.b16 %v428
    %v1880 = vunpack.c.l.b16 %v429
    %v1881 = vunpack.c.h.b16 %v429
    %v1882 = vunpack.c.l.b16 %v430
    %v1883 = vunpack.c.h.b16 %v430
    %v1884 = vunpack.c.l.b16 %v431
    %v1885 = vunpack.c.h.b16 %v431
    %v1886 = vunpack.c.l.b16 %v432
    %v1887 = vunpack.c.h.b16 %v432
    %v1888 = vunpack.c.l.b16 %v433
    %v1889 = vunpack.c.h.b16 %v433
    %v1890 = vunpack.c.l.b16 %v434
    %v1891 = vunpack.c.h.b16 %v434
    %v1892 = vunpack.c.l.b16 %v435
    %v1893 = vunpack.c.h.b16 %v435
    %v1894 = vunpack.c.l.b16 %v436
    %v1895 = vunpack.c.h.b16 %v436
    %v1896 = vunpack.c.l.b16 %v437
    %v1897 = vunpack.c.h.b16 %v437
    %v1898 = vunpack.c.l.b16 %v438
    %v1899 = vunpack.c.h.b16 %v438
    %v1900 = vunpack.c.l.b16 %v439
    %v1901 = vunpack.c.h.b16 %v439
    %v1902 = vunpack.c.l.b16 %v440
    %v1903 = vunpack.c.h.b16 %v440
    %v1904 = vunpack.c.l.b16 %v441
    %v1905 = vunpack.c.h.b16 %v441
    %v1906 = vunpack.c.l.b16 %v442
    %v1907 = vunpack.c.h.b16 %v442
    %v1908 = vunpack.c.l.b16 %v443
    %v1909 = vunpack.c.h.b16 %v443
    %v1910 = vunpack.c.l.b16 %v444
    %v1911 = vunpack.c.h.b16 %v444
    %v1912 = vunpack.c.l.b16 %v445
    %v1913 = vunpack.c.h.b16 %v445
    %v1914 = vunpack.c.l.b16 %v446
    %v1915 = vunpack.c.h.b16 %v446
    %v1916 = vunpack.c.l.b16 %v447
    %v1917 = vunpack.c.h.b16 %v447
    %v1918 = vunpack.c.l.b16 %v448
    %v1919 = vunpack.c.h.b16 %v448
    %v1920 = vunpack.c.l.b16 %v449
    %v1921 = vunpack.c.h.b16 %v449
    %v1922 = vunpack.c.l.b16 %v450
    %v1923 = vunpack.c.h.b16 %v450
    %v1924 = vunpack.c.l.b16 %v451
    %v1925 = vunpack.c.h.b16 %v451
    %v1926 = vunpack.c.l.b16 %v452
    %v1927 = vunpack.c.h.b16 %v452
    %v1928 = vunpack.c.l.b16 %v453
    %v1929 = vunpack.c.h.b16 %v453
    %v1930 = vunpack.c.l.b16 %v454
    %v1931 = vunpack.c.h.b16 %v454
    %v1932 = vunpack.c.l.b16 %v455
    %v1933 = vunpack.c.h.b16 %v455
    %v1934 = vunpack.c.l.b16 %v456
    %v1935 = vunpack.c.h.b16 %v456
    %v1936 = vunpack.c.l.b16 %v457
    %v1937 = vunpack.c.h.b16 %v457
    %v1938 = vunpack.c.l.b16 %v458
    %v1939 = vunpack.c.h.b16 %v458
    %v1940 = vunpack.c.l.b16 %v459
    %v1941 = vunpack.c.h.b16 %v459
    %v1942 = vunpack.c.l.b16 %v460
    %v1943 = vunpack.c.h.b16 %v460
    %v1944 = vunpack.c.l.b16 %v461
    %v1945 = vunpack.c.h.b16 %v461
    %v1946 = vunpack.c.l.b16 %v462
    %v1947 = vunpack.c.h.b16 %v462
    %v1948 = vunpack.c.l.b16 %v463
    %v1949 = vunpack.c.h.b16 %v463
    %v1950 = vunpack.c.l.b16 %v464
    %v1951 = vunpack.c.h.b16 %v464
    %v1952 = vunpack.c.l.b16 %v465
    %v1953 = vunpack.c.h.b16 %v465
    %v1954 = vunpack.c.l.b16 %v466
    %v1955 = vunpack.c.h.b16 %v466
    %v1956 = vunpack.c.l.b16 %v467
    %v1957 = vunpack.c.h.b16 %v467
    %v1958 = vunpack.c.l.b16 %v468
    %v1959 = vunpack.c.h.b16 %v468
    %v1960 = vunpack.c.l.b16 %v469
    %v1961 = vunpack.c.h.b16 %v469
    %v1962 = vunpack.c.l.b16 %v470
    %v1963 = vunpack.c.h.b16 %v470
    %v1964 = vunpack.c.l.b16 %v471
    %v1965 = vunpack.c.h.b16 %v471
    %v1966 = vunpack.c.l.b16 %v472
    %v1967 = vunpack.c.h.b16 %v472
    %v1968 = vunpack.c.l.b16 %v473
    %v1969 = vunpack.c.h.b16 %v473
    %v1970 = vunpack.c.l.b16 %v474
    %v1971 = vunpack.c.h.b16 %v474
    %v1972 = vunpack.c.l.b16 %v475
    %v1973 = vunpack.c.h.b16 %v475
    %v1974 = vunpack.c.l.b16 %v476
    %v1975 = vunpack.c.h.b16 %v476
    %v1976 = vunpack.c.l.b16 %v477
    %v1977 = vunpack.c.h.b16 %v477
    %v1978 = vunpack.c.l.b16 %v478
    %v1979 = vunpack.c.h.b16 %v478
    %v1980 = vunpack.c.l.b16 %v479
    %v1981 = vunpack.c.h.b16 %v479
    %v1982 = vunpack.c.l.b16 %v480
    %v1983 = vunpack.c.h.b16 %v480
    %v1984 = vunpack.c.l.b16 %v481
    %v1985 = vunpack.c.h.b16 %v481
    %v1986 = vunpack.c.l.b16 %v482
    %v1987 = vunpack.c.h.b16 %v482
    %v1988 = vunpack.c.l.b16 %v483
    %v1989 = vunpack.c.h.b16 %v483
    %v1990 = vunpack.c.l.b16 %v484
    %v1991 = vunpack.c.h.b16 %v484
    %v1992 = vunpack.c.l.b16 %v485
    %v1993 = vunpack.c.h.b16 %v485
    %v1994 = vunpack.c.l.b16 %v486
    %v1995 = vunpack.c.h.b16 %v486
    %v1996 = vunpack.c.l.b16 %v487
    %v1997 = vunpack.c.h.b16 %v487
    %v1998 = vunpack.c.l.b16 %v488
    %v1999 = vunpack.c.h.b16 %v488
    %v2000 = vunpack.c.l.b16 %v489
    %v2001 = vunpack.c.h.b16 %v489
    %v2002 = vunpack.c.l.b16 %v490
    %v2003 = vunpack.c.h.b16 %v490
    %v2004 = vunpack.c.l.b16 %v491
    %v2005 = vunpack.c.h.b16 %v491
    %v2006 = vunpack.c.l.b16 %v492
    %v2007 = vunpack.c.h.b16 %v492
    %v2008 = vunpack.c.l.b16 %v493
    %v2009 = vunpack.c.h.b16 %v493
    %v2010 = vunpack.c.l.b16 %v494
    %v2011 = vunpack.c.h.b16 %v494
    %v2012 = vunpack.c.l.b16 %v495
    %v2013 = vunpack.c.h.b16 %v495
    %v2014 = vunpack.c.l.b16 %v496
    %v2015 = vunpack.c.h.b16 %v496
    %v2016 = vunpack.c.l.b16 %v497
    %v2017 = vunpack.c.h.b16 %v497
    %v2018 = vunpack.c.l.b16 %v498
    %v2019 = vunpack.c.h.b16 %v498
    %v2020 = vunpack.c.l.b16 %v499
    %v2021 = vunpack.c.h.b16 %v499
    %v2022 = vunpack.c.l.b16 %v500
    %v2023 = vunpack.c.h.b16 %v500
    %v2024 = vunpack.c.l.b16 %v501
    %v2025 = vunpack.c.h.b16 %v501
    %v2026 = vunpack.c.l.b16 %v502
    %v2027 = vunpack.c.h.b16 %v502
    %v2028 = vunpack.c.l.b16 %v503
    %v2029 = vunpack.c.h.b16 %v503
    %v2030 = vunpack.c.l.b16 %v504
    %v2031 = vunpack.c.h.b16 %v504
    %v2032 = vunpack.c.l.b16 %v505
    %v2033 = vunpack.c.h.b16 %v505
    %v2034 = vunpack.c.l.b16 %v506
    %v2035 = vunpack.c.h.b16 %v506
    %v2036 = vunpack.c.l.b16 %v507
    %v2037 = vunpack.c.h.b16 %v507
    %v2038 = vunpack.c.l.b16 %v508
    %v2039 = vunpack.c.h.b16 %v508
    %v2040 = vunpack.c.l.b16 %v509
    %v2041 = vunpack.c.h.b16 %v509
    %v2042 = vunpack.c.l.b16 %v510
    %v2043 = vunpack.c.h.b16 %v510
    %v2044 = vunpack.c.l.b16 %v511
    %v2045 = vunpack.c.h.b16 %v511
    %v2046 = vunpack.c.l.b16 %v512
    %v2047 = vunpack.c.h.b16 %v512
    %v2048 = vunpack.c.l.b16 %v513
    %v2049 = vunpack.c.h.b16 %v513
    %v2050 = vunpack.c.l.b16 %v514
    %v2051 = vunpack.c.h.b16 %v514
    %v2052 = vunpack.c.l.b16 %v515
    %v2053 = vunpack.c.h.b16 %v515
    %v2054 = vunpack.c.l.b16 %v516
    %v2055 = vunpack.c.h.b16 %v516
    %v2056 = vunpack.c.l.b16 %v517
    %v2057 = vunpack.c.h.b16 %v517
    %v2058 = vunpack.c.l.b16 %v518
    %v2059 = vunpack.c.h.b16 %v518
    %v2060 = vunpack.c.l.b16 %v519
    %v2061 = vunpack.c.h.b16 %v519
    %v2062 = vunpack.c.l.b16 %v520
    %v2063 = vunpack.c.h.b16 %v520
    %v2064 = vunpack.c.l.b16 %v521
    %v2065 = vunpack.c.h.b16 %v521
    %v2066 = vunpack.c.l.b16 %v522
    %v2067 = vunpack.c.h.b16 %v522
    %v2068 = vunpack.c.l.b16 %v523
    %v2069 = vunpack.c.h.b16 %v523
    %v2070 = vunpack.c.l.b16 %v524
    %v2071 = vunpack.c.h.b16 %v524
    %v2072 = vunpack.c.l.b16 %v525
    %v2073 = vunpack.c.h.b16 %v525
    %v2074 = vunpack.c.l.b16 %v526
    %v2075 = vunpack.c.h.b16 %v526
    %v2076 = vunpack.c.l.b16 %v527
    %v2077 = vunpack.c.h.b16 %v527
    %v2078 = vunpack.c.l.b16 %v528
    %v2079 = vunpack.c.h.b16 %v528
    %v2080 = vunpack.c.l.b16 %v529
    %v2081 = vunpack.c.h.b16 %v529
    %v2082 = vunpack.c.l.b16 %v530
    %v2083 = vunpack.c.h.b16 %v530
    %v2084 = vunpack.c.l.b16 %v531
    %v2085 = vunpack.c.h.b16 %v531
    %v2086 = vunpack.c.l.b16 %v532
    %v2087 = vunpack.c.h.b16 %v532
    %v2088 = vunpack.c.l.b16 %v533
    %v2089 = vunpack.c.h.b16 %v533
    %v2090 = vunpack.c.l.b16 %v534
    %v2091 = vunpack.c.h.b16 %v534
    %v2092 = vunpack.c.l.b16 %v535
    %v2093 = vunpack.c.h.b16 %v535
    %v2094 = vunpack.c.l.b16 %v536
    %v2095 = vunpack.c.h.b16 %v536
    %v2096 = vunpack.c.l.b16 %v537
    %v2097 = vunpack.c.h.b16 %v537
    %v2098 = vunpack.c.l.b16 %v538
    %v2099 = vunpack.c.h.b16 %v538
    %v2100 = vunpack.c.l.b16 %v539
    %v2101 = vunpack.c.h.b16 %v539
    %v2102 = vunpack.c.l.b16 %v540
    %v2103 = vunpack.c.h.b16 %v540
    %v2104 = vunpack.c.l.b16 %v541
    %v2105 = vunpack.c.h.b16 %v541
    %v2106 = vunpack.c.l.b16 %v542
    %v2107 = vunpack.c.h.b16 %v542
    %v2108 = vunpack.c.l.b16 %v543
    %v2109 = vunpack.c.h.b16 %v543
    %v2110 = vunpack.c.l.b16 %v544
    %v2111 = vunpack.c.h.b16 %v544
    %v2112 = vunpack.c.l.b16 %v545
    %v2113 = vunpack.c.h.b16 %v545
    %v2114 = vunpack.c.l.b16 %v546
    %v2115 = vunpack.c.h.b16 %v546
    %v2116 = vunpack.c.l.b16 %v547
    %v2117 = vunpack.c.h.b16 %v547
    %v2118 = vunpack.c.l.b16 %v548
    %v2119 = vunpack.c.h.b16 %v548
    %v2120 = vunpack.c.l.b16 %v549
    %v2121 = vunpack.c.h.b16 %v549
    %v2122 = vunpack.c.l.b16 %v550
    %v2123 = vunpack.c.h.b16 %v550
    %v2124 = vunpack.c.l.b16 %v551
    %v2125 = vunpack.c.h.b16 %v551
    %v2126 = vunpack.c.l.b16 %v552
    %v2127 = vunpack.c.h.b16 %v552
    %v2128 = vunpack.c.l.b16 %v553
    %v2129 = vunpack.c.h.b16 %v553
    %v2130 = vunpack.c.l.b16 %v554
    %v2131 = vunpack.c.h.b16 %v554
    %v2132 = vunpack.c.l.b16 %v555
    %v2133 = vunpack.c.h.b16 %v555
    %v2134 = vunpack.c.l.b16 %v556
    %v2135 = vunpack.c.h.b16 %v556
    %v2136 = vunpack.c.l.b16 %v557
    %v2137 = vunpack.c.h.b16 %v557
    %v2138 = vunpack.c.l.b16 %v558
    %v2139 = vunpack.c.h.b16 %v558
    %v2140 = vunpack.c.l.b16 %v559
    %v2141 = vunpack.c.h.b16 %v559
    %v2142 = vunpack.c.l.b16 %v560
    %v2143 = vunpack.c.h.b16 %v560
    %v2144 = vunpack.c.l.b16 %v561
    %v2145 = vunpack.c.h.b16 %v561
    %v2146 = vunpack.c.l.b16 %v562
    %v2147 = vunpack.c.h.b16 %v562
    %v2148 = vunpack.c.l.b16 %v563
    %v2149 = vunpack.c.h.b16 %v563
    %v2150 = vunpack.c.l.b16 %v564
    %v2151 = vunpack.c.h.b16 %v564
    %v2152 = vunpack.c.l.b16 %v565
    %v2153 = vunpack.c.h.b16 %v565
    %v2154 = vunpack.c.l.b16 %v566
    %v2155 = vunpack.c.h.b16 %v566
    %v2156 = vunpack.c.l.b16 %v567
    %v2157 = vunpack.c.h.b16 %v567
    %v2158 = vunpack.c.l.b16 %v568
    %v2159 = vunpack.c.h.b16 %v568
    %v2160 = vunpack.c.l.b16 %v569
    %v2161 = vunpack.c.h.b16 %v569
    %v2162 = vunpack.c.l.b16 %v570
    %v2163 = vunpack.c.h.b16 %v570
    %v2164 = vunpack.c.l.b16 %v571
    %v2165 = vunpack.c.h.b16 %v571
    %v2166 = vunpack.c.l.b16 %v572
    %v2167 = vunpack.c.h.b16 %v572
    %v2168 = vunpack.c.l.b16 %v573
    %v2169 = vunpack.c.h.b16 %v573
    %v2170 = vunpack.c.l.b16 %v574
    %v2171 = vunpack.c.h.b16 %v574
    %v2172 = vunpack.c.l.b16 %v575
    %v2173 = vunpack.c.h.b16 %v575
    %v2174 = vunpack.c.l.b16 %v576
    %v2175 = vunpack.c.h.b16 %v576
    %v2176 = vunpack.c.l.b16 %v577
    %v2177 = vunpack.c.h.b16 %v577
    %v2178 = vunpack.c.l.b16 %v578
    %v2179 = vunpack.c.h.b16 %v578
    %v2180 = vunpack.c.l.b16 %v579
    %v2181 = vunpack.c.h.b16 %v579
    %v2182 = vunpack.c.l.b16 %v580
    %v2183 = vunpack.c.h.b16 %v580
    %v2184 = vunpack.c.l.b16 %v581
    %v2185 = vunpack.c.h.b16 %v581
    %v2186 = vunpack.c.l.b16 %v582
    %v2187 = vunpack.c.h.b16 %v582
    %v2188 = vunpack.c.l.b16 %v583
    %v2189 = vunpack.c.h.b16 %v583
    %v2190 = vunpack.c.l.b16 %v584
    %v2191 = vunpack.c.h.b16 %v584
    %v2192 = vunpack.c.l.b16 %v585
    %v2193 = vunpack.c.h.b16 %v585
    %v2194 = vunpack.c.l.b16 %v586
    %v2195 = vunpack.c.h.b16 %v586
    %v2196 = vunpack.c.l.b16 %v587
    %v2197 = vunpack.c.h.b16 %v587
    %v2198 = vunpack.c.l.b16 %v588
    %v2199 = vunpack.c.h.b16 %v588
    %v2200 = vunpack.c.l.b16 %v589
    %v2201 = vunpack.c.h.b16 %v589
    %v2202 = vunpack.c.l.b16 %v590
    %v2203 = vunpack.c.h.b16 %v590
    %v2204 = vunpack.c.l.b16 %v591
    %v2205 = vunpack.c.h.b16 %v591
    %v2206 = vunpack.c.l.b16 %v592
    %v2207 = vunpack.c.h.b16 %v592
    %v2208 = vunpack.c.l.b16 %v593
    %v2209 = vunpack.c.h.b16 %v593
    %v2210 = vunpack.c.l.b16 %v594
    %v2211 = vunpack.c.h.b16 %v594
    %v2212 = vunpack.c.l.b16 %v595
    %v2213 = vunpack.c.h.b16 %v595
    %v2214 = vunpack.c.l.b16 %v596
    %v2215 = vunpack.c.h.b16 %v596
    %v2216 = vunpack.c.l.b16 %v597
    %v2217 = vunpack.c.h.b16 %v597
    %v2218 = vunpack.c.l.b16 %v598
    %v2219 = vunpack.c.h.b16 %v598
    %v2220 = vunpack.c.l.b16 %v599
    %v2221 = vunpack.c.h.b16 %v599
    %v2222 = vunpack.c.l.b16 %v600
    %v2223 = vunpack.c.h.b16 %v600
    %v2224 = vunpack.c.l.b16 %v601
    %v2225 = vunpack.c.h.b16 %v601
    %v2226 = vunpack.c.l.b16 %v602
    %v2227 = vunpack.c.h.b16 %v602
    %v2228 = vunpack.c.l.b16 %v603
    %v2229 = vunpack.c.h.b16 %v603
    %v2230 = vunpack.c.l.b16 %v604
    %v2231 = vunpack.c.h.b16 %v604
    %v2232 = vunpack.c.l.b16 %v605
    %v2233 = vunpack.c.h.b16 %v605
    %v2234 = vunpack.c.l.b16 %v606
    %v2235 = vunpack.c.h.b16 %v606
    %v2236 = vunpack.c.l.b16 %v607
    %v2237 = vunpack.c.h.b16 %v607
    %v2238 = vunpack.c.l.b16 %v608
    %v2239 = vunpack.c.h.b16 %v608
    %v2240 = vunpack.c.l.b16 %v609
    %v2241 = vunpack.c.h.b16 %v609
    %v2242 = vunpack.c.l.b16 %v610
    %v2243 = vunpack.c.h.b16 %v610
    %v2244 = vunpack.c.l.b16 %v611
    %v2245 = vunpack.c.h.b16 %v611
    %v2246 = vunpack.c.l.b16 %v612
    %v2247 = vunpack.c.h.b16 %v612
    %v2248 = vunpack.c.l.b16 %v613
    %v2249 = vunpack.c.h.b16 %v613
    %v2250 = vunpack.c.l.b16 %v614
    %v2251 = vunpack.c.h.b16 %v614
    %v2252 = vunpack.c.l.b16 %v615
    %v2253 = vunpack.c.h.b16 %v615
    %v2254 = vunpack.c.l.b16 %v616
    %v2255 = vunpack.c.h.b16 %v616
    %v2256 = vunpack.c.l.b16 %v617
    %v2257 = vunpack.c.h.b16 %v617
    %v2258 = vunpack.c.l.b16 %v618
    %v2259 = vunpack.c.h.b16 %v618
    %v2260 = vunpack.c.l.b16 %v619
    %v2261 = vunpack.c.h.b16 %v619
    %v2262 = vunpack.c.l.b16 %v620
    %v2263 = vunpack.c.h.b16 %v620
    %v2264 = vunpack.c.l.b16 %v621
    %v2265 = vunpack.c.h.b16 %v621
    %v2266 = vunpack.c.l.b16 %v622
    %v2267 = vunpack.c.h.b16 %v622
    %v2268 = vunpack.c.l.b16 %v623
    %v2269 = vunpack.c.h.b16 %v623
    %v2270 = vunpack.c.l.b16 %v624
    %v2271 = vunpack.c.h.b16 %v624
    %v2272 = vunpack.c.l.b16 %v625
    %v2273 = vunpack.c.h.b16 %v625
    %v2274 = vunpack.c.l.b16 %v626
    %v2275 = vunpack.c.h.b16 %v626
    %v2276 = vunpack.c.l.b16 %v627
    %v2277 = vunpack.c.h.b16 %v627
    %v2278 = vunpack.c.l.b16 %v628
    %v2279 = vunpack.c.h.b16 %v628
    %v2280 = vunpack.c.l.b16 %v629
    %v2281 = vunpack.c.h.b16 %v629
    %v2282 = vunpack.c.l.b16 %v630
    %v2283 = vunpack.c.h.b16 %v630
    %v2284 = vunpack.c.l.b16 %v631
    %v2285 = vunpack.c.h.b16 %v631
    %v2286 = vunpack.c.l.b16 %v632
    %v2287 = vunpack.c.h.b16 %v632
    %v2288 = vunpack.c.l.b16 %v633
    %v2289 = vunpack.c.h.b16 %v633
    %v2290 = vunpack.c.l.b16 %v634
    %v2291 = vunpack.c.h.b16 %v634
    %v2292 = vunpack.c.l.b16 %v635
    %v2293 = vunpack.c.h.b16 %v635
    %v2294 = vunpack.c.l.b16 %v636
    %v2295 = vunpack.c.h.b16 %v636
    %v2296 = vunpack.c.l.b16 %v637
    %v2297 = vunpack.c.h.b16 %v637
    %v2298 = vunpack.c.l.b16 %v638
    %v2299 = vunpack.c.h.b16 %v638
    %v2300 = vunpack.c.l.b16 %v639
    %v2301 = vunpack.c.h.b16 %v639
    %v2302 = vunpack.c.l.b16 %v640
    %v2303 = vunpack.c.h.b16 %v640
    %v2304 = vunpack.c.l.b16 %v641
    %v2305 = vunpack.c.h.b16 %v641
    %v2306 = vunpack.c.l.b16 %v642
    %v2307 = vunpack.c.h.b16 %v642
    %v2308 = vunpack.c.l.b16 %v643
    %v2309 = vunpack.c.h.b16 %v643
    %v2310 = vunpack.c.l.b16 %v644
    %v2311 = vunpack.c.h.b16 %v644
    %v2312 = vunpack.c.l.b16 %v645
    %v2313 = vunpack.c.h.b16 %v645
    %v2314 = vunpack.c.l.b16 %v646
    %v2315 = vunpack.c.h.b16 %v646
    %v2316 = vunpack.c.l.b16 %v647
    %v2317 = vunpack.c.h.b16 %v647
    %v2318 = vunpack.c.l.b16 %v648
    %v2319 = vunpack.c.h.b16 %v648
    %v2320 = vunpack.c.l.b16 %v649
    %v2321 = vunpack.c.h.b16 %v649
    %v2322 = vunpack.c.l.b16 %v650
    %v2323 = vunpack.c.h.b16 %v650
    %v2324 = vunpack.c.l.b16 %v651
    %v2325 = vunpack.c.h.b16 %v651
    %v2326 = vunpack.c.l.b16 %v652
    %v2327 = vunpack.c.h.b16 %v652
    %v2328 = vunpack.c.l.b16 %v653
    %v2329 = vunpack.c.h.b16 %v653
    %v2330 = vunpack.c.l.b16 %v654
    %v2331 = vunpack.c.h.b16 %v654
    %v2332 = vunpack.c.l.b16 %v655
    %v2333 = vunpack.c.h.b16 %v655
    %v2334 = vunpack.c.l.b16 %v656
    %v2335 = vunpack.c.h.b16 %v656
    %v2336 = vunpack.c.l.b16 %v657
    %v2337 = vunpack.c.h.b16 %v657
    %v2338 = vunpack.c.l.b16 %v658
    %v2339 = vunpack.c.h.b16 %v658
    %v2340 = vunpack.c.l.b16 %v659
    %v2341 = vunpack.c.h.b16 %v659
    %v2342 = vunpack.c.l.b16 %v660
    %v2343 = vunpack.c.h.b16 %v660
    %v2344 = vunpack.c.l.b16 %v661
    %v2345 = vunpack.c.h.b16 %v661
    %v2346 = vunpack.c.l.b16 %v662
    %v2347 = vunpack.c.h.b16 %v662
    %v2348 = vunpack.c.l.b16 %v663
    %v2349 = vunpack.c.h.b16 %v663
    %v2350 = vunpack.c.l.b16 %v664
    %v2351 = vunpack.c.h.b16 %v664
    %v2352 = vunpack.c.l.b16 %v665
    %v2353 = vunpack.c.h.b16 %v665
    %v2354 = vunpack.c.l.b16 %v666
    %v2355 = vunpack.c.h.b16 %v666
    %v2356 = vunpack.c.l.b16 %v667
    %v2357 = vunpack.c.h.b16 %v667
    %v2358 = vunpack.c.l.b16 %v668
    %v2359 = vunpack.c.h.b16 %v668
    %v2360 = vunpack.c.l.b16 %v669
    %v2361 = vunpack.c.h.b16 %v669
    %v2362 = vunpack.c.l.b16 %v670
    %v2363 = vunpack.c.h.b16 %v670
    %v2364 = vunpack.c.l.b16 %v671
    %v2365 = vunpack.c.h.b16 %v671
    %v2366 = vunpack.c.l.b16 %v672
    %v2367 = vunpack.c.h.b16 %v672
    %v2368 = vunpack.c.l.b16 %v673
    %v2369 = vunpack.c.h.b16 %v673
    %v2370 = vunpack.c.l.b16 %v674
    %v2371 = vunpack.c.h.b16 %v674
    %v2372 = vunpack.c.l.b16 %v675
    %v2373 = vunpack.c.h.b16 %v675
    %v2374 = vunpack.c.l.b16 %v676
    %v2375 = vunpack.c.h.b16 %v676
    %v2376 = vunpack.c.l.b16 %v677
    %v2377 = vunpack.c.h.b16 %v677
    %v2378 = vunpack.c.l.b16 %v678
    %v2379 = vunpack.c.h.b16 %v678
    %v2380 = vunpack.c.l.b16 %v679
    %v2381 = vunpack.c.h.b16 %v679
    %v2382 = vunpack.c.l.b16 %v680
    %v2383 = vunpack.c.h.b16 %v680
    %v2384 = vunpack.c.l.b16 %v681
    %v2385 = vunpack.c.h.b16 %v681
    %v2386 = vunpack.c.l.b16 %v682
    %v2387 = vunpack.c.h.b16 %v682
    %v2388 = vunpack.c.l.b16 %v683
    %v2389 = vunpack.c.h.b16 %v683
    %v2390 = vunpack.c.l.b16 %v684
    %v2391 = vunpack.c.h.b16 %v684
    %v2392 = vunpack.c.l.b16 %v685
    %v2393 = vunpack.c.h.b16 %v685
    %v2394 = vunpack.c.l.b16 %v686
    %v2395 = vunpack.c.h.b16 %v686
    %v2396 = vunpack.c.l.b16 %v687
    %v2397 = vunpack.c.h.b16 %v687
    %v2398 = vunpack.c.l.b16 %v688
    %v2399 = vunpack.c.h.b16 %v688
    %v2400 = vunpack.c.l.b16 %v689
    %v2401 = vunpack.c.h.b16 %v689
    %v2402 = vunpack.c.l.b16 %v690
    %v2403 = vunpack.c.h.b16 %v690
    %v2404 = vunpack.c.l.b16 %v691
    %v2405 = vunpack.c.h.b16 %v691
    %v2406 = vunpack.c.l.b16 %v692
    %v2407 = vunpack.c.h.b16 %v692
    %v2408 = vunpack.c.l.b16 %v693
    %v2409 = vunpack.c.h.b16 %v693
    %v2410 = vunpack.c.l.b16 %v694
    %v2411 = vunpack.c.h.b16 %v694
    %v2412 = vunpack.c.l.b16 %v695
    %v2413 = vunpack.c.h.b16 %v695
    %v2414 = vunpack.c.l.b16 %v696
    %v2415 = vunpack.c.h.b16 %v696
    %v2416 = vunpack.c.l.b16 %v697
    %v2417 = vunpack.c.h.b16 %v697
    %v2418 = vunpack.c.l.b16 %v698
    %v2419 = vunpack.c.h.b16 %v698
    %v2420 = vunpack.c.l.b16 %v699
    %v2421 = vunpack.c.h.b16 %v699
    %v2422 = vunpack.c.l.b16 %v700
    %v2423 = vunpack.c.h.b16 %v700
    %v2424 = vunpack.c.l.b16 %v701
    %v2425 = vunpack.c.h.b16 %v701
    %v2426 = vunpack.c.l.b16 %v702
    %v2427 = vunpack.c.h.b16 %v702
    %v2428 = vunpack.c.l.b16 %v703
    %v2429 = vunpack.c.h.b16 %v703
    %v2430 = vunpack.c.l.b16 %v704
    %v2431 = vunpack.c.h.b16 %v704
    %v2432 = vunpack.c.l.b16 %v705
    %v2433 = vunpack.c.h.b16 %v705
    %v2434 = vunpack.c.l.b16 %v706
    %v2435 = vunpack.c.h.b16 %v706
    %v2436 = vunpack.c.l.b16 %v707
    %v2437 = vunpack.c.h.b16 %v707
    %v2438 = vunpack.c.l.b16 %v708
    %v2439 = vunpack.c.h.b16 %v708
    %v2440 = vunpack.c.l.b16 %v709
    %v2441 = vunpack.c.h.b16 %v709
    %v2442 = vunpack.c.l.b16 %v710
    %v2443 = vunpack.c.h.b16 %v710
    %v2444 = vunpack.c.l.b16 %v711
    %v2445 = vunpack.c.h.b16 %v711
    %v2446 = vpack.c.b16 %v1294, %v1290
    %v2447 = vpack.c.b16 %v1295, %v1291
    %v2448 = vpack.c.b16 %v1296, %v1292
    %v2449 = vpack.c.b16 %v1297, %v1293
    %v2450 = vpack.c.b16 %v1302, %v1298
    %v2451 = vpack.c.b16 %v1303, %v1299
    %v2452 = vpack.c.b16 %v1304, %v1300
    %v2453 = vpack.c.b16 %v1305, %v1301
    %v2454 = vpack.c.b16 %v1310, %v1306
    %v2455 = vpack.c.b16 %v1311, %v1307
    %v2456 = vpack.c.b16 %v1312, %v1308
    %v2457 = vpack.c.b16 %v1313, %v1309
    %v2458 = vpack.c.b16 %v1318, %v1314
    %v2459 = vpack.c.b16 %v1319, %v1315
    %v2460 = vpack.c.b16 %v1320, %v1316
    %v2461 = vpack.c.b16 %v1321, %v1317
    %v2462 = vpack.c.b16 %v1326, %v1322
    %v2463 = vpack.c.b16 %v1327, %v1323
    %v2464 = vpack.c.b16 %v1328, %v1324
    %v2465 = vpack.c.b16 %v1329, %v1325
    %v2466 = vpack.c.b16 %v1334, %v1330
    %v2467 = vpack.c.b16 %v1335, %v1331
    %v2468 = vpack.c.b16 %v1336, %v1332
    %v2469 = vpack.c.b16 %v1337, %v1333
    %v2470 = vpack.c.b16 %v1342, %v1338
    %v2471 = vpack.c.b16 %v1343, %v1339
    %v2472 = vpack.c.b16 %v1344, %v1340
    %v2473 = vpack.c.b16 %v1345, %v1341
    %v2474 = vpack.c.b16 %v1350, %v1346
    %v2475 = vpack.c.b16 %v1351, %v1347
    %v2476 = vpack.c.b16 %v1352, %v1348
    %v2477 = vpack.c.b16 %v1353, %v1349
    %v2478 = vpack.c.b16 %v1358, %v1354
    %v2479 = vpack.c.b16 %v1359, %v1355
    %v2480 = vpack.c.b16 %v1360, %v1356
    %v2481 = vpack.c.b16 %v1361, %v1357
    %v2482 = vpack.c.b16 %v1366, %v1362
    %v2483 = vpack.c.b16 %v1367, %v1363
    %v2484 = vpack.c.b16 %v1368, %v1364
    %v2485 = vpack.c.b16 %v1369, %v1365
    %v2486 = vpack.c.b16 %v1374, %v1370
    %v2487 = vpack.c.b16 %v1375, %v1371
    %v2488 = vpack.c.b16 %v1376, %v1372
    %v2489 = vpack.c.b16 %v1377, %v1373
    %v2490 = vpack.c.b16 %v1382, %v1378
    %v2491 = vpack.c.b16 %v1383, %v1379
    %v2492 = vpack.c.b16 %v1384, %v1380
    %v2493 = vpack.c.b16 %v1385, %v1381
    %v2494 = vpack.c.b16 %v1390, %v1386
    %v2495 = vpack.c.b16 %v1391, %v1387
    %v2496 = vpack.c.b16 %v1392, %v1388
    %v2497 = vpack.c.b16 %v1393, %v1389
    %v2498 = vpack.c.b16 %v1398, %v1394
    %v2499 = vpack.c.b16 %v1399, %v1395
    %v2500 = vpack.c.b16 %v1400, %v1396
    %v2501 = vpack.c.b16 %v1401, %v1397
    %v2502 = vpack.c.b16 %v1406, %v1402
    %v2503 = vpack.c.b16 %v1407, %v1403
    %v2504 = vpack.c.b16 %v1408, %v1404
    %v2505 = vpack.c.b16 %v1409, %v1405
    %v2506 = vpack.c.b16 %v1414, %v1410
    %v2507 = vpack.c.b16 %v1415, %v1411
    %v2508 = vpack.c.b16 %v1416, %v1412
    %v2509 = vpack.c.b16 %v1417, %v1413
    %v2510 = vpack.c.b16 %v1422, %v1418
    %v2511 = vpack.c.b16 %v1423, %v1419
    %v2512 = vpack.c.b16 %v1424, %v1420
    %v2513 = vpack.c.b16 %v1425, %v1421
    %v2514 = vpack.c.b16 %v1430, %v1426
    %v2515 = vpack.c.b16 %v1431, %v1427
    %v2516 = vpack.c.b16 %v1432, %v1428
    %v2517 = vpack.c.b16 %v1433, %v1429
    %v2518 = vpack.c.b16 %v1438, %v1434
    %v2519 = vpack.c.b16 %v1439, %v1435
    %v2520 = vpack.c.b16 %v1440, %v1436
    %v2521 = vpack.c.b16 %v1441, %v1437
    %v2522 = vpack.c.b16 %v1446, %v1442
    %v2523 = vpack.c.b16 %v1447, %v1443
    %v2524 = vpack.c.b16 %v1448, %v1444
    %v2525 = vpack.c.b16 %v1449, %v1445
    %v2526 = vpack.c.b16 %v1454, %v1450
    %v2527 = vpack.c.b16 %v1455, %v1451
    %v2528 = vpack.c.b16 %v1456, %v1452
    %v2529 = vpack.c.b16 %v1457, %v1453
    %v2530 = vpack.c.b16 %v1462, %v1458
    %v2531 = vpack.c.b16 %v1463, %v1459
    %v2532 = vpack.c.b16 %v1464, %v1460
    %v2533 = vpack.c.b16 %v1465, %v1461
    %v2534 = vpack.c.b16 %v1470, %v1466
    %v2535 = vpack.c.b16 %v1471, %v1467
    %v2536 = vpack.c.b16 %v1472, %v1468
    %v2537 = vpack.c.b16 %v1473, %v1469
    %v2538 = vpack.c.b16 %v1478, %v1474
    %v2539 = vpack.c.b16 %v1479, %v1475
    %v2540 = vpack.c.b16 %v1480, %v1476
    %v2541 = vpack.c.b16 %v1481, %v1477
    %v2542 = vpack.c.b16 %v1486, %v1482
    %v2543 = vpack.c.b16 %v1487, %v1483
    %v2544 = vpack.c.b16 %v1488, %v1484
    %v2545 = vpack.c.b16 %v1489, %v1485
    %v2546 = vpack.c.b16 %v1494, %v1490
    %v2547 = vpack.c.b16 %v1495, %v1491
    %v2548 = vpack.c.b16 %v1496, %v1492
    %v2549 = vpack.c.b16 %v1497, %v1493
    %v2550 = vpack.c.b16 %v1502, %v1498
    %v2551 = vpack.c.b16 %v1503, %v1499
    %v2552 = vpack.c.b16 %v1504, %v1500
    %v2553 = vpack.c.b16 %v1505, %v1501
    %v2554 = vpack.c.b16 %v1510, %v1506
    %v2555 = vpack.c.b16 %v1511, %v1507
    %v2556 = vpack.c.b16 %v1512, %v1508
    %v2557 = vpack.c.b16 %v1513, %v1509
    %v2558 = vpack.c.b16 %v1518, %v1514
    %v2559 = vpack.c.b16 %v1519, %v1515
    %v2560 = vpack.c.b16 %v1520, %v1516
    %v2561 = vpack.c.b16 %v1521, %v1517
    %v2562 = vpack.c.b16 %v1526, %v1522
    %v2563 = vpack.c.b16 %v1527, %v1523
    %v2564 = vpack.c.b16 %v1528, %v1524
    %v2565 = vpack.c.b16 %v1529, %v1525
    %v2566 = vpack.c.b16 %v1534, %v1530
    %v2567 = vpack.c.b16 %v1535, %v1531
    %v2568 = vpack.c.b16 %v1536, %v1532
    %v2569 = vpack.c.b16 %v1537, %v1533
    %v2570 = vpack.c.b16 %v1542, %v1538
    %v2571 = vpack.c.b16 %v1543, %v1539
    %v2572 = vpack.c.b16 %v1544, %v1540
    %v2573 = vpack.c.b16 %v1545, %v1541
    %v2574 = vpack.c.b16 %v1550, %v1546
    %v2575 = vpack.c.b16 %v1551, %v1547
    %v2576 = vpack.c.b16 %v1552, %v1548
    %v2577 = vpack.c.b16 %v1553, %v1549
    %v2578 = vpack.c.b16 %v1558, %v1554
    %v2579 = vpack.c.b16 %v1559, %v1555
    %v2580 = vpack.c.b16 %v1560, %v1556
    %v2581 = vpack.c.b16 %v1561, %v1557
    %v2582 = vpack.c.b16 %v1566, %v1562
    %v2583 = vpack.c.b16 %v1567, %v1563
    %v2584 = vpack.c.b16 %v1568, %v1564
    %v2585 = vpack.c.b16 %v1569, %v1565
    %v2586 = vpack.c.b16 %v1574, %v1570
    %v2587 = vpack.c.b16 %v1575, %v1571
    %v2588 = vpack.c.b16 %v1576, %v1572
    %v2589 = vpack.c.b16 %v1577, %v1573
    %v2590 = vpack.c.b16 %v1582, %v1578
    %v2591 = vpack.c.b16 %v1583, %v1579
    %v2592 = vpack.c.b16 %v1584, %v1580
    %v2593 = vpack.c.b16 %v1585, %v1581
    %v2594 = vpack.c.b16 %v1590, %v1586
    %v2595 = vpack.c.b16 %v1591, %v1587
    %v2596 = vpack.c.b16 %v1592, %v1588
    %v2597 = vpack.c.b16 %v1593, %v1589
    %v2598 = vpack.c.b16 %v1598, %v1594
    %v2599 = vpack.c.b16 %v1599, %v1595
    %v2600 = vpack.c.b16 %v1600, %v1596
    %v2601 = vpack.c.b16 %v1601, %v1597
    %v2602 = vpack.c.b16 %v1606, %v1602
    %v2603 = vpack.c.b16 %v1607, %v1603
    %v2604 = vpack.c.b16 %v1608, %v1604
    %v2605 = vpack.c.b16 %v1609, %v1605
    %v2606 = vpack.c.b16 %v1614, %v1610
    %v2607 = vpack.c.b16 %v1615, %v1611
    %v2608 = vpack.c.b16 %v1616, %v1612
    %v2609 = vpack.c.b16 %v1617, %v1613
    %v2610 = vpack.c.b16 %v1622, %v1618
    %v2611 = vpack.c.b16 %v1623, %v1619
    %v2612 = vpack.c.b16 %v1624, %v1620
    %v2613 = vpack.c.b16 %v1625, %v1621
    %v2614 = vpack.c.b16 %v1630, %v1626
    %v2615 = vpack.c.b16 %v1631, %v1627
    %v2616 = vpack.c.b16 %v1632, %v1628
    %v2617 = vpack.c.b16 %v1633, %v1629
    %v2618 = vpack.c.b16 %v1638, %v1634
    %v2619 = vpack.c.b16 %v1639, %v1635
    %v2620 = vpack.c.b16 %v1640, %v1636
    %v2621 = vpack.c.b16 %v1641, %v1637
    %v2622 = vpack.c.b16 %v1646, %v1642
    %v2623 = vpack.c.b16 %v1647, %v1643
    %v2624 = vpack.c.b16 %v1648, %v1644
    %v2625 = vpack.c.b16 %v1649, %v1645
    %v2626 = vpack.c.b16 %v1654, %v1650
    %v2627 = vpack.c.b16 %v1655, %v1651
    %v2628 = vpack.c.b16 %v1656, %v1652
    %v2629 = vpack.c.b16 %v1657, %v1653
    %v2630 = vpack.c.b16 %v1662, %v1658
    %v2631 = vpack.c.b16 %v1663, %v1659
    %v2632 = vpack.c.b16 %v1664, %v1660
    %v2633 = vpack.c.b16 %v1665, %v1661
    %v2634 = vpack.c.b16 %v1670, %v1666
    %v2635 = vpack.c.b16 %v1671, %v1667
    %v2636 = vpack.c.b16 %v1672, %v1668
    %v2637 = vpack.c.b16 %v1673, %v1669
    %v2638 = vpack.c.b16 %v1678, %v1674
    %v2639 = vpack.c.b16 %v1679, %v1675
    %v2640 = vpack.c.b16 %v1680, %v1676
    %v2641 = vpack.c.b16 %v1681, %v1677
    %v2642 = vpack.c.b16 %v1686, %v1682
    %v2643 = vpack.c.b16 %v1687, %v1683
    %v2644 = vpack.c.b16 %v1688, %v1684
    %v2645 = vpack.c.b16 %v1689, %v1685
    %v2646 = vpack.c.b16 %v1694, %v1690
    %v2647 = vpack.c.b16 %v1695, %v1691
    %v2648 = vpack.c.b16 %v1696, %v1692
    %v2649 = vpack.c.b16 %v1697, %v1693
    %v2650 = vpack.c.b16 %v1702, %v1698
    %v2651 = vpack.c.b16 %v1703, %v1699
    %v2652 = vpack.c.b16 %v1704, %v1700
    %v2653 = vpack.c.b16 %v1705, %v1701
    %v2654 = vpack.c.b16 %v1710, %v1706
    %v2655 = vpack.c.b16 %v1711, %v1707
    %v2656 = vpack.c.b16 %v1712, %v1708
    %v2657 = vpack.c.b16 %v1713, %v1709
    %v2658 = vpack.c.b16 %v1718, %v1714
    %v2659 = vpack.c.b16 %v1719, %v1715
    %v2660 = vpack.c.b16 %v1720, %v1716
    %v2661 = vpack.c.b16 %v1721, %v1717
    %v2662 = vpack.c.b16 %v1726, %v1722
    %v2663 = vpack.c.b16 %v1727, %v1723
    %v2664 = vpack.c.b16 %v1728, %v1724
    %v2665 = vpack.c.b16 %v1729, %v1725
    %v2666 = vpack.c.b16 %v1734, %v1730
    %v2667 = vpack.c.b16 %v1735, %v1731
    %v2668 = vpack.c.b16 %v1736, %v1732
    %v2669 = vpack.c.b16 %v1737, %v1733
    %v2670 = vpack.c.b16 %v1742, %v1738
    %v2671 = vpack.c.b16 %v1743, %v1739
    %v2672 = vpack.c.b16 %v1744, %v1740
    %v2673 = vpack.c.b16 %v1745, %v1741
    %v2674 = vpack.c.b16 %v1750, %v1746
    %v2675 = vpack.c.b16 %v1751, %v1747
    %v2676 = vpack.c.b16 %v1752, %v1748
    %v2677 = vpack.c.b16 %v1753, %v1749
    %v2678 = vpack.c.b16 %v1758, %v1754
    %v2679 = vpack.c.b16 %v1759, %v1755
    %v2680 = vpack.c.b16 %v1760, %v1756
    %v2681 = vpack.c.b16 %v1761, %v1757
    %v2682 = vpack.c.b16 %v1766, %v1762
    %v2683 = vpack.c.b16 %v1767, %v1763
    %v2684 = vpack.c.b16 %v1768, %v1764
    %v2685 = vpack.c.b16 %v1769, %v1765
    %v2686 = vpack.c.b16 %v1774, %v1770
    %v2687 = vpack.c.b16 %v1775, %v1771
    %v2688 = vpack.c.b16 %v1776, %v1772
    %v2689 = vpack.c.b16 %v1777, %v1773
    %v2690 = vpack.c.b16 %v1782, %v1778
    %v2691 = vpack.c.b16 %v1783, %v1779
    %v2692 = vpack.c.b16 %v1784, %v1780
    %v2693 = vpack.c.b16 %v1785, %v1781
    %v2694 = vpack.c.b16 %v1790, %v1786
    %v2695 = vpack.c.b16 %v1791, %v1787
    %v2696 = vpack.c.b16 %v1792, %v1788
    %v2697 = vpack.c.b16 %v1793, %v1789
    %v2698 = vpack.c.b16 %v1798, %v1794
    %v2699 = vpack.c.b16 %v1799, %v1795
    %v2700 = vpack.c.b16 %v1800, %v1796
    %v2701 = vpack.c.b16 %v1801, %v1797
    %v2702 = vpack.c.b16 %v1806, %v1802
    %v2703 = vpack.c.b16 %v1807, %v1803
    %v2704 = vpack.c.b16 %v1808, %v1804
    %v2705 = vpack.c.b16 %v1809, %v1805
    %v2706 = vpack.c.b16 %v1814, %v1810
    %v2707 = vpack.c.b16 %v1815, %v1811
    %v2708 = vpack.c.b16 %v1816, %v1812
    %v2709 = vpack.c.b16 %v1817, %v1813
    %v2710 = vpack.c.b16 %v1822, %v1818
    %v2711 = vpack.c.b16 %v1823, %v1819
    %v2712 = vpack.c.b16 %v1824, %v1820
    %v2713 = vpack.c.b16 %v1825, %v1821
    %v2714 = vpack.c.b16 %v1830, %v1826
    %v2715 = vpack.c.b16 %v1831, %v1827
    %v2716 = vpack.c.b16 %v1832, %v1828
    %v2717 = vpack.c.b16 %v1833, %v1829
    %v2718 = vpack.c.b16 %v1838, %v1834
    %v2719 = vpack.c.b16 %v1839, %v1835
    %v2720 = vpack.c.b16 %v1840, %v1836
    %v2721 = vpack.c.b16 %v1841, %v1837
    %v2722 = vpack.c.b16 %v1846, %v1842
    %v2723 = vpack.c.b16 %v1847, %v1843
    %v2724 = vpack.c.b16 %v1848, %v1844
    %v2725 = vpack.c.b16 %v1849, %v1845
    %v2726 = vpack.c.b16 %v1854, %v1850
    %v2727 = vpack.c.b16 %v1855, %v1851
    %v2728 = vpack.c.b16 %v1856, %v1852
    %v2729 = vpack.c.b16 %v1857, %v1853
    %v2730 = vpack.c.b16 %v1862, %v1858
    %v2731 = vpack.c.b16 %v1863, %v1859
    %v2732 = vpack.c.b16 %v1864, %v1860
    %v2733 = vpack.c.b16 %v1865, %v1861
    %v2734 = vpack.c.b16 %v1870, %v1866
    %v2735 = vpack.c.b16 %v1871, %v1867
    %v2736 = vpack.c.b16 %v1872, %v1868
    %v2737 = vpack.c.b16 %v1873, %v1869
    %v2738 = vpack.c.b16 %v1878, %v1874
    %v2739 = vpack.c.b16 %v1879, %v1875
    %v2740 = vpack.c.b16 %v1880, %v1876
    %v2741 = vpack.c.b16 %v1881, %v1877
    %v2742 = vpack.c.b16 %v1886, %v1882
    %v2743 = vpack.c.b16 %v1887, %v1883
    %v2744 = vpack.c.b16 %v1888, %v1884
    %v2745 = vpack.c.b16 %v1889, %v1885
    %v2746 = vpack.c.b16 %v1894, %v1890
    %v2747 = vpack.c.b16 %v1895, %v1891
    %v2748 = vpack.c.b16 %v1896, %v1892
    %v2749 = vpack.c.b16 %v1897, %v1893
    %v2750 = vpack.c.b16 %v1902, %v1898
    %v2751 = vpack.c.b16 %v1903, %v1899
    %v2752 = vpack.c.b16 %v1904, %v1900
    %v2753 = vpack.c.b16 %v1905, %v1901
    %v2754 = vpack.c.b16 %v1910, %v1906
    %v2755 = vpack.c.b16 %v1911, %v1907
    %v2756 = vpack.c.b16 %v1912, %v1908
    %v2757 = vpack.c.b16 %v1913, %v1909
    %v2758 = vpack.c.b16 %v1918, %v1914
    %v2759 = vpack.c.b16 %v1919, %v1915
    %v2760 = vpack.c.b16 %v1920, %v1916
    %v2761 = vpack.c.b16 %v1921, %v1917
    %v2762 = vpack.c.b16 %v1926, %v1922
    %v2763 = vpack.c.b16 %v1927, %v1923
    %v2764 = vpack.c.b16 %v1928, %v1924
    %v2765 = vpack.c.b16 %v1929, %v1925
    %v2766 = vpack.c.b16 %v1934, %v1930
    %v2767 = vpack.c.b16 %v1935, %v1931
    %v2768 = vpack.c.b16 %v1936, %v1932
    %v2769 = vpack.c.b16 %v1937, %v1933
    %v2770 = vpack.c.b16 %v1942, %v1938
    %v2771 = vpack.c.b16 %v1943, %v1939
    %v2772 = vpack.c.b16 %v1944, %v1940
    %v2773 = vpack.c.b16 %v1945, %v1941
    %v2774 = vpack.c.b16 %v1950, %v1946
    %v2775 = vpack.c.b16 %v1951, %v1947
    %v2776 = vpack.c.b16 %v1952, %v1948
    %v2777 = vpack.c.b16 %v1953, %v1949
    %v2778 = vpack.c.b16 %v1958, %v1954
    %v2779 = vpack.c.b16 %v1959, %v1955
    %v2780 = vpack.c.b16 %v1960, %v1956
    %v2781 = vpack.c.b16 %v1961, %v1957
    %v2782 = vpack.c.b16 %v1966, %v1962
    %v2783 = vpack.c.b16 %v1967, %v1963
    %v2784 = vpack.c.b16 %v1968, %v1964
    %v2785 = vpack.c.b16 %v1969, %v1965
    %v2786 = vpack.c.b16 %v1974, %v1970
    %v2787 = vpack.c.b16 %v1975, %v1971
    %v2788 = vpack.c.b16 %v1976, %v1972
    %v2789 = vpack.c.b16 %v1977, %v1973
    %v2790 = vpack.c.b16 %v1982, %v1978
    %v2791 = vpack.c.b16 %v1983, %v1979
    %v2792 = vpack.c.b16 %v1984, %v1980
    %v2793 = vpack.c.b16 %v1985, %v1981
    %v2794 = vpack.c.b16 %v1990, %v1986
    %v2795 = vpack.c.b16 %v1991, %v1987
    %v2796 = vpack.c.b16 %v1992, %v1988
    %v2797 = vpack.c.b16 %v1993, %v1989
    %v2798 = vpack.c.b16 %v1998, %v1994
    %v2799 = vpack.c.b16 %v1999, %v1995
    %v2800 = vpack.c.b16 %v2000, %v1996
    %v2801 = vpack.c.b16 %v2001, %v1997
    %v2802 = vpack.c.b16 %v2006, %v2002
    %v2803 = vpack.c.b16 %v2007, %v2003
    %v2804 = vpack.c.b16 %v2008, %v2004
    %v2805 = vpack.c.b16 %v2009, %v2005
    %v2806 = vpack.c.b16 %v2014, %v2010
    %v2807 = vpack.c.b16 %v2015, %v2011
    %v2808 = vpack.c.b16 %v2016, %v2012
    %v2809 = vpack.c.b16 %v2017, %v2013
    %v2810 = vpack.c.b16 %v2022, %v2018
    %v2811 = vpack.c.b16 %v2023, %v2019
    %v2812 = vpack.c.b16 %v2024, %v2020
    %v2813 = vpack.c.b16 %v2025, %v2021
    %v2814 = vpack.c.b16 %v2030, %v2026
    %v2815 = vpack.c.b16 %v2031, %v2027
    %v2816 = vpack.c.b16 %v2032, %v2028
    %v2817 = vpack.c.b16 %v2033, %v2029
    %v2818 = vpack.c.b16 %v2038, %v2034
    %v2819 = vpack.c.b16 %v2039, %v2035
    %v2820 = vpack.c.b16 %v2040, %v2036
    %v2821 = vpack.c.b16 %v2041, %v2037
    %v2822 = vpack.c.b16 %v2046, %v2042
    %v2823 = vpack.c.b16 %v2047, %v2043
    %v2824 = vpack.c.b16 %v2048, %v2044
    %v2825 = vpack.c.b16 %v2049, %v2045
    %v2826 = vpack.c.b16 %v2054, %v2050
    %v2827 = vpack.c.b16 %v2055, %v2051
    %v2828 = vpack.c.b16 %v2056, %v2052
    %v2829 = vpack.c.b16 %v2057, %v2053
    %v2830 = vpack.c.b16 %v2062, %v2058
    %v2831 = vpack.c.b16 %v2063, %v2059
    %v2832 = vpack.c.b16 %v2064, %v2060
    %v2833 = vpack.c.b16 %v2065, %v2061
    %v2834 = vpack.c.b16 %v2070, %v2066
    %v2835 = vpack.c.b16 %v2071, %v2067
    %v2836 = vpack.c.b16 %v2072, %v2068
    %v2837 = vpack.c.b16 %v2073, %v2069
    %v2838 = vpack.c.b16 %v2078, %v2074
    %v2839 = vpack.c.b16 %v2079, %v2075
    %v2840 = vpack.c.b16 %v2080, %v2076
    %v2841 = vpack.c.b16 %v2081, %v2077
    %v2842 = vpack.c.b16 %v2086, %v2082
    %v2843 = vpack.c.b16 %v2087, %v2083
    %v2844 = vpack.c.b16 %v2088, %v2084
    %v2845 = vpack.c.b16 %v2089, %v2085
    %v2846 = vpack.c.b16 %v2094, %v2090
    %v2847 = vpack.c.b16 %v2095, %v2091
    %v2848 = vpack.c.b16 %v2096, %v2092
    %v2849 = vpack.c.b16 %v2097, %v2093
    %v2850 = vpack.c.b16 %v2102, %v2098
    %v2851 = vpack.c.b16 %v2103, %v2099
    %v2852 = vpack.c.b16 %v2104, %v2100
    %v2853 = vpack.c.b16 %v2105, %v2101
    %v2854 = vpack.c.b16 %v2110, %v2106
    %v2855 = vpack.c.b16 %v2111, %v2107
    %v2856 = vpack.c.b16 %v2112, %v2108
    %v2857 = vpack.c.b16 %v2113, %v2109
    %v2858 = vpack.c.b16 %v2118, %v2114
    %v2859 = vpack.c.b16 %v2119, %v2115
    %v2860 = vpack.c.b16 %v2120, %v2116
    %v2861 = vpack.c.b16 %v2121, %v2117
    %v2862 = vpack.c.b16 %v2126, %v2122
    %v2863 = vpack.c.b16 %v2127, %v2123
    %v2864 = vpack.c.b16 %v2128, %v2124
    %v2865 = vpack.c.b16 %v2129, %v2125
    %v2866 = vpack.c.b16 %v2134, %v2130
    %v2867 = vpack.c.b16 %v2135, %v2131
    %v2868 = vpack.c.b16 %v2136, %v2132
    %v2869 = vpack.c.b16 %v2137, %v2133
    %v2870 = vpack.c.b16 %v2142, %v2138
    %v2871 = vpack.c.b16 %v2143, %v2139
    %v2872 = vpack.c.b16 %v2144, %v2140
    %v2873 = vpack.c.b16 %v2145, %v2141
    %v2874 = vpack.c.b16 %v2150, %v2146
    %v2875 = vpack.c.b16 %v2151, %v2147
    %v2876 = vpack.c.b16 %v2152, %v2148
    %v2877 = vpack.c.b16 %v2153, %v2149
    %v2878 = vpack.c.b16 %v2158, %v2154
    %v2879 = vpack.c.b16 %v2159, %v2155
    %v2880 = vpack.c.b16 %v2160, %v2156
    %v2881 = vpack.c.b16 %v2161, %v2157
    %v2882 = vpack.c.b16 %v2166, %v2162
    %v2883 = vpack.c.b16 %v2167, %v2163
    %v2884 = vpack.c.b16 %v2168, %v2164
    %v2885 = vpack.c.b16 %v2169, %v2165
    %v2886 = vpack.c.b16 %v2174, %v2170
    %v2887 = vpack.c.b16 %v2175, %v2171
    %v2888 = vpack.c.b16 %v2176, %v2172
    %v2889 = vpack.c.b16 %v2177, %v2173
    %v2890 = vpack.c.b16 %v2182, %v2178
    %v2891 = vpack.c.b16 %v2183, %v2179
    %v2892 = vpack.c.b16 %v2184, %v2180
    %v2893 = vpack.c.b16 %v2185, %v2181
    %v2894 = vpack.c.b16 %v2190, %v2186
    %v2895 = vpack.c.b16 %v2191, %v2187
    %v2896 = vpack.c.b16 %v2192, %v2188
    %v2897 = vpack.c.b16 %v2193, %v2189
    %v2898 = vpack.c.b16 %v2198, %v2194
    %v2899 = vpack.c.b16 %v2199, %v2195
    %v2900 = vpack.c.b16 %v2200, %v2196
    %v2901 = vpack.c.b16 %v2201, %v2197
    %v2902 = vpack.c.b16 %v2206, %v2202
    %v2903 = vpack.c.b16 %v2207, %v2203
    %v2904 = vpack.c.b16 %v2208, %v2204
    %v2905 = vpack.c.b16 %v2209, %v2205
    %v2906 = vpack.c.b16 %v2214, %v2210
    %v2907 = vpack.c.b16 %v2215, %v2211
    %v2908 = vpack.c.b16 %v2216, %v2212
    %v2909 = vpack.c.b16 %v2217, %v2213
    %v2910 = vpack.c.b16 %v2222, %v2218
    %v2911 = vpack.c.b16 %v2223, %v2219
    %v2912 = vpack.c.b16 %v2224, %v2220
    %v2913 = vpack.c.b16 %v2225, %v2221
    %v2914 = vpack.c.b16 %v2230, %v2226
    %v2915 = vpack.c.b16 %v2231, %v2227
    %v2916 = vpack.c.b16 %v2232, %v2228
    %v2917 = vpack.c.b16 %v2233, %v2229
    %v2918 = vpack.c.b16 %v2238, %v2234
    %v2919 = vpack.c.b16 %v2239, %v2235
    %v2920 = vpack.c.b16 %v2240, %v2236
    %v2921 = vpack.c.b16 %v2241, %v2237
    %v2922 = vpack.c.b16 %v2246, %v2242
    %v2923 = vpack.c.b16 %v2247, %v2243
    %v2924 = vpack.c.b16 %v2248, %v2244
    %v2925 = vpack.c.b16 %v2249, %v2245
    %v2926 = vpack.c.b16 %v2254, %v2250
    %v2927 = vpack.c.b16 %v2255, %v2251
    %v2928 = vpack.c.b16 %v2256, %v2252
    %v2929 = vpack.c.b16 %v2257, %v2253
    %v2930 = vpack.c.b16 %v2262, %v2258
    %v2931 = vpack.c.b16 %v2263, %v2259
    %v2932 = vpack.c.b16 %v2264, %v2260
    %v2933 = vpack.c.b16 %v2265, %v2261
    %v2934 = vpack.c.b16 %v2270, %v2266
    %v2935 = vpack.c.b16 %v2271, %v2267
    %v2936 = vpack.c.b16 %v2272, %v2268
    %v2937 = vpack.c.b16 %v2273, %v2269
    %v2938 = vpack.c.b16 %v2278, %v2274
    %v2939 = vpack.c.b16 %v2279, %v2275
    %v2940 = vpack.c.b16 %v2280, %v2276
    %v2941 = vpack.c.b16 %v2281, %v2277
    %v2942 = vpack.c.b16 %v2286, %v2282
    %v2943 = vpack.c.b16 %v2287, %v2283
    %v2944 = vpack.c.b16 %v2288, %v2284
    %v2945 = vpack.c.b16 %v2289, %v2285
    %v2946 = vpack.c.b16 %v2294, %v2290
    %v2947 = vpack.c.b16 %v2295, %v2291
    %v2948 = vpack.c.b16 %v2296, %v2292
    %v2949 = vpack.c.b16 %v2297, %v2293
    %v2950 = vpack.c.b16 %v2302, %v2298
    %v2951 = vpack.c.b16 %v2303, %v2299
    %v2952 = vpack.c.b16 %v2304, %v2300
    %v2953 = vpack.c.b16 %v2305, %v2301
    %v2954 = vpack.c.b16 %v2310, %v2306
    %v2955 = vpack.c.b16 %v2311, %v2307
    %v2956 = vpack.c.b16 %v2312, %v2308
    %v2957 = vpack.c.b16 %v2313, %v2309
    %v2958 = vpack.c.b16 %v2318, %v2314
    %v2959 = vpack.c.b16 %v2319, %v2315
    %v2960 = vpack.c.b16 %v2320, %v2316
    %v2961 = vpack.c.b16 %v2321, %v2317
    %v2962 = vpack.c.b16 %v2326, %v2322
    %v2963 = vpack.c.b16 %v2327, %v2323
    %v2964 = vpack.c.b16 %v2328, %v2324
    %v2965 = vpack.c.b16 %v2329, %v2325
    %v2966 = vpack.c.b16 %v2334, %v2330
    %v2967 = vpack.c.b16 %v2335, %v2331
    %v2968 = vpack.c.b16 %v2336, %v2332
    %v2969 = vpack.c.b16 %v2337, %v2333
    %v2970 = vpack.c.b16 %v2342, %v2338
    %v2971 = vpack.c.b16 %v2343, %v2339
    %v2972 = vpack.c.b16 %v2344, %v2340
    %v2973 = vpack.c.b16 %v2345, %v2341
    %v2974 = vpack.c.b16 %v2350, %v2346
    %v2975 = vpack.c.b16 %v2351, %v2347
    %v2976 = vpack.c.b16 %v2352, %v2348
    %v2977 = vpack.c.b16 %v2353, %v2349
    %v2978 = vpack.c.b16 %v2358, %v2354
    %v2979 = vpack.c.b16 %v2359, %v2355
    %v2980 = vpack.c.b16 %v2360, %v2356
    %v2981 = vpack.c.b16 %v2361, %v2357
    %v2982 = vpack.c.b16 %v2366, %v2362
    %v2983 = vpack.c.b16 %v2367, %v2363
    %v2984 = vpack.c.b16 %v2368, %v2364
    %v2985 = vpack.c.b16 %v2369, %v2365
    %v2986 = vpack.c.b16 %v2374, %v2370
    %v2987 = vpack.c.b16 %v2375, %v2371
    %v2988 = vpack.c.b16 %v2376, %v2372
    %v2989 = vpack.c.b16 %v2377, %v2373
    %v2990 = vpack.c.b16 %v2382, %v2378
    %v2991 = vpack.c.b16 %v2383, %v2379
    %v2992 = vpack.c.b16 %v2384, %v2380
    %v2993 = vpack.c.b16 %v2385, %v2381
    %v2994 = vpack.c.b16 %v2390, %v2386
    %v2995 = vpack.c.b16 %v2391, %v2387
    %v2996 = vpack.c.b16 %v2392, %v2388
    %v2997 = vpack.c.b16 %v2393, %v2389
    %v2998 = vpack.c.b16 %v2398, %v2394
    %v2999 = vpack.c.b16 %v2399, %v2395
    %v3000 = vpack.c.b16 %v2400, %v2396
    %v3001 = vpack.c.b16 %v2401, %v2397
    %v3002 = vpack.c.b16 %v2406, %v2402
    %v3003 = vpack.c.b16 %v2407, %v2403
    %v3004 = vpack.c.b16 %v2408, %v2404
    %v3005 = vpack.c.b16 %v2409, %v2405
    %v3006 = vpack.c.b16 %v2414, %v2410
    %v3007 = vpack.c.b16 %v2415, %v2411
    %v3008 = vpack.c.b16 %v2416, %v2412
    %v3009 = vpack.c.b16 %v2417, %v2413
    %v3010 = vpack.c.b16 %v2422, %v2418
    %v3011 = vpack.c.b16 %v2423, %v2419
    %v3012 = vpack.c.b16 %v2424, %v2420
    %v3013 = vpack.c.b16 %v2425, %v2421
    %v3014 = vpack.c.b16 %v2430, %v2426
    %v3015 = vpack.c.b16 %v2431, %v2427
    %v3016 = vpack.c.b16 %v2432, %v2428
    %v3017 = vpack.c.b16 %v2433, %v2429
    %v3018 = vpack.c.b16 %v2438, %v2434
    %v3019 = vpack.c.b16 %v2439, %v2435
    %v3020 = vpack.c.b16 %v2440, %v2436
    %v3021 = vpack.c.b16 %v2441, %v2437
    %v3022 = vpack.c.b16 %v2442, %v2442
    %v3023 = vpack.c.b16 %v2443, %v2443
    %v3024 = vpack.c.b16 %v2444, %v2444
    %v3025 = vpack.c.b16 %v2445, %v2445
    %vm3602 = vcmask 64512
    %v3604 = vsel %vm3602, %v133, 0
    %vm3606 = vcmask 1043456
    %v3608 = vsel %vm3606, %v3022, 0
    %v3611 = vsel %vm3606, %v3023, 0
    %v3614 = vsel %vm3606, %v3024, 0
    %v3617 = vsel %vm3606, %v3025, 0
    %3619 = vmatpush.bf16.msra.mxu0 %v2474
    %3620 = vmatpush.bf16.msra.mxu0 %v2470
    %3621 = vmatpush.bf16.msra.mxu0 %v2466
    %3622 = vmatpush.bf16.msra.mxu0 %v2462
    %3623 = vmatpush.bf16.msra.mxu0 %v2458
    %3624 = vmatpush.bf16.msra.mxu0 %v2454
    %3625 = vmatpush.bf16.msra.mxu0 %v2450
    %3626 = vmatpush.bf16.msra.mxu0 %v2446
    %3627 = vmatmul.bf16.gmra.mxu0 %v115
    %v3628 = vpop.f32.mrf.mxu0
    %v3629 = vadd.f32 0.0, %v3628
    %v3630 = vpop.f32.mrf.mxu0
    %3631 = vdwg.mxu0
    %3632 = vmatpush.bf16.msra.mxu0 %v2506
    %3633 = vmatpush.bf16.msra.mxu0 %v2502
    %3634 = vmatpush.bf16.msra.mxu0 %v2498
    %3635 = vmatpush.bf16.msra.mxu0 %v2494
    %3636 = vmatpush.bf16.msra.mxu0 %v2490
    %3637 = vmatpush.bf16.msra.mxu0 %v2486
    %3638 = vmatpush.bf16.msra.mxu0 %v2482
    %3639 = vmatpush.bf16.msra.mxu0 %v2478
    %3640 = vmatmul.bf16.gmra.mxu0 %v116
    %v3641 = vpop.f32.mrf.mxu0
    %v3642 = vadd.f32 %v3629, %v3641
    %v3643 = vpop.f32.mrf.mxu0
    %3644 = vdwg.mxu0
    %3645 = vmatpush.bf16.msra.mxu0 %v2538
    %3646 = vmatpush.bf16.msra.mxu0 %v2534
    %3647 = vmatpush.bf16.msra.mxu0 %v2530
    %3648 = vmatpush.bf16.msra.mxu0 %v2526
    %3649 = vmatpush.bf16.msra.mxu0 %v2522
    %3650 = vmatpush.bf16.msra.mxu0 %v2518
    %3651 = vmatpush.bf16.msra.mxu0 %v2514
    %3652 = vmatpush.bf16.msra.mxu0 %v2510
    %3653 = vmatmul.bf16.gmra.mxu0 %v117
    %v3654 = vpop.f32.mrf.mxu0
    %v3655 = vadd.f32 %v3642, %v3654
    %v3656 = vpop.f32.mrf.mxu0
    %3657 = vdwg.mxu0
    %3658 = vmatpush.bf16.msra.mxu0 %v2570
    %3659 = vmatpush.bf16.msra.mxu0 %v2566
    %3660 = vmatpush.bf16.msra.mxu0 %v2562
    %3661 = vmatpush.bf16.msra.mxu0 %v2558
    %3662 = vmatpush.bf16.msra.mxu0 %v2554
    %3663 = vmatpush.bf16.msra.mxu0 %v2550
    %3664 = vmatpush.bf16.msra.mxu0 %v2546
    %3665 = vmatpush.bf16.msra.mxu0 %v2542
    %3666 = vmatmul.bf16.gmra.mxu0 %v118
    %v3667 = vpop.f32.mrf.mxu0
    %v3668 = vadd.f32 %v3655, %v3667
    %v3669 = vpop.f32.mrf.mxu0
    %3670 = vdwg.mxu0
    %3671 = vmatpush.bf16.msra.mxu0 %v2602
    %3672 = vmatpush.bf16.msra.mxu0 %v2598
    %3673 = vmatpush.bf16.msra.mxu0 %v2594
    %3674 = vmatpush.bf16.msra.mxu0 %v2590
    %3675 = vmatpush.bf16.msra.mxu0 %v2586
    %3676 = vmatpush.bf16.msra.mxu0 %v2582
    %3677 = vmatpush.bf16.msra.mxu0 %v2578
    %3678 = vmatpush.bf16.msra.mxu0 %v2574
    %3679 = vmatmul.bf16.gmra.mxu0 %v119
    %v3680 = vpop.f32.mrf.mxu0
    %v3681 = vadd.f32 %v3668, %v3680
    %v3682 = vpop.f32.mrf.mxu0
    %3683 = vdwg.mxu0
    %3684 = vmatpush.bf16.msra.mxu0 %v2634
    %3685 = vmatpush.bf16.msra.mxu0 %v2630
    %3686 = vmatpush.bf16.msra.mxu0 %v2626
    %3687 = vmatpush.bf16.msra.mxu0 %v2622
    %3688 = vmatpush.bf16.msra.mxu0 %v2618
    %3689 = vmatpush.bf16.msra.mxu0 %v2614
    %3690 = vmatpush.bf16.msra.mxu0 %v2610
    %3691 = vmatpush.bf16.msra.mxu0 %v2606
    %3692 = vmatmul.bf16.gmra.mxu0 %v120
    %v3693 = vpop.f32.mrf.mxu0
    %v3694 = vadd.f32 %v3681, %v3693
    %v3695 = vpop.f32.mrf.mxu0
    %3696 = vdwg.mxu0
    %3697 = vmatpush.bf16.msra.mxu0 %v2666
    %3698 = vmatpush.bf16.msra.mxu0 %v2662
    %3699 = vmatpush.bf16.msra.mxu0 %v2658
    %3700 = vmatpush.bf16.msra.mxu0 %v2654
    %3701 = vmatpush.bf16.msra.mxu0 %v2650
    %3702 = vmatpush.bf16.msra.mxu0 %v2646
    %3703 = vmatpush.bf16.msra.mxu0 %v2642
    %3704 = vmatpush.bf16.msra.mxu0 %v2638
    %3705 = vmatmul.bf16.gmra.mxu0 %v121
    %v3706 = vpop.f32.mrf.mxu0
    %v3707 = vadd.f32 %v3694, %v3706
    %v3708 = vpop.f32.mrf.mxu0
    %3709 = vdwg.mxu0
    %3710 = vmatpush.bf16.msra.mxu0 %v2698
    %3711 = vmatpush.bf16.msra.mxu0 %v2694
    %3712 = vmatpush.bf16.msra.mxu0 %v2690
    %3713 = vmatpush.bf16.msra.mxu0 %v2686
    %3714 = vmatpush.bf16.msra.mxu0 %v2682
    %3715 = vmatpush.bf16.msra.mxu0 %v2678
    %3716 = vmatpush.bf16.msra.mxu0 %v2674
    %3717 = vmatpush.bf16.msra.mxu0 %v2670
    %3718 = vmatmul.bf16.gmra.mxu0 %v122
    %v3719 = vpop.f32.mrf.mxu0
    %v3720 = vadd.f32 %v3707, %v3719
    %v3721 = vpop.f32.mrf.mxu0
    %3722 = vdwg.mxu0
    %3723 = vmatpush.bf16.msra.mxu0 %v2730
    %3724 = vmatpush.bf16.msra.mxu0 %v2726
    %3725 = vmatpush.bf16.msra.mxu0 %v2722
    %3726 = vmatpush.bf16.msra.mxu0 %v2718
    %3727 = vmatpush.bf16.msra.mxu0 %v2714
    %3728 = vmatpush.bf16.msra.mxu0 %v2710
    %3729 = vmatpush.bf16.msra.mxu0 %v2706
    %3730 = vmatpush.bf16.msra.mxu0 %v2702
    %3731 = vmatmul.bf16.gmra.mxu0 %v123
    %v3732 = vpop.f32.mrf.mxu0
    %v3733 = vadd.f32 %v3720, %v3732
    %v3734 = vpop.f32.mrf.mxu0
    %3735 = vdwg.mxu0
    %3736 = vmatpush.bf16.msra.mxu0 %v2762
    %3737 = vmatpush.bf16.msra.mxu0 %v2758
    %3738 = vmatpush.bf16.msra.mxu0 %v2754
    %3739 = vmatpush.bf16.msra.mxu0 %v2750
    %3740 = vmatpush.bf16.msra.mxu0 %v2746
    %3741 = vmatpush.bf16.msra.mxu0 %v2742
    %3742 = vmatpush.bf16.msra.mxu0 %v2738
    %3743 = vmatpush.bf16.msra.mxu0 %v2734
    %3744 = vmatmul.bf16.gmra.mxu0 %v124
    %v3745 = vpop.f32.mrf.mxu0
    %v3746 = vadd.f32 %v3733, %v3745
    %v3747 = vpop.f32.mrf.mxu0
    %3748 = vdwg.mxu0
    %3749 = vmatpush.bf16.msra.mxu0 %v2794
    %3750 = vmatpush.bf16.msra.mxu0 %v2790
    %3751 = vmatpush.bf16.msra.mxu0 %v2786
    %3752 = vmatpush.bf16.msra.mxu0 %v2782
    %3753 = vmatpush.bf16.msra.mxu0 %v2778
    %3754 = vmatpush.bf16.msra.mxu0 %v2774
    %3755 = vmatpush.bf16.msra.mxu0 %v2770
    %3756 = vmatpush.bf16.msra.mxu0 %v2766
    %3757 = vmatmul.bf16.gmra.mxu0 %v125
    %v3758 = vpop.f32.mrf.mxu0
    %v3759 = vadd.f32 %v3746, %v3758
    %v3760 = vpop.f32.mrf.mxu0
    %3761 = vdwg.mxu0
    %3762 = vmatpush.bf16.msra.mxu0 %v2826
    %3763 = vmatpush.bf16.msra.mxu0 %v2822
    %3764 = vmatpush.bf16.msra.mxu0 %v2818
    %3765 = vmatpush.bf16.msra.mxu0 %v2814
    %3766 = vmatpush.bf16.msra.mxu0 %v2810
    %3767 = vmatpush.bf16.msra.mxu0 %v2806
    %3768 = vmatpush.bf16.msra.mxu0 %v2802
    %3769 = vmatpush.bf16.msra.mxu0 %v2798
    %3770 = vmatmul.bf16.gmra.mxu0 %v126
    %v3771 = vpop.f32.mrf.mxu0
    %v3772 = vadd.f32 %v3759, %v3771
    %v3773 = vpop.f32.mrf.mxu0
    %3774 = vdwg.mxu0
    %3775 = vmatpush.bf16.msra.mxu0 %v2858
    %3776 = vmatpush.bf16.msra.mxu0 %v2854
    %3777 = vmatpush.bf16.msra.mxu0 %v2850
    %3778 = vmatpush.bf16.msra.mxu0 %v2846
    %3779 = vmatpush.bf16.msra.mxu0 %v2842
    %3780 = vmatpush.bf16.msra.mxu0 %v2838
    %3781 = vmatpush.bf16.msra.mxu0 %v2834
    %3782 = vmatpush.bf16.msra.mxu0 %v2830
    %3783 = vmatmul.bf16.gmra.mxu0 %v127
    %v3784 = vpop.f32.mrf.mxu0
    %v3785 = vadd.f32 %v3772, %v3784
    %v3786 = vpop.f32.mrf.mxu0
    %3787 = vdwg.mxu0
    %3788 = vmatpush.bf16.msra.mxu0 %v2890
    %3789 = vmatpush.bf16.msra.mxu0 %v2886
    %3790 = vmatpush.bf16.msra.mxu0 %v2882
    %3791 = vmatpush.bf16.msra.mxu0 %v2878
    %3792 = vmatpush.bf16.msra.mxu0 %v2874
    %3793 = vmatpush.bf16.msra.mxu0 %v2870
    %3794 = vmatpush.bf16.msra.mxu0 %v2866
    %3795 = vmatpush.bf16.msra.mxu0 %v2862
    %3796 = vmatmul.bf16.gmra.mxu0 %v128
    %v3797 = vpop.f32.mrf.mxu0
    %v3798 = vadd.f32 %v3785, %v3797
    %v3799 = vpop.f32.mrf.mxu0
    %3800 = vdwg.mxu0
    %3801 = vmatpush.bf16.msra.mxu0 %v2922
    %3802 = vmatpush.bf16.msra.mxu0 %v2918
    %3803 = vmatpush.bf16.msra.mxu0 %v2914
    %3804 = vmatpush.bf16.msra.mxu0 %v2910
    %3805 = vmatpush.bf16.msra.mxu0 %v2906
    %3806 = vmatpush.bf16.msra.mxu0 %v2902
    %3807 = vmatpush.bf16.msra.mxu0 %v2898
    %3808 = vmatpush.bf16.msra.mxu0 %v2894
    %3809 = vmatmul.bf16.gmra.mxu0 %v129
    %v3810 = vpop.f32.mrf.mxu0
    %v3811 = vadd.f32 %v3798, %v3810
    %v3812 = vpop.f32.mrf.mxu0
    %3813 = vdwg.mxu0
    %3814 = vmatpush.bf16.msra.mxu0 %v2954
    %3815 = vmatpush.bf16.msra.mxu0 %v2950
    %3816 = vmatpush.bf16.msra.mxu0 %v2946
    %3817 = vmatpush.bf16.msra.mxu0 %v2942
    %3818 = vmatpush.bf16.msra.mxu0 %v2938
    %3819 = vmatpush.bf16.msra.mxu0 %v2934
    %3820 = vmatpush.bf16.msra.mxu0 %v2930
    %3821 = vmatpush.bf16.msra.mxu0 %v2926
    %3822 = vmatmul.bf16.gmra.mxu0 %v130
    %v3823 = vpop.f32.mrf.mxu0
    %v3824 = vadd.f32 %v3811, %v3823
    %v3825 = vpop.f32.mrf.mxu0
    %3826 = vdwg.mxu0
    %3827 = vmatpush.bf16.msra.mxu0 %v2986
    %3828 = vmatpush.bf16.msra.mxu0 %v2982
    %3829 = vmatpush.bf16.msra.mxu0 %v2978
    %3830 = vmatpush.bf16.msra.mxu0 %v2974
    %3831 = vmatpush.bf16.msra.mxu0 %v2970
    %3832 = vmatpush.bf16.msra.mxu0 %v2966
    %3833 = vmatpush.bf16.msra.mxu0 %v2962
    %3834 = vmatpush.bf16.msra.mxu0 %v2958
    %3835 = vmatmul.bf16.gmra.mxu0 %v131
    %v3836 = vpop.f32.mrf.mxu0
    %v3837 = vadd.f32 %v3824, %v3836
    %v3838 = vpop.f32.mrf.mxu0
    %3839 = vdwg.mxu0
    %3840 = vmatpush.bf16.msra.mxu0 %v3018
    %3841 = vmatpush.bf16.msra.mxu0 %v3014
    %3842 = vmatpush.bf16.msra.mxu0 %v3010
    %3843 = vmatpush.bf16.msra.mxu0 %v3006
    %3844 = vmatpush.bf16.msra.mxu0 %v3002
    %3845 = vmatpush.bf16.msra.mxu0 %v2998
    %3846 = vmatpush.bf16.msra.mxu0 %v2994
    %3847 = vmatpush.bf16.msra.mxu0 %v2990
    %3848 = vmatmul.bf16.gmra.mxu0 %v132
    %v3849 = vpop.f32.mrf.mxu0
    %v3850 = vadd.f32 %v3837, %v3849
    %v3851 = vpop.f32.mrf.mxu0
    %3852 = vdwg.mxu0
    %3853 = vmatpush.bf16.msra.mxu0 0
    %3854 = vmatpush.bf16.msra.mxu0 0
    %3855 = vmatpush.bf16.msra.mxu0 0
    %3856 = vmatpush.bf16.msra.mxu0 0
    %3857 = vmatpush.bf16.msra.mxu0 0
    %3858 = vmatpush.bf16.msra.mxu0 0
    %3859 = vmatpush.bf16.msra.mxu0 0
    %3860 = vmatpush.bf16.msra.mxu0 %v3608
    %3861 = vmatmul.bf16.gmra.mxu0 %v3604
    %v3862 = vpop.f32.mrf.mxu0
    %v3863 = vadd.f32 %v3850, %v3862
    %v3864 = vpop.f32.mrf.mxu0
    %3865 = vdwg.mxu0
    %3866 = vmatpush.bf16.msra.mxu0 %v2475
    %3867 = vmatpush.bf16.msra.mxu0 %v2471
    %3868 = vmatpush.bf16.msra.mxu0 %v2467
    %3869 = vmatpush.bf16.msra.mxu0 %v2463
    %3870 = vmatpush.bf16.msra.mxu0 %v2459
    %3871 = vmatpush.bf16.msra.mxu0 %v2455
    %3872 = vmatpush.bf16.msra.mxu0 %v2451
    %3873 = vmatpush.bf16.msra.mxu0 %v2447
    %3874 = vmatmul.bf16.gmra.mxu0 %v115
    %v3875 = vpop.f32.mrf.mxu0
    %v3876 = vadd.f32 0.0, %v3875
    %v3877 = vpop.f32.mrf.mxu0
    %3878 = vdwg.mxu0
    %3879 = vmatpush.bf16.msra.mxu0 %v2507
    %3880 = vmatpush.bf16.msra.mxu0 %v2503
    %3881 = vmatpush.bf16.msra.mxu0 %v2499
    %3882 = vmatpush.bf16.msra.mxu0 %v2495
    %3883 = vmatpush.bf16.msra.mxu0 %v2491
    %3884 = vmatpush.bf16.msra.mxu0 %v2487
    %3885 = vmatpush.bf16.msra.mxu0 %v2483
    %3886 = vmatpush.bf16.msra.mxu0 %v2479
    %3887 = vmatmul.bf16.gmra.mxu0 %v116
    %v3888 = vpop.f32.mrf.mxu0
    %v3889 = vadd.f32 %v3876, %v3888
    %v3890 = vpop.f32.mrf.mxu0
    %3891 = vdwg.mxu0
    %3892 = vmatpush.bf16.msra.mxu0 %v2539
    %3893 = vmatpush.bf16.msra.mxu0 %v2535
    %3894 = vmatpush.bf16.msra.mxu0 %v2531
    %3895 = vmatpush.bf16.msra.mxu0 %v2527
    %3896 = vmatpush.bf16.msra.mxu0 %v2523
    %3897 = vmatpush.bf16.msra.mxu0 %v2519
    %3898 = vmatpush.bf16.msra.mxu0 %v2515
    %3899 = vmatpush.bf16.msra.mxu0 %v2511
    %3900 = vmatmul.bf16.gmra.mxu0 %v117
    %v3901 = vpop.f32.mrf.mxu0
    %v3902 = vadd.f32 %v3889, %v3901
    %v3903 = vpop.f32.mrf.mxu0
    %3904 = vdwg.mxu0
    %3905 = vmatpush.bf16.msra.mxu0 %v2571
    %3906 = vmatpush.bf16.msra.mxu0 %v2567
    %3907 = vmatpush.bf16.msra.mxu0 %v2563
    %3908 = vmatpush.bf16.msra.mxu0 %v2559
    %3909 = vmatpush.bf16.msra.mxu0 %v2555
    %3910 = vmatpush.bf16.msra.mxu0 %v2551
    %3911 = vmatpush.bf16.msra.mxu0 %v2547
    %3912 = vmatpush.bf16.msra.mxu0 %v2543
    %3913 = vmatmul.bf16.gmra.mxu0 %v118
    %v3914 = vpop.f32.mrf.mxu0
    %v3915 = vadd.f32 %v3902, %v3914
    %v3916 = vpop.f32.mrf.mxu0
    %3917 = vdwg.mxu0
    %3918 = vmatpush.bf16.msra.mxu0 %v2603
    %3919 = vmatpush.bf16.msra.mxu0 %v2599
    %3920 = vmatpush.bf16.msra.mxu0 %v2595
    %3921 = vmatpush.bf16.msra.mxu0 %v2591
    %3922 = vmatpush.bf16.msra.mxu0 %v2587
    %3923 = vmatpush.bf16.msra.mxu0 %v2583
    %3924 = vmatpush.bf16.msra.mxu0 %v2579
    %3925 = vmatpush.bf16.msra.mxu0 %v2575
    %3926 = vmatmul.bf16.gmra.mxu0 %v119
    %v3927 = vpop.f32.mrf.mxu0
    %v3928 = vadd.f32 %v3915, %v3927
    %v3929 = vpop.f32.mrf.mxu0
    %3930 = vdwg.mxu0
    %3931 = vmatpush.bf16.msra.mxu0 %v2635
    %3932 = vmatpush.bf16.msra.mxu0 %v2631
    %3933 = vmatpush.bf16.msra.mxu0 %v2627
    %3934 = vmatpush.bf16.msra.mxu0 %v2623
    %3935 = vmatpush.bf16.msra.mxu0 %v2619
    %3936 = vmatpush.bf16.msra.mxu0 %v2615
    %3937 = vmatpush.bf16.msra.mxu0 %v2611
    %3938 = vmatpush.bf16.msra.mxu0 %v2607
    %3939 = vmatmul.bf16.gmra.mxu0 %v120
    %v3940 = vpop.f32.mrf.mxu0
    %v3941 = vadd.f32 %v3928, %v3940
    %v3942 = vpop.f32.mrf.mxu0
    %3943 = vdwg.mxu0
    %3944 = vmatpush.bf16.msra.mxu0 %v2667
    %3945 = vmatpush.bf16.msra.mxu0 %v2663
    %3946 = vmatpush.bf16.msra.mxu0 %v2659
    %3947 = vmatpush.bf16.msra.mxu0 %v2655
    %3948 = vmatpush.bf16.msra.mxu0 %v2651
    %3949 = vmatpush.bf16.msra.mxu0 %v2647
    %3950 = vmatpush.bf16.msra.mxu0 %v2643
    %3951 = vmatpush.bf16.msra.mxu0 %v2639
    %3952 = vmatmul.bf16.gmra.mxu0 %v121
    %v3953 = vpop.f32.mrf.mxu0
    %v3954 = vadd.f32 %v3941, %v3953
    %v3955 = vpop.f32.mrf.mxu0
    %3956 = vdwg.mxu0
    %3957 = vmatpush.bf16.msra.mxu0 %v2699
    %3958 = vmatpush.bf16.msra.mxu0 %v2695
    %3959 = vmatpush.bf16.msra.mxu0 %v2691
    %3960 = vmatpush.bf16.msra.mxu0 %v2687
    %3961 = vmatpush.bf16.msra.mxu0 %v2683
    %3962 = vmatpush.bf16.msra.mxu0 %v2679
    %3963 = vmatpush.bf16.msra.mxu0 %v2675
    %3964 = vmatpush.bf16.msra.mxu0 %v2671
    %3965 = vmatmul.bf16.gmra.mxu0 %v122
    %v3966 = vpop.f32.mrf.mxu0
    %v3967 = vadd.f32 %v3954, %v3966
    %v3968 = vpop.f32.mrf.mxu0
    %3969 = vdwg.mxu0
    %3970 = vmatpush.bf16.msra.mxu0 %v2731
    %3971 = vmatpush.bf16.msra.mxu0 %v2727
    %3972 = vmatpush.bf16.msra.mxu0 %v2723
    %3973 = vmatpush.bf16.msra.mxu0 %v2719
    %3974 = vmatpush.bf16.msra.mxu0 %v2715
    %3975 = vmatpush.bf16.msra.mxu0 %v2711
    %3976 = vmatpush.bf16.msra.mxu0 %v2707
    %3977 = vmatpush.bf16.msra.mxu0 %v2703
    %3978 = vmatmul.bf16.gmra.mxu0 %v123
    %v3979 = vpop.f32.mrf.mxu0
    %v3980 = vadd.f32 %v3967, %v3979
    %v3981 = vpop.f32.mrf.mxu0
    %3982 = vdwg.mxu0
    %3983 = vmatpush.bf16.msra.mxu0 %v2763
    %3984 = vmatpush.bf16.msra.mxu0 %v2759
    %3985 = vmatpush.bf16.msra.mxu0 %v2755
    %3986 = vmatpush.bf16.msra.mxu0 %v2751
    %3987 = vmatpush.bf16.msra.mxu0 %v2747
    %3988 = vmatpush.bf16.msra.mxu0 %v2743
    %3989 = vmatpush.bf16.msra.mxu0 %v2739
    %3990 = vmatpush.bf16.msra.mxu0 %v2735
    %3991 = vmatmul.bf16.gmra.mxu0 %v124
    %v3992 = vpop.f32.mrf.mxu0
    %v3993 = vadd.f32 %v3980, %v3992
    %v3994 = vpop.f32.mrf.mxu0
    %3995 = vdwg.mxu0
    %3996 = vmatpush.bf16.msra.mxu0 %v2795
    %3997 = vmatpush.bf16.msra.mxu0 %v2791
    %3998 = vmatpush.bf16.msra.mxu0 %v2787
    %3999 = vmatpush.bf16.msra.mxu0 %v2783
    %4000 = vmatpush.bf16.msra.mxu0 %v2779
    %4001 = vmatpush.bf16.msra.mxu0 %v2775
    %4002 = vmatpush.bf16.msra.mxu0 %v2771
    %4003 = vmatpush.bf16.msra.mxu0 %v2767
    %4004 = vmatmul.bf16.gmra.mxu0 %v125
    %v4005 = vpop.f32.mrf.mxu0
    %v4006 = vadd.f32 %v3993, %v4005
    %v4007 = vpop.f32.mrf.mxu0
    %4008 = vdwg.mxu0
    %4009 = vmatpush.bf16.msra.mxu0 %v2827
    %4010 = vmatpush.bf16.msra.mxu0 %v2823
    %4011 = vmatpush.bf16.msra.mxu0 %v2819
    %4012 = vmatpush.bf16.msra.mxu0 %v2815
    %4013 = vmatpush.bf16.msra.mxu0 %v2811
    %4014 = vmatpush.bf16.msra.mxu0 %v2807
    %4015 = vmatpush.bf16.msra.mxu0 %v2803
    %4016 = vmatpush.bf16.msra.mxu0 %v2799
    %4017 = vmatmul.bf16.gmra.mxu0 %v126
    %v4018 = vpop.f32.mrf.mxu0
    %v4019 = vadd.f32 %v4006, %v4018
    %v4020 = vpop.f32.mrf.mxu0
    %4021 = vdwg.mxu0
    %4022 = vmatpush.bf16.msra.mxu0 %v2859
    %4023 = vmatpush.bf16.msra.mxu0 %v2855
    %4024 = vmatpush.bf16.msra.mxu0 %v2851
    %4025 = vmatpush.bf16.msra.mxu0 %v2847
    %4026 = vmatpush.bf16.msra.mxu0 %v2843
    %4027 = vmatpush.bf16.msra.mxu0 %v2839
    %4028 = vmatpush.bf16.msra.mxu0 %v2835
    %4029 = vmatpush.bf16.msra.mxu0 %v2831
    %4030 = vmatmul.bf16.gmra.mxu0 %v127
    %v4031 = vpop.f32.mrf.mxu0
    %v4032 = vadd.f32 %v4019, %v4031
    %v4033 = vpop.f32.mrf.mxu0
    %4034 = vdwg.mxu0
    %4035 = vmatpush.bf16.msra.mxu0 %v2891
    %4036 = vmatpush.bf16.msra.mxu0 %v2887
    %4037 = vmatpush.bf16.msra.mxu0 %v2883
    %4038 = vmatpush.bf16.msra.mxu0 %v2879
    %4039 = vmatpush.bf16.msra.mxu0 %v2875
    %4040 = vmatpush.bf16.msra.mxu0 %v2871
    %4041 = vmatpush.bf16.msra.mxu0 %v2867
    %4042 = vmatpush.bf16.msra.mxu0 %v2863
    %4043 = vmatmul.bf16.gmra.mxu0 %v128
    %v4044 = vpop.f32.mrf.mxu0
    %v4045 = vadd.f32 %v4032, %v4044
    %v4046 = vpop.f32.mrf.mxu0
    %4047 = vdwg.mxu0
    %4048 = vmatpush.bf16.msra.mxu0 %v2923
    %4049 = vmatpush.bf16.msra.mxu0 %v2919
    %4050 = vmatpush.bf16.msra.mxu0 %v2915
    %4051 = vmatpush.bf16.msra.mxu0 %v2911
    %4052 = vmatpush.bf16.msra.mxu0 %v2907
    %4053 = vmatpush.bf16.msra.mxu0 %v2903
    %4054 = vmatpush.bf16.msra.mxu0 %v2899
    %4055 = vmatpush.bf16.msra.mxu0 %v2895
    %4056 = vmatmul.bf16.gmra.mxu0 %v129
    %v4057 = vpop.f32.mrf.mxu0
    %v4058 = vadd.f32 %v4045, %v4057
    %v4059 = vpop.f32.mrf.mxu0
    %4060 = vdwg.mxu0
    %4061 = vmatpush.bf16.msra.mxu0 %v2955
    %4062 = vmatpush.bf16.msra.mxu0 %v2951
    %4063 = vmatpush.bf16.msra.mxu0 %v2947
    %4064 = vmatpush.bf16.msra.mxu0 %v2943
    %4065 = vmatpush.bf16.msra.mxu0 %v2939
    %4066 = vmatpush.bf16.msra.mxu0 %v2935
    %4067 = vmatpush.bf16.msra.mxu0 %v2931
    %4068 = vmatpush.bf16.msra.mxu0 %v2927
    %4069 = vmatmul.bf16.gmra.mxu0 %v130
    %v4070 = vpop.f32.mrf.mxu0
    %v4071 = vadd.f32 %v4058, %v4070
    %v4072 = vpop.f32.mrf.mxu0
    %4073 = vdwg.mxu0
    %4074 = vmatpush.bf16.msra.mxu0 %v2987
    %4075 = vmatpush.bf16.msra.mxu0 %v2983
    %4076 = vmatpush.bf16.msra.mxu0 %v2979
    %4077 = vmatpush.bf16.msra.mxu0 %v2975
    %4078 = vmatpush.bf16.msra.mxu0 %v2971
    %4079 = vmatpush.bf16.msra.mxu0 %v2967
    %4080 = vmatpush.bf16.msra.mxu0 %v2963
    %4081 = vmatpush.bf16.msra.mxu0 %v2959
    %4082 = vmatmul.bf16.gmra.mxu0 %v131
    %v4083 = vpop.f32.mrf.mxu0
    %v4084 = vadd.f32 %v4071, %v4083
    %v4085 = vpop.f32.mrf.mxu0
    %4086 = vdwg.mxu0
    %4087 = vmatpush.bf16.msra.mxu0 %v3019
    %4088 = vmatpush.bf16.msra.mxu0 %v3015
    %4089 = vmatpush.bf16.msra.mxu0 %v3011
    %4090 = vmatpush.bf16.msra.mxu0 %v3007
    %4091 = vmatpush.bf16.msra.mxu0 %v3003
    %4092 = vmatpush.bf16.msra.mxu0 %v2999
    %4093 = vmatpush.bf16.msra.mxu0 %v2995
    %4094 = vmatpush.bf16.msra.mxu0 %v2991
    %4095 = vmatmul.bf16.gmra.mxu0 %v132
    %v4096 = vpop.f32.mrf.mxu0
    %v4097 = vadd.f32 %v4084, %v4096
    %v4098 = vpop.f32.mrf.mxu0
    %4099 = vdwg.mxu0
    %4100 = vmatpush.bf16.msra.mxu0 0
    %4101 = vmatpush.bf16.msra.mxu0 0
    %4102 = vmatpush.bf16.msra.mxu0 0
    %4103 = vmatpush.bf16.msra.mxu0 0
    %4104 = vmatpush.bf16.msra.mxu0 0
    %4105 = vmatpush.bf16.msra.mxu0 0
    %4106 = vmatpush.bf16.msra.mxu0 0
    %4107 = vmatpush.bf16.msra.mxu0 %v3611
    %4108 = vmatmul.bf16.gmra.mxu0 %v3604
    %v4109 = vpop.f32.mrf.mxu0
    %v4110 = vadd.f32 %v4097, %v4109
    %v4111 = vpop.f32.mrf.mxu0
    %4112 = vdwg.mxu0
    %4113 = vmatpush.bf16.msra.mxu0 %v2476
    %4114 = vmatpush.bf16.msra.mxu0 %v2472
    %4115 = vmatpush.bf16.msra.mxu0 %v2468
    %4116 = vmatpush.bf16.msra.mxu0 %v2464
    %4117 = vmatpush.bf16.msra.mxu0 %v2460
    %4118 = vmatpush.bf16.msra.mxu0 %v2456
    %4119 = vmatpush.bf16.msra.mxu0 %v2452
    %4120 = vmatpush.bf16.msra.mxu0 %v2448
    %4121 = vmatmul.bf16.gmra.mxu0 %v115
    %v4122 = vpop.f32.mrf.mxu0
    %v4123 = vadd.f32 0.0, %v4122
    %v4124 = vpop.f32.mrf.mxu0
    %4125 = vdwg.mxu0
    %4126 = vmatpush.bf16.msra.mxu0 %v2508
    %4127 = vmatpush.bf16.msra.mxu0 %v2504
    %4128 = vmatpush.bf16.msra.mxu0 %v2500
    %4129 = vmatpush.bf16.msra.mxu0 %v2496
    %4130 = vmatpush.bf16.msra.mxu0 %v2492
    %4131 = vmatpush.bf16.msra.mxu0 %v2488
    %4132 = vmatpush.bf16.msra.mxu0 %v2484
    %4133 = vmatpush.bf16.msra.mxu0 %v2480
    %4134 = vmatmul.bf16.gmra.mxu0 %v116
    %v4135 = vpop.f32.mrf.mxu0
    %v4136 = vadd.f32 %v4123, %v4135
    %v4137 = vpop.f32.mrf.mxu0
    %4138 = vdwg.mxu0
    %4139 = vmatpush.bf16.msra.mxu0 %v2540
    %4140 = vmatpush.bf16.msra.mxu0 %v2536
    %4141 = vmatpush.bf16.msra.mxu0 %v2532
    %4142 = vmatpush.bf16.msra.mxu0 %v2528
    %4143 = vmatpush.bf16.msra.mxu0 %v2524
    %4144 = vmatpush.bf16.msra.mxu0 %v2520
    %4145 = vmatpush.bf16.msra.mxu0 %v2516
    %4146 = vmatpush.bf16.msra.mxu0 %v2512
    %4147 = vmatmul.bf16.gmra.mxu0 %v117
    %v4148 = vpop.f32.mrf.mxu0
    %v4149 = vadd.f32 %v4136, %v4148
    %v4150 = vpop.f32.mrf.mxu0
    %4151 = vdwg.mxu0
    %4152 = vmatpush.bf16.msra.mxu0 %v2572
    %4153 = vmatpush.bf16.msra.mxu0 %v2568
    %4154 = vmatpush.bf16.msra.mxu0 %v2564
    %4155 = vmatpush.bf16.msra.mxu0 %v2560
    %4156 = vmatpush.bf16.msra.mxu0 %v2556
    %4157 = vmatpush.bf16.msra.mxu0 %v2552
    %4158 = vmatpush.bf16.msra.mxu0 %v2548
    %4159 = vmatpush.bf16.msra.mxu0 %v2544
    %4160 = vmatmul.bf16.gmra.mxu0 %v118
    %v4161 = vpop.f32.mrf.mxu0
    %v4162 = vadd.f32 %v4149, %v4161
    %v4163 = vpop.f32.mrf.mxu0
    %4164 = vdwg.mxu0
    %4165 = vmatpush.bf16.msra.mxu0 %v2604
    %4166 = vmatpush.bf16.msra.mxu0 %v2600
    %4167 = vmatpush.bf16.msra.mxu0 %v2596
    %4168 = vmatpush.bf16.msra.mxu0 %v2592
    %4169 = vmatpush.bf16.msra.mxu0 %v2588
    %4170 = vmatpush.bf16.msra.mxu0 %v2584
    %4171 = vmatpush.bf16.msra.mxu0 %v2580
    %4172 = vmatpush.bf16.msra.mxu0 %v2576
    %4173 = vmatmul.bf16.gmra.mxu0 %v119
    %v4174 = vpop.f32.mrf.mxu0
    %v4175 = vadd.f32 %v4162, %v4174
    %v4176 = vpop.f32.mrf.mxu0
    %4177 = vdwg.mxu0
    %4178 = vmatpush.bf16.msra.mxu0 %v2636
    %4179 = vmatpush.bf16.msra.mxu0 %v2632
    %4180 = vmatpush.bf16.msra.mxu0 %v2628
    %4181 = vmatpush.bf16.msra.mxu0 %v2624
    %4182 = vmatpush.bf16.msra.mxu0 %v2620
    %4183 = vmatpush.bf16.msra.mxu0 %v2616
    %4184 = vmatpush.bf16.msra.mxu0 %v2612
    %4185 = vmatpush.bf16.msra.mxu0 %v2608
    %4186 = vmatmul.bf16.gmra.mxu0 %v120
    %v4187 = vpop.f32.mrf.mxu0
    %v4188 = vadd.f32 %v4175, %v4187
    %v4189 = vpop.f32.mrf.mxu0
    %4190 = vdwg.mxu0
    %4191 = vmatpush.bf16.msra.mxu0 %v2668
    %4192 = vmatpush.bf16.msra.mxu0 %v2664
    %4193 = vmatpush.bf16.msra.mxu0 %v2660
    %4194 = vmatpush.bf16.msra.mxu0 %v2656
    %4195 = vmatpush.bf16.msra.mxu0 %v2652
    %4196 = vmatpush.bf16.msra.mxu0 %v2648
    %4197 = vmatpush.bf16.msra.mxu0 %v2644
    %4198 = vmatpush.bf16.msra.mxu0 %v2640
    %4199 = vmatmul.bf16.gmra.mxu0 %v121
    %v4200 = vpop.f32.mrf.mxu0
    %v4201 = vadd.f32 %v4188, %v4200
    %v4202 = vpop.f32.mrf.mxu0
    %4203 = vdwg.mxu0
    %4204 = vmatpush.bf16.msra.mxu0 %v2700
    %4205 = vmatpush.bf16.msra.mxu0 %v2696
    %4206 = vmatpush.bf16.msra.mxu0 %v2692
    %4207 = vmatpush.bf16.msra.mxu0 %v2688
    %4208 = vmatpush.bf16.msra.mxu0 %v2684
    %4209 = vmatpush.bf16.msra.mxu0 %v2680
    %4210 = vmatpush.bf16.msra.mxu0 %v2676
    %4211 = vmatpush.bf16.msra.mxu0 %v2672
    %4212 = vmatmul.bf16.gmra.mxu0 %v122
    %v4213 = vpop.f32.mrf.mxu0
    %v4214 = vadd.f32 %v4201, %v4213
    %v4215 = vpop.f32.mrf.mxu0
    %4216 = vdwg.mxu0
    %4217 = vmatpush.bf16.msra.mxu0 %v2732
    %4218 = vmatpush.bf16.msra.mxu0 %v2728
    %4219 = vmatpush.bf16.msra.mxu0 %v2724
    %4220 = vmatpush.bf16.msra.mxu0 %v2720
    %4221 = vmatpush.bf16.msra.mxu0 %v2716
    %4222 = vmatpush.bf16.msra.mxu0 %v2712
    %4223 = vmatpush.bf16.msra.mxu0 %v2708
    %4224 = vmatpush.bf16.msra.mxu0 %v2704
    %4225 = vmatmul.bf16.gmra.mxu0 %v123
    %v4226 = vpop.f32.mrf.mxu0
    %v4227 = vadd.f32 %v4214, %v4226
    %v4228 = vpop.f32.mrf.mxu0
    %4229 = vdwg.mxu0
    %4230 = vmatpush.bf16.msra.mxu0 %v2764
    %4231 = vmatpush.bf16.msra.mxu0 %v2760
    %4232 = vmatpush.bf16.msra.mxu0 %v2756
    %4233 = vmatpush.bf16.msra.mxu0 %v2752
    %4234 = vmatpush.bf16.msra.mxu0 %v2748
    %4235 = vmatpush.bf16.msra.mxu0 %v2744
    %4236 = vmatpush.bf16.msra.mxu0 %v2740
    %4237 = vmatpush.bf16.msra.mxu0 %v2736
    %4238 = vmatmul.bf16.gmra.mxu0 %v124
    %v4239 = vpop.f32.mrf.mxu0
    %v4240 = vadd.f32 %v4227, %v4239
    %v4241 = vpop.f32.mrf.mxu0
    %4242 = vdwg.mxu0
    %4243 = vmatpush.bf16.msra.mxu0 %v2796
    %4244 = vmatpush.bf16.msra.mxu0 %v2792
    %4245 = vmatpush.bf16.msra.mxu0 %v2788
    %4246 = vmatpush.bf16.msra.mxu0 %v2784
    %4247 = vmatpush.bf16.msra.mxu0 %v2780
    %4248 = vmatpush.bf16.msra.mxu0 %v2776
    %4249 = vmatpush.bf16.msra.mxu0 %v2772
    %4250 = vmatpush.bf16.msra.mxu0 %v2768
    %4251 = vmatmul.bf16.gmra.mxu0 %v125
    %v4252 = vpop.f32.mrf.mxu0
    %v4253 = vadd.f32 %v4240, %v4252
    %v4254 = vpop.f32.mrf.mxu0
    %4255 = vdwg.mxu0
    %4256 = vmatpush.bf16.msra.mxu0 %v2828
    %4257 = vmatpush.bf16.msra.mxu0 %v2824
    %4258 = vmatpush.bf16.msra.mxu0 %v2820
    %4259 = vmatpush.bf16.msra.mxu0 %v2816
    %4260 = vmatpush.bf16.msra.mxu0 %v2812
    %4261 = vmatpush.bf16.msra.mxu0 %v2808
    %4262 = vmatpush.bf16.msra.mxu0 %v2804
    %4263 = vmatpush.bf16.msra.mxu0 %v2800
    %4264 = vmatmul.bf16.gmra.mxu0 %v126
    %v4265 = vpop.f32.mrf.mxu0
    %v4266 = vadd.f32 %v4253, %v4265
    %v4267 = vpop.f32.mrf.mxu0
    %4268 = vdwg.mxu0
    %4269 = vmatpush.bf16.msra.mxu0 %v2860
    %4270 = vmatpush.bf16.msra.mxu0 %v2856
    %4271 = vmatpush.bf16.msra.mxu0 %v2852
    %4272 = vmatpush.bf16.msra.mxu0 %v2848
    %4273 = vmatpush.bf16.msra.mxu0 %v2844
    %4274 = vmatpush.bf16.msra.mxu0 %v2840
    %4275 = vmatpush.bf16.msra.mxu0 %v2836
    %4276 = vmatpush.bf16.msra.mxu0 %v2832
    %4277 = vmatmul.bf16.gmra.mxu0 %v127
    %v4278 = vpop.f32.mrf.mxu0
    %v4279 = vadd.f32 %v4266, %v4278
    %v4280 = vpop.f32.mrf.mxu0
    %4281 = vdwg.mxu0
    %4282 = vmatpush.bf16.msra.mxu0 %v2892
    %4283 = vmatpush.bf16.msra.mxu0 %v2888
    %4284 = vmatpush.bf16.msra.mxu0 %v2884
    %4285 = vmatpush.bf16.msra.mxu0 %v2880
    %4286 = vmatpush.bf16.msra.mxu0 %v2876
    %4287 = vmatpush.bf16.msra.mxu0 %v2872
    %4288 = vmatpush.bf16.msra.mxu0 %v2868
    %4289 = vmatpush.bf16.msra.mxu0 %v2864
    %4290 = vmatmul.bf16.gmra.mxu0 %v128
    %v4291 = vpop.f32.mrf.mxu0
    %v4292 = vadd.f32 %v4279, %v4291
    %v4293 = vpop.f32.mrf.mxu0
    %4294 = vdwg.mxu0
    %4295 = vmatpush.bf16.msra.mxu0 %v2924
    %4296 = vmatpush.bf16.msra.mxu0 %v2920
    %4297 = vmatpush.bf16.msra.mxu0 %v2916
    %4298 = vmatpush.bf16.msra.mxu0 %v2912
    %4299 = vmatpush.bf16.msra.mxu0 %v2908
    %4300 = vmatpush.bf16.msra.mxu0 %v2904
    %4301 = vmatpush.bf16.msra.mxu0 %v2900
    %4302 = vmatpush.bf16.msra.mxu0 %v2896
    %4303 = vmatmul.bf16.gmra.mxu0 %v129
    %v4304 = vpop.f32.mrf.mxu0
    %v4305 = vadd.f32 %v4292, %v4304
    %v4306 = vpop.f32.mrf.mxu0
    %4307 = vdwg.mxu0
    %4308 = vmatpush.bf16.msra.mxu0 %v2956
    %4309 = vmatpush.bf16.msra.mxu0 %v2952
    %4310 = vmatpush.bf16.msra.mxu0 %v2948
    %4311 = vmatpush.bf16.msra.mxu0 %v2944
    %4312 = vmatpush.bf16.msra.mxu0 %v2940
    %4313 = vmatpush.bf16.msra.mxu0 %v2936
    %4314 = vmatpush.bf16.msra.mxu0 %v2932
    %4315 = vmatpush.bf16.msra.mxu0 %v2928
    %4316 = vmatmul.bf16.gmra.mxu0 %v130
    %v4317 = vpop.f32.mrf.mxu0
    %v4318 = vadd.f32 %v4305, %v4317
    %v4319 = vpop.f32.mrf.mxu0
    %4320 = vdwg.mxu0
    %4321 = vmatpush.bf16.msra.mxu0 %v2988
    %4322 = vmatpush.bf16.msra.mxu0 %v2984
    %4323 = vmatpush.bf16.msra.mxu0 %v2980
    %4324 = vmatpush.bf16.msra.mxu0 %v2976
    %4325 = vmatpush.bf16.msra.mxu0 %v2972
    %4326 = vmatpush.bf16.msra.mxu0 %v2968
    %4327 = vmatpush.bf16.msra.mxu0 %v2964
    %4328 = vmatpush.bf16.msra.mxu0 %v2960
    %4329 = vmatmul.bf16.gmra.mxu0 %v131
    %v4330 = vpop.f32.mrf.mxu0
    %v4331 = vadd.f32 %v4318, %v4330
    %v4332 = vpop.f32.mrf.mxu0
    %4333 = vdwg.mxu0
    %4334 = vmatpush.bf16.msra.mxu0 %v3020
    %4335 = vmatpush.bf16.msra.mxu0 %v3016
    %4336 = vmatpush.bf16.msra.mxu0 %v3012
    %4337 = vmatpush.bf16.msra.mxu0 %v3008
    %4338 = vmatpush.bf16.msra.mxu0 %v3004
    %4339 = vmatpush.bf16.msra.mxu0 %v3000
    %4340 = vmatpush.bf16.msra.mxu0 %v2996
    %4341 = vmatpush.bf16.msra.mxu0 %v2992
    %4342 = vmatmul.bf16.gmra.mxu0 %v132
    %v4343 = vpop.f32.mrf.mxu0
    %v4344 = vadd.f32 %v4331, %v4343
    %v4345 = vpop.f32.mrf.mxu0
    %4346 = vdwg.mxu0
    %4347 = vmatpush.bf16.msra.mxu0 0
    %4348 = vmatpush.bf16.msra.mxu0 0
    %4349 = vmatpush.bf16.msra.mxu0 0
    %4350 = vmatpush.bf16.msra.mxu0 0
    %4351 = vmatpush.bf16.msra.mxu0 0
    %4352 = vmatpush.bf16.msra.mxu0 0
    %4353 = vmatpush.bf16.msra.mxu0 0
    %4354 = vmatpush.bf16.msra.mxu0 %v3614
    %4355 = vmatmul.bf16.gmra.mxu0 %v3604
    %v4356 = vpop.f32.mrf.mxu0
    %v4357 = vadd.f32 %v4344, %v4356
    %v4358 = vpop.f32.mrf.mxu0
    %4359 = vdwg.mxu0
    %4360 = vmatpush.bf16.msra.mxu0 %v2477
    %4361 = vmatpush.bf16.msra.mxu0 %v2473
    %4362 = vmatpush.bf16.msra.mxu0 %v2469
    %4363 = vmatpush.bf16.msra.mxu0 %v2465
    %4364 = vmatpush.bf16.msra.mxu0 %v2461
    %4365 = vmatpush.bf16.msra.mxu0 %v2457
    %4366 = vmatpush.bf16.msra.mxu0 %v2453
    %4367 = vmatpush.bf16.msra.mxu0 %v2449
    %4368 = vmatmul.bf16.gmra.mxu0 %v115
    %v4369 = vpop.f32.mrf.mxu0
    %v4370 = vadd.f32 0.0, %v4369
    %v4371 = vpop.f32.mrf.mxu0
    %4372 = vdwg.mxu0
    %4373 = vmatpush.bf16.msra.mxu0 %v2509
    %4374 = vmatpush.bf16.msra.mxu0 %v2505
    %4375 = vmatpush.bf16.msra.mxu0 %v2501
    %4376 = vmatpush.bf16.msra.mxu0 %v2497
    %4377 = vmatpush.bf16.msra.mxu0 %v2493
    %4378 = vmatpush.bf16.msra.mxu0 %v2489
    %4379 = vmatpush.bf16.msra.mxu0 %v2485
    %4380 = vmatpush.bf16.msra.mxu0 %v2481
    %4381 = vmatmul.bf16.gmra.mxu0 %v116
    %v4382 = vpop.f32.mrf.mxu0
    %v4383 = vadd.f32 %v4370, %v4382
    %v4384 = vpop.f32.mrf.mxu0
    %4385 = vdwg.mxu0
    %4386 = vmatpush.bf16.msra.mxu0 %v2541
    %4387 = vmatpush.bf16.msra.mxu0 %v2537
    %4388 = vmatpush.bf16.msra.mxu0 %v2533
    %4389 = vmatpush.bf16.msra.mxu0 %v2529
    %4390 = vmatpush.bf16.msra.mxu0 %v2525
    %4391 = vmatpush.bf16.msra.mxu0 %v2521
    %4392 = vmatpush.bf16.msra.mxu0 %v2517
    %4393 = vmatpush.bf16.msra.mxu0 %v2513
    %4394 = vmatmul.bf16.gmra.mxu0 %v117
    %v4395 = vpop.f32.mrf.mxu0
    %v4396 = vadd.f32 %v4383, %v4395
    %v4397 = vpop.f32.mrf.mxu0
    %4398 = vdwg.mxu0
    %4399 = vmatpush.bf16.msra.mxu0 %v2573
    %4400 = vmatpush.bf16.msra.mxu0 %v2569
    %4401 = vmatpush.bf16.msra.mxu0 %v2565
    %4402 = vmatpush.bf16.msra.mxu0 %v2561
    %4403 = vmatpush.bf16.msra.mxu0 %v2557
    %4404 = vmatpush.bf16.msra.mxu0 %v2553
    %4405 = vmatpush.bf16.msra.mxu0 %v2549
    %4406 = vmatpush.bf16.msra.mxu0 %v2545
    %4407 = vmatmul.bf16.gmra.mxu0 %v118
    %v4408 = vpop.f32.mrf.mxu0
    %v4409 = vadd.f32 %v4396, %v4408
    %v4410 = vpop.f32.mrf.mxu0
    %4411 = vdwg.mxu0
    %4412 = vmatpush.bf16.msra.mxu0 %v2605
    %4413 = vmatpush.bf16.msra.mxu0 %v2601
    %4414 = vmatpush.bf16.msra.mxu0 %v2597
    %4415 = vmatpush.bf16.msra.mxu0 %v2593
    %4416 = vmatpush.bf16.msra.mxu0 %v2589
    %4417 = vmatpush.bf16.msra.mxu0 %v2585
    %4418 = vmatpush.bf16.msra.mxu0 %v2581
    %4419 = vmatpush.bf16.msra.mxu0 %v2577
    %4420 = vmatmul.bf16.gmra.mxu0 %v119
    %v4421 = vpop.f32.mrf.mxu0
    %v4422 = vadd.f32 %v4409, %v4421
    %v4423 = vpop.f32.mrf.mxu0
    %4424 = vdwg.mxu0
    %4425 = vmatpush.bf16.msra.mxu0 %v2637
    %4426 = vmatpush.bf16.msra.mxu0 %v2633
    %4427 = vmatpush.bf16.msra.mxu0 %v2629
    %4428 = vmatpush.bf16.msra.mxu0 %v2625
    %4429 = vmatpush.bf16.msra.mxu0 %v2621
    %4430 = vmatpush.bf16.msra.mxu0 %v2617
    %4431 = vmatpush.bf16.msra.mxu0 %v2613
    %4432 = vmatpush.bf16.msra.mxu0 %v2609
    %4433 = vmatmul.bf16.gmra.mxu0 %v120
    %v4434 = vpop.f32.mrf.mxu0
    %v4435 = vadd.f32 %v4422, %v4434
    %v4436 = vpop.f32.mrf.mxu0
    %4437 = vdwg.mxu0
    %4438 = vmatpush.bf16.msra.mxu0 %v2669
    %4439 = vmatpush.bf16.msra.mxu0 %v2665
    %4440 = vmatpush.bf16.msra.mxu0 %v2661
    %4441 = vmatpush.bf16.msra.mxu0 %v2657
    %4442 = vmatpush.bf16.msra.mxu0 %v2653
    %4443 = vmatpush.bf16.msra.mxu0 %v2649
    %4444 = vmatpush.bf16.msra.mxu0 %v2645
    %4445 = vmatpush.bf16.msra.mxu0 %v2641
    %4446 = vmatmul.bf16.gmra.mxu0 %v121
    %v4447 = vpop.f32.mrf.mxu0
    %v4448 = vadd.f32 %v4435, %v4447
    %v4449 = vpop.f32.mrf.mxu0
    %4450 = vdwg.mxu0
    %4451 = vmatpush.bf16.msra.mxu0 %v2701
    %4452 = vmatpush.bf16.msra.mxu0 %v2697
    %4453 = vmatpush.bf16.msra.mxu0 %v2693
    %4454 = vmatpush.bf16.msra.mxu0 %v2689
    %4455 = vmatpush.bf16.msra.mxu0 %v2685
    %4456 = vmatpush.bf16.msra.mxu0 %v2681
    %4457 = vmatpush.bf16.msra.mxu0 %v2677
    %4458 = vmatpush.bf16.msra.mxu0 %v2673
    %4459 = vmatmul.bf16.gmra.mxu0 %v122
    %v4460 = vpop.f32.mrf.mxu0
    %v4461 = vadd.f32 %v4448, %v4460
    %v4462 = vpop.f32.mrf.mxu0
    %4463 = vdwg.mxu0
    %4464 = vmatpush.bf16.msra.mxu0 %v2733
    %4465 = vmatpush.bf16.msra.mxu0 %v2729
    %4466 = vmatpush.bf16.msra.mxu0 %v2725
    %4467 = vmatpush.bf16.msra.mxu0 %v2721
    %4468 = vmatpush.bf16.msra.mxu0 %v2717
    %4469 = vmatpush.bf16.msra.mxu0 %v2713
    %4470 = vmatpush.bf16.msra.mxu0 %v2709
    %4471 = vmatpush.bf16.msra.mxu0 %v2705
    %4472 = vmatmul.bf16.gmra.mxu0 %v123
    %v4473 = vpop.f32.mrf.mxu0
    %v4474 = vadd.f32 %v4461, %v4473
    %v4475 = vpop.f32.mrf.mxu0
    %4476 = vdwg.mxu0
    %4477 = vmatpush.bf16.msra.mxu0 %v2765
    %4478 = vmatpush.bf16.msra.mxu0 %v2761
    %4479 = vmatpush.bf16.msra.mxu0 %v2757
    %4480 = vmatpush.bf16.msra.mxu0 %v2753
    %4481 = vmatpush.bf16.msra.mxu0 %v2749
    %4482 = vmatpush.bf16.msra.mxu0 %v2745
    %4483 = vmatpush.bf16.msra.mxu0 %v2741
    %4484 = vmatpush.bf16.msra.mxu0 %v2737
    %4485 = vmatmul.bf16.gmra.mxu0 %v124
    %v4486 = vpop.f32.mrf.mxu0
    %v4487 = vadd.f32 %v4474, %v4486
    %v4488 = vpop.f32.mrf.mxu0
    %4489 = vdwg.mxu0
    %4490 = vmatpush.bf16.msra.mxu0 %v2797
    %4491 = vmatpush.bf16.msra.mxu0 %v2793
    %4492 = vmatpush.bf16.msra.mxu0 %v2789
    %4493 = vmatpush.bf16.msra.mxu0 %v2785
    %4494 = vmatpush.bf16.msra.mxu0 %v2781
    %4495 = vmatpush.bf16.msra.mxu0 %v2777
    %4496 = vmatpush.bf16.msra.mxu0 %v2773
    %4497 = vmatpush.bf16.msra.mxu0 %v2769
    %4498 = vmatmul.bf16.gmra.mxu0 %v125
    %v4499 = vpop.f32.mrf.mxu0
    %v4500 = vadd.f32 %v4487, %v4499
    %v4501 = vpop.f32.mrf.mxu0
    %4502 = vdwg.mxu0
    %4503 = vmatpush.bf16.msra.mxu0 %v2829
    %4504 = vmatpush.bf16.msra.mxu0 %v2825
    %4505 = vmatpush.bf16.msra.mxu0 %v2821
    %4506 = vmatpush.bf16.msra.mxu0 %v2817
    %4507 = vmatpush.bf16.msra.mxu0 %v2813
    %4508 = vmatpush.bf16.msra.mxu0 %v2809
    %4509 = vmatpush.bf16.msra.mxu0 %v2805
    %4510 = vmatpush.bf16.msra.mxu0 %v2801
    %4511 = vmatmul.bf16.gmra.mxu0 %v126
    %v4512 = vpop.f32.mrf.mxu0
    %v4513 = vadd.f32 %v4500, %v4512
    %v4514 = vpop.f32.mrf.mxu0
    %4515 = vdwg.mxu0
    %4516 = vmatpush.bf16.msra.mxu0 %v2861
    %4517 = vmatpush.bf16.msra.mxu0 %v2857
    %4518 = vmatpush.bf16.msra.mxu0 %v2853
    %4519 = vmatpush.bf16.msra.mxu0 %v2849
    %4520 = vmatpush.bf16.msra.mxu0 %v2845
    %4521 = vmatpush.bf16.msra.mxu0 %v2841
    %4522 = vmatpush.bf16.msra.mxu0 %v2837
    %4523 = vmatpush.bf16.msra.mxu0 %v2833
    %4524 = vmatmul.bf16.gmra.mxu0 %v127
    %v4525 = vpop.f32.mrf.mxu0
    %v4526 = vadd.f32 %v4513, %v4525
    %v4527 = vpop.f32.mrf.mxu0
    %4528 = vdwg.mxu0
    %4529 = vmatpush.bf16.msra.mxu0 %v2893
    %4530 = vmatpush.bf16.msra.mxu0 %v2889
    %4531 = vmatpush.bf16.msra.mxu0 %v2885
    %4532 = vmatpush.bf16.msra.mxu0 %v2881
    %4533 = vmatpush.bf16.msra.mxu0 %v2877
    %4534 = vmatpush.bf16.msra.mxu0 %v2873
    %4535 = vmatpush.bf16.msra.mxu0 %v2869
    %4536 = vmatpush.bf16.msra.mxu0 %v2865
    %4537 = vmatmul.bf16.gmra.mxu0 %v128
    %v4538 = vpop.f32.mrf.mxu0
    %v4539 = vadd.f32 %v4526, %v4538
    %v4540 = vpop.f32.mrf.mxu0
    %4541 = vdwg.mxu0
    %4542 = vmatpush.bf16.msra.mxu0 %v2925
    %4543 = vmatpush.bf16.msra.mxu0 %v2921
    %4544 = vmatpush.bf16.msra.mxu0 %v2917
    %4545 = vmatpush.bf16.msra.mxu0 %v2913
    %4546 = vmatpush.bf16.msra.mxu0 %v2909
    %4547 = vmatpush.bf16.msra.mxu0 %v2905
    %4548 = vmatpush.bf16.msra.mxu0 %v2901
    %4549 = vmatpush.bf16.msra.mxu0 %v2897
    %4550 = vmatmul.bf16.gmra.mxu0 %v129
    %v4551 = vpop.f32.mrf.mxu0
    %v4552 = vadd.f32 %v4539, %v4551
    %v4553 = vpop.f32.mrf.mxu0
    %4554 = vdwg.mxu0
    %4555 = vmatpush.bf16.msra.mxu0 %v2957
    %4556 = vmatpush.bf16.msra.mxu0 %v2953
    %4557 = vmatpush.bf16.msra.mxu0 %v2949
    %4558 = vmatpush.bf16.msra.mxu0 %v2945
    %4559 = vmatpush.bf16.msra.mxu0 %v2941
    %4560 = vmatpush.bf16.msra.mxu0 %v2937
    %4561 = vmatpush.bf16.msra.mxu0 %v2933
    %4562 = vmatpush.bf16.msra.mxu0 %v2929
    %4563 = vmatmul.bf16.gmra.mxu0 %v130
    %v4564 = vpop.f32.mrf.mxu0
    %v4565 = vadd.f32 %v4552, %v4564
    %v4566 = vpop.f32.mrf.mxu0
    %4567 = vdwg.mxu0
    %4568 = vmatpush.bf16.msra.mxu0 %v2989
    %4569 = vmatpush.bf16.msra.mxu0 %v2985
    %4570 = vmatpush.bf16.msra.mxu0 %v2981
    %4571 = vmatpush.bf16.msra.mxu0 %v2977
    %4572 = vmatpush.bf16.msra.mxu0 %v2973
    %4573 = vmatpush.bf16.msra.mxu0 %v2969
    %4574 = vmatpush.bf16.msra.mxu0 %v2965
    %4575 = vmatpush.bf16.msra.mxu0 %v2961
    %4576 = vmatmul.bf16.gmra.mxu0 %v131
    %v4577 = vpop.f32.mrf.mxu0
    %v4578 = vadd.f32 %v4565, %v4577
    %v4579 = vpop.f32.mrf.mxu0
    %4580 = vdwg.mxu0
    %4581 = vmatpush.bf16.msra.mxu0 %v3021
    %4582 = vmatpush.bf16.msra.mxu0 %v3017
    %4583 = vmatpush.bf16.msra.mxu0 %v3013
    %4584 = vmatpush.bf16.msra.mxu0 %v3009
    %4585 = vmatpush.bf16.msra.mxu0 %v3005
    %4586 = vmatpush.bf16.msra.mxu0 %v3001
    %4587 = vmatpush.bf16.msra.mxu0 %v2997
    %4588 = vmatpush.bf16.msra.mxu0 %v2993
    %4589 = vmatmul.bf16.gmra.mxu0 %v132
    %v4590 = vpop.f32.mrf.mxu0
    %v4591 = vadd.f32 %v4578, %v4590
    %v4592 = vpop.f32.mrf.mxu0
    %4593 = vdwg.mxu0
    %4594 = vmatpush.bf16.msra.mxu0 0
    %4595 = vmatpush.bf16.msra.mxu0 0
    %4596 = vmatpush.bf16.msra.mxu0 0
    %4597 = vmatpush.bf16.msra.mxu0 0
    %4598 = vmatpush.bf16.msra.mxu0 0
    %4599 = vmatpush.bf16.msra.mxu0 0
    %4600 = vmatpush.bf16.msra.mxu0 0
    %4601 = vmatpush.bf16.msra.mxu0 %v3617
    %4602 = vmatmul.bf16.gmra.mxu0 %v3604
    %v4603 = vpop.f32.mrf.mxu0
    %v4604 = vadd.f32 %v4591, %v4603
    %v4605 = vpop.f32.mrf.mxu0
    %4606 = vdwg.mxu0
    %vm4607 = vcmp.ge.f32.partialorder %v3863, 2.0
    %vm4608 = vcmp.ge.f32.partialorder %v4110, 2.0
    %vm4609 = vcmp.ge.f32.partialorder %v4357, 2.0
    %vm4610 = vcmp.ge.f32.partialorder %v4604, 2.0
    %v4611 = vsel %vm4607, 1, 0
    %v4612 = vsel %vm4608, 1, 0
    %v4613 = vsel %vm4609, 1, 0
    %v4614 = vsel %vm4610, 1, 0
    %v4615 = vcvt.s32.f32 %v4611
    %v4616 = vcvt.s32.f32 %v4612
    %v4617 = vcvt.s32.f32 %v4613
    %v4618 = vcvt.s32.f32 %v4614
    %v4619 = vpack.c.bf16 %v4615, %v4615
    %v4620 = vpack.c.bf16 %v4616, %v4616
    %v4621 = vpack.c.bf16 %v4617, %v4617
    %v4622 = vpack.c.bf16 %v4618, %v4618
    %v4623 = vld [vmem:[#allocation7] sm:$0xf]
    %v4624 = vld [vmem:[#allocation7 + $0x4] sm:$0xf]
    %v4625 = vld [vmem:[#allocation7 + $0x8] sm:$0xf]
    %v4626 = vld [vmem:[#allocation7 + $0xc] sm:$0xf]
    %v4627 = vld [vmem:[#allocation7 + $0x10] sm:$0xf]
    %v4628 = vld [vmem:[#allocation7 + $0x14] sm:$0xf]
    %v4629 = vld [vmem:[#allocation7 + $0x18] sm:$0xf]
    %v4630 = vld [vmem:[#allocation7 + $0x1c] sm:$0xf]
    %v4631 = vld [vmem:[#allocation7 + $0x20] sm:$0xf]
    %v4632 = vld [vmem:[#allocation7 + $0x24] sm:$0xf]
    %v4633 = vld [vmem:[#allocation7 + $0x28] sm:$0xf]
    %v4634 = vld [vmem:[#allocation7 + $0x2c] sm:$0xf]
    %v4635 = vld [vmem:[#allocation7 + $0x30] sm:$0xf]
    %v4636 = vld [vmem:[#allocation7 + $0x34] sm:$0xf]
    %v4637 = vld [vmem:[#allocation7 + $0x38] sm:$0xf]
    %v4638 = vld [vmem:[#allocation7 + $0x3c] sm:$0xf]
    %v4639 = vld [vmem:[#allocation7 + $0x40] sm:$0xf]
    %v4640 = vld [vmem:[#allocation7 + $0x44] sm:$0xf]
    %v4641 = vld [vmem:[#allocation7 + $0x48] sm:$0xf]
    %v4642 = vld [vmem:[#allocation7 + $0x4c] sm:$0xf]
    %v4643 = vld [vmem:[#allocation7 + $0x50] sm:$0xf]
    %v4644 = vld [vmem:[#allocation7 + $0x54] sm:$0xf]
    %v4645 = vld [vmem:[#allocation7 + $0x58] sm:$0xf]
    %v4646 = vld [vmem:[#allocation7 + $0x5c] sm:$0xf]
    %v4647 = vld [vmem:[#allocation7 + $0x60] sm:$0xf]
    %v4648 = vld [vmem:[#allocation7 + $0x64] sm:$0xf]
    %v4649 = vld [vmem:[#allocation7 + $0x68] sm:$0xf]
    %v4650 = vld [vmem:[#allocation7 + $0x6c] sm:$0xf]
    %v4651 = vld [vmem:[#allocation7 + $0x70] sm:$0xf]
    %v4652 = vld [vmem:[#allocation7 + $0x74] sm:$0xf]
    %v4653 = vld [vmem:[#allocation7 + $0x78] sm:$0xf]
    %v4654 = vld [vmem:[#allocation7 + $0x7c] sm:$0xf]
    %v4655 = vld [vmem:[#allocation7 + $0x80] sm:$0xf]
    %v4656 = vld [vmem:[#allocation7 + $0x84] sm:$0xf]
    %v4657 = vld [vmem:[#allocation7 + $0x88] sm:$0xf]
    %v4658 = vld [vmem:[#allocation7 + $0x8c] sm:$0xf]
    %v4659 = vld [vmem:[#allocation7 + $0x90] sm:$0xf]
    %v4660 = vld [vmem:[#allocation7 + $0x94] sm:$0xf]
    %v4661 = vld [vmem:[#allocation7 + $0x98] sm:$0xf]
    %v4662 = vld [vmem:[#allocation7 + $0x9c] sm:$0xf]
    %v4663 = vld [vmem:[#allocation7 + $0xa0] sm:$0xf]
    %v4664 = vld [vmem:[#allocation7 + $0xa4] sm:$0xf]
    %v4665 = vld [vmem:[#allocation7 + $0xa8] sm:$0xf]
    %v4666 = vld [vmem:[#allocation7 + $0xac] sm:$0xf]
    %v4667 = vld [vmem:[#allocation7 + $0xb0] sm:$0xf]
    %v4668 = vld [vmem:[#allocation7 + $0xb4] sm:$0xf]
    %v4669 = vld [vmem:[#allocation7 + $0xb8] sm:$0xf]
    %v4670 = vld [vmem:[#allocation7 + $0xbc] sm:$0xf]
    %v4671 = vld [vmem:[#allocation7 + $0xc0] sm:$0xf]
    %v4672 = vld [vmem:[#allocation7 + $0xc4] sm:$0xf]
    %v4673 = vld [vmem:[#allocation7 + $0xc8] sm:$0xf]
    %v4674 = vld [vmem:[#allocation7 + $0xcc] sm:$0xf]
    %v4675 = vld [vmem:[#allocation7 + $0xd0] sm:$0xf]
    %v4676 = vld [vmem:[#allocation7 + $0xd4] sm:$0xf]
    %v4677 = vld [vmem:[#allocation7 + $0xd8] sm:$0xf]
    %v4678 = vld [vmem:[#allocation7 + $0xdc] sm:$0xf]
    %v4679 = vld [vmem:[#allocation7 + $0xe0] sm:$0xf]
    %v4680 = vld [vmem:[#allocation7 + $0xe4] sm:$0xf]
    %v4681 = vld [vmem:[#allocation7 + $0xe8] sm:$0xf]
    %v4682 = vld [vmem:[#allocation7 + $0xec] sm:$0xf]
    %v4683 = vld [vmem:[#allocation7 + $0xf0] sm:$0xf]
    %v4684 = vld [vmem:[#allocation7 + $0xf4] sm:$0xf]
    %v4685 = vld [vmem:[#allocation7 + $0xf8] sm:$0xf]
    %v4686 = vld [vmem:[#allocation7 + $0xfc] sm:$0xf]
    %v4751 = vunpack.c.l.b16 %v4623
    %v4752 = vunpack.c.l.b16 %v4624
    %v4753 = vunpack.c.l.b16 %v4625
    %v4754 = vunpack.c.l.b16 %v4626
    %v4755 = vunpack.c.l.b16 %v4627
    %v4756 = vunpack.c.l.b16 %v4628
    %v4757 = vunpack.c.l.b16 %v4629
    %v4758 = vunpack.c.l.b16 %v4630
    %v4759 = vunpack.c.l.b16 %v4631
    %v4760 = vunpack.c.l.b16 %v4632
    %v4761 = vunpack.c.l.b16 %v4633
    %v4762 = vunpack.c.l.b16 %v4634
    %v4763 = vunpack.c.l.b16 %v4635
    %v4764 = vunpack.c.l.b16 %v4636
    %v4765 = vunpack.c.l.b16 %v4637
    %v4766 = vunpack.c.l.b16 %v4638
    %v4767 = vunpack.c.l.b16 %v4639
    %v4768 = vunpack.c.l.b16 %v4640
    %v4769 = vunpack.c.l.b16 %v4641
    %v4770 = vunpack.c.l.b16 %v4642
    %v4771 = vunpack.c.l.b16 %v4643
    %v4772 = vunpack.c.l.b16 %v4644
    %v4773 = vunpack.c.l.b16 %v4645
    %v4774 = vunpack.c.l.b16 %v4646
    %v4775 = vunpack.c.l.b16 %v4647
    %v4776 = vunpack.c.l.b16 %v4648
    %v4777 = vunpack.c.l.b16 %v4649
    %v4778 = vunpack.c.l.b16 %v4650
    %v4779 = vunpack.c.l.b16 %v4651
    %v4780 = vunpack.c.l.b16 %v4652
    %v4781 = vunpack.c.l.b16 %v4653
    %v4782 = vunpack.c.l.b16 %v4654
    %v4783 = vunpack.c.l.b16 %v4655
    %v4784 = vunpack.c.l.b16 %v4656
    %v4785 = vunpack.c.l.b16 %v4657
    %v4786 = vunpack.c.l.b16 %v4658
    %v4787 = vunpack.c.l.b16 %v4659
    %v4788 = vunpack.c.l.b16 %v4660
    %v4789 = vunpack.c.l.b16 %v4661
    %v4790 = vunpack.c.l.b16 %v4662
    %v4791 = vunpack.c.l.b16 %v4663
    %v4792 = vunpack.c.l.b16 %v4664
    %v4793 = vunpack.c.l.b16 %v4665
    %v4794 = vunpack.c.l.b16 %v4666
    %v4795 = vunpack.c.l.b16 %v4667
    %v4796 = vunpack.c.l.b16 %v4668
    %v4797 = vunpack.c.l.b16 %v4669
    %v4798 = vunpack.c.l.b16 %v4670
    %v4799 = vunpack.c.l.b16 %v4671
    %v4800 = vunpack.c.l.b16 %v4672
    %v4801 = vunpack.c.l.b16 %v4673
    %v4802 = vunpack.c.l.b16 %v4674
    %v4803 = vunpack.c.l.b16 %v4675
    %v4804 = vunpack.c.l.b16 %v4676
    %v4805 = vunpack.c.l.b16 %v4677
    %v4806 = vunpack.c.l.b16 %v4678
    %v4807 = vunpack.c.l.b16 %v4679
    %v4808 = vunpack.c.l.b16 %v4680
    %v4809 = vunpack.c.l.b16 %v4681
    %v4810 = vunpack.c.l.b16 %v4682
    %v4811 = vunpack.c.l.b16 %v4683
    %v4812 = vunpack.c.l.b16 %v4684
    %v4813 = vunpack.c.l.b16 %v4685
    %v4814 = vunpack.c.l.b16 %v4686
    %v4815 = vpack.c.b16 %v4752, %v4751
    %v4816 = vpack.c.b16 %v4754, %v4753
    %v4817 = vpack.c.b16 %v4756, %v4755
    %v4818 = vpack.c.b16 %v4758, %v4757
    %v4819 = vpack.c.b16 %v4760, %v4759
    %v4820 = vpack.c.b16 %v4762, %v4761
    %v4821 = vpack.c.b16 %v4764, %v4763
    %v4822 = vpack.c.b16 %v4766, %v4765
    %v4823 = vpack.c.b16 %v4768, %v4767
    %v4824 = vpack.c.b16 %v4770, %v4769
    %v4825 = vpack.c.b16 %v4772, %v4771
    %v4826 = vpack.c.b16 %v4774, %v4773
    %v4827 = vpack.c.b16 %v4776, %v4775
    %v4828 = vpack.c.b16 %v4778, %v4777
    %v4829 = vpack.c.b16 %v4780, %v4779
    %v4830 = vpack.c.b16 %v4782, %v4781
    %v4831 = vpack.c.b16 %v4784, %v4783
    %v4832 = vpack.c.b16 %v4786, %v4785
    %v4833 = vpack.c.b16 %v4788, %v4787
    %v4834 = vpack.c.b16 %v4790, %v4789
    %v4835 = vpack.c.b16 %v4792, %v4791
    %v4836 = vpack.c.b16 %v4794, %v4793
    %v4837 = vpack.c.b16 %v4796, %v4795
    %v4838 = vpack.c.b16 %v4798, %v4797
    %v4839 = vpack.c.b16 %v4800, %v4799
    %v4840 = vpack.c.b16 %v4802, %v4801
    %v4841 = vpack.c.b16 %v4804, %v4803
    %v4842 = vpack.c.b16 %v4806, %v4805
    %v4843 = vpack.c.b16 %v4808, %v4807
    %v4844 = vpack.c.b16 %v4810, %v4809
    %v4845 = vpack.c.b16 %v4812, %v4811
    %v4846 = vpack.c.b16 %v4814, %v4813
    %4879 = vmatpush.bf16.msra.mxu0 %v4822
    %4880 = vmatpush.bf16.msra.mxu0 %v4821
    %4881 = vmatpush.bf16.msra.mxu0 %v4820
    %4882 = vmatpush.bf16.msra.mxu0 %v4819
    %4883 = vmatpush.bf16.msra.mxu0 %v4818
    %4884 = vmatpush.bf16.msra.mxu0 %v4817
    %4885 = vmatpush.bf16.msra.mxu0 %v4816
    %4886 = vmatpush.bf16.msra.mxu0 %v4815
    %4887 = vmatmul.bf16.gmra.mxu0 %v4619
    %v4888 = vpop.f32.mrf.mxu0
    %v4889 = vadd.f32 0.0, %v4888
    %v4890 = vpop.f32.mrf.mxu0
    %4891 = vdwg.mxu0
    %4892 = vmatpush.bf16.msra.mxu0 %v4830
    %4893 = vmatpush.bf16.msra.mxu0 %v4829
    %4894 = vmatpush.bf16.msra.mxu0 %v4828
    %4895 = vmatpush.bf16.msra.mxu0 %v4827
    %4896 = vmatpush.bf16.msra.mxu0 %v4826
    %4897 = vmatpush.bf16.msra.mxu0 %v4825
    %4898 = vmatpush.bf16.msra.mxu0 %v4824
    %4899 = vmatpush.bf16.msra.mxu0 %v4823
    %4900 = vmatmul.bf16.gmra.mxu0 %v4620
    %v4901 = vpop.f32.mrf.mxu0
    %v4902 = vadd.f32 %v4889, %v4901
    %v4903 = vpop.f32.mrf.mxu0
    %4904 = vdwg.mxu0
    %4905 = vmatpush.bf16.msra.mxu0 %v4838
    %4906 = vmatpush.bf16.msra.mxu0 %v4837
    %4907 = vmatpush.bf16.msra.mxu0 %v4836
    %4908 = vmatpush.bf16.msra.mxu0 %v4835
    %4909 = vmatpush.bf16.msra.mxu0 %v4834
    %4910 = vmatpush.bf16.msra.mxu0 %v4833
    %4911 = vmatpush.bf16.msra.mxu0 %v4832
    %4912 = vmatpush.bf16.msra.mxu0 %v4831
    %4913 = vmatmul.bf16.gmra.mxu0 %v4621
    %v4914 = vpop.f32.mrf.mxu0
    %v4915 = vadd.f32 %v4902, %v4914
    %v4916 = vpop.f32.mrf.mxu0
    %4917 = vdwg.mxu0
    %4918 = vmatpush.bf16.msra.mxu0 %v4846
    %4919 = vmatpush.bf16.msra.mxu0 %v4845
    %4920 = vmatpush.bf16.msra.mxu0 %v4844
    %4921 = vmatpush.bf16.msra.mxu0 %v4843
    %4922 = vmatpush.bf16.msra.mxu0 %v4842
    %4923 = vmatpush.bf16.msra.mxu0 %v4841
    %4924 = vmatpush.bf16.msra.mxu0 %v4840
    %4925 = vmatpush.bf16.msra.mxu0 %v4839
    %4926 = vmatmul.bf16.gmra.mxu0 %v4622
    %v4927 = vpop.f32.mrf.mxu0
    %v4928 = vadd.f32 %v4915, %v4927
    %v4929 = vpop.f32.mrf.mxu0
    %4930 = vdwg.mxu0
    %4931 = vst [vmem:[#allocation8] sm:$0x3] %v4928
    // Predicated region
    $region26: #{tpu_custom_call.1} parent=1 // pred_check
      _
    $region27: #{tpu_custom_call.1} parent=1 // pred_check_branch
      %4933 = sbr.rel (0) target = $region29
    $region28: #{tpu_custom_call.1} parent=1 // pred_region
      %4935 = vsyncadd [#allocation4], 0
      %s4937 = sshll.u32 [#allocation8], 4
      %s4938 = int_to_ptr.vmem [resolvable:$true] %s4937
      %s4939 = sshll.u32 %s3, 4
      %s4940 = int_to_ptr.hbm [resolvable:$true] %s4939
      %4942 = dma.vmem_to_hbm [thread:$0]  %s4938, 32, %s4940, [#allocation4]
    $region29: #{tpu_custom_call.1} parent=1 // pred_fallthru
      _
    // Predicated region
    $region30: #{tpu_custom_call.1} parent=1 // pred_check
      _
    $region31: #{tpu_custom_call.1} parent=1 // pred_check_branch
      %4944 = sbr.rel (0) target = $region33
    $region32: #{tpu_custom_call.1} parent=1 // pred_region
      %4946 = dma.done [#allocation4], 32
    $region33: #{tpu_custom_call.1} parent=1 // pred_fallthru
      _
    %4947 = vsyncpa [#allocation3], 1
    %4948 = vsyncpa [#allocation6], 1
    %4949 = vsyncpa [#allocation4], 1

</llo_original>
